<compile_context>
chip_gen: v6e
topology: v6e:2x2x1
jax: 0.10.0
libtpu: 0.0.40
codegen_flags: <defaults>
</compile_context>

<pallas_src>
import functools

import jax
import jax.numpy as jnp
from jax.experimental import pallas as pl
from jax.experimental.pallas import tpu as pltpu


def _round_up(v, m):
    return ((v + m - 1) // m) * m


# ---------------------------------------------------------------------------
# Kernel
# ---------------------------------------------------------------------------
def _lstm_fc_kernel(x_ref, wih_ref, whh_ref, b_ref, wfc_ref, bfc_ref,
                    out_ref, h_sc, c_sc, gx_sc, *, t_blk, hp, unroll):
    """One (batch-block, time-chunk) step of the LSTM recurrence (+ final FC).

    Grid = (batch_blocks, T // t_blk): batch axis "parallel", time "arbitrary".

    x_ref   : (t_blk, b_blk, Dp) bf16  time-major input chunk
    wih_ref : (Dp, 4Hp)  bf16  W_ih^T, gate-major (i, f, g, o), lane-aligned
    whh_ref : (Hp, 4Hp)  bf16  W_hh^T
    b_ref   : (1, 4Hp)   f32   b_ih + b_hh
    wfc_ref : (Hp, Op)   bf16  W_fc^T (zero rows for padded hidden)
    bfc_ref : (1, Op)    f32   b_fc (padded entries = -1e30)
    out_ref : (b_blk, Op) f32
    h_sc/c_sc : (b_blk, Hp) f32   recurrent state, persists across time chunks
    gx_sc   : (t_blk, b_blk, 4Hp) bf16  hoisted x @ W_ih^T pre-activations
    """
    ci = pl.program_id(1)                       # time-chunk index (inner axis)
    _, b_blk, dp = x_ref.shape

    @pl.when(ci == 0)
    def _():
        h_sc[...] = jnp.zeros_like(h_sc)
        c_sc[...] = jnp.zeros_like(c_sc)

    # ---- Phase 1: hoisted input projection for the whole chunk ------------
    # One fat MXU matmul (M = t_blk * b_blk) instead of t_blk skinny ones.
    x2d = x_ref[...].reshape(t_blk * b_blk, dp)          # tile-aligned collapse
    gx = jnp.dot(x2d, wih_ref[...], preferred_element_type=jnp.float32)
    gx_sc[...] = gx.reshape(t_blk, b_blk, 4 * hp).astype(gx_sc.dtype)

    # ---- Phase 2: sequential recurrence (only h @ W_hh^T per step) --------
    bias_b = jnp.broadcast_to(b_ref[...], (b_blk, 4 * hp))   # hoisted broadcast

    def step(t, carry):
        h_prev, c_prev = carry                       # f32 state
        h_bf = h_prev.astype(jnp.bfloat16)           # bf16 MXU operand
        gx_t = gx_sc[t]                              # (b_blk, 4Hp) bf16
        if hp < 512:
            gates = (gx_t.astype(jnp.float32)
                     + jnp.dot(h_bf, whh_ref[...],
                               preferred_element_type=jnp.float32)
                     + bias_b)
            i_g = jax.nn.sigmoid(gates[:, 0 * hp:1 * hp])
            f_g = jax.nn.sigmoid(gates[:, 1 * hp:2 * hp])
            g_g = jnp.tanh(gates[:, 2 * hp:3 * hp])
            c_new = f_g * c_prev + i_g * g_g
            o_g = jax.nn.sigmoid(gates[:, 3 * hp:4 * hp])
        else:
            # Large Hp: per-gate matmuls bound the live set to ~b_blk x Hp.
            def gate(k, fn):
                pre = (gx_t[:, k * hp:(k + 1) * hp].astype(jnp.float32)
                       + jnp.dot(h_bf, whh_ref[:, k * hp:(k + 1) * hp],
                                 preferred_element_type=jnp.float32)
                       + bias_b[:, k * hp:(k + 1) * hp])
                return fn(pre)
            i_g = gate(0, jax.nn.sigmoid)
            f_g = gate(1, jax.nn.sigmoid)
            g_g = gate(2, jnp.tanh)
            c_new = f_g * c_prev + i_g * g_g
            o_g = gate(3, jax.nn.sigmoid)
        h_new = o_g * jnp.tanh(c_new)
        return h_new, c_new

    h_fin, c_fin = jax.lax.fori_loop(0, t_blk, step, (h_sc[...], c_sc[...]),
                                     unroll=unroll)
    h_sc[...] = h_fin
    c_sc[...] = c_fin

    # ---- Phase 3: final FC + log_softmax on the last hidden state ---------
    @pl.when(ci == pl.num_programs(1) - 1)
    def _():
        logits = (jnp.dot(h_fin.astype(jnp.bfloat16), wfc_ref[...],
                          preferred_element_type=jnp.float32) + bfc_ref[...])
        m = jnp.max(logits, axis=1, keepdims=True)
        shifted = logits - m
        lse = jnp.log(jnp.sum(jnp.exp(shifted), axis=1, keepdims=True))
        out_ref[...] = (shifted - lse).astype(out_ref.dtype)


# ---------------------------------------------------------------------------
# Wrapper-side helpers
# ---------------------------------------------------------------------------
def _pad_gate_weight_t(w, rows_pad, h, hp):
    """PyTorch gate-stacked weight (4H, R) -> transposed/padded (rows_pad, 4Hp).

    Gate order (i, f, g, o) preserved; each gate occupies a lane-aligned
    [k*hp : k*hp + h] column block, padded columns are zero.
    """
    r = w.shape[1]
    w4 = w.reshape(4, h, r)                                    # (4, H, R)
    w4t = jnp.transpose(w4, (0, 2, 1))                         # (4, R, H)
    w4t = jnp.pad(w4t, ((0, 0), (0, rows_pad - r), (0, hp - h)))
    return jnp.transpose(w4t, (1, 0, 2)).reshape(rows_pad, 4 * hp)


def _pad_gate_bias(b, h, hp):
    return jnp.pad(b.reshape(4, h), ((0, 0), (0, hp - h))).reshape(1, 4 * hp)


def _vmem_budget_bytes():
    cap = 64 * 1024 * 1024          # conservative fallback (v7x per-core VMEM)
    try:
        cap = int(pltpu.get_tpu_info().vmem_capacity_bytes)
    except Exception:
        pass
    # ~75% of physical with a hard cap: ~48 MiB on v7x (64 MiB part),
    # ~96 MiB on v5e/v6e (128 MiB parts).
    return int(min(0.75 * cap, 100 * 1024 * 1024))


def _detect_tensorcore_count():
    try:
        info = pltpu.get_tpu_info()
    except Exception:
        return 1
    for name in ("num_tensorcores", "tensorcore_count", "num_cores",
                 "cores_per_chip"):
        v = getattr(info, name, None)
        if isinstance(v, int) and 1 <= v <= 16:
            return v
    return 1


def _largest_divisor_leq(n, cap):
    cap = max(1, min(n, cap))
    for d in range(cap, 0, -1):
        if n % d == 0:
            return d
    return 1


# ---------------------------------------------------------------------------
# Public forward
# ---------------------------------------------------------------------------
def rnn_forward(x, params, *, t_blk=None, batch_blocks=None,
                vmem_budget_bytes=None):
    """x: (B, T, input_size) float32 (PyTorch batch_first convention)."""
    w_ih, w_hh, b_ih, b_hh, w_fc, b_fc = (
        params["w_ih"], params["w_hh"], params["b_ih"], params["b_hh"],
        params["w_fc"], params["b_fc"])

    B, T, D = x.shape
    H = w_hh.shape[1]
    assert w_hh.shape[0] == 4 * H
    O = w_fc.shape[0]

    # Hardware-friendly padded sizes.  Batch rounds to 16 so bf16 blocks are
    # whole (16, 128) tiles and the in-kernel (t, b, D)->(t*b, D) collapse is
    # layout-free.
    Bp = _round_up(max(B, 16), 16)
    Dp = _round_up(D, 128)     # lane width (MXU K)
    Hp = _round_up(H, 128)     # lane-aligned gate slices
    Op = _round_up(O, 128)     # lane-dense output stores

    # ---- batch blocking (v7x megacore: split batch across 2 TensorCores) ---
    if batch_blocks is None:
        batch_blocks = 2 if (_detect_tensorcore_count() >= 2
                             and Bp % 32 == 0) else 1
    batch_blocks = max(1, int(batch_blocks))
    while batch_blocks > 1 and (Bp % batch_blocks
                                or (Bp // batch_blocks) % 16):
        batch_blocks -= 1
    b_blk = Bp // batch_blocks

    # ---- VMEM-budgeted time blocking ----------------------------------------
    budget = (_vmem_budget_bytes() if vmem_budget_bytes is None
              else int(vmem_budget_bytes))
    BF16, F32 = 2, 4
    fixed = (2 * (Dp * 4 * Hp + Hp * 4 * Hp + Hp * Op) * BF16  # weights (<=2 bufs)
             + 2 * (4 * Hp + Op) * F32                         # biases
             + 2 * b_blk * Op * F32                            # out block
             + 2 * b_blk * Hp * F32)                           # h, c state
    # per time step: double-buffered bf16 x chunk + bf16 gx slab
    per_t = b_blk * (2 * Dp + 4 * Hp) * BF16
    t_max = max(1, (budget - fixed) // per_t)

    if t_blk is None:
        cap = t_max
        if T >= 16:                 # keep >=2 chunks so x DMA overlaps compute
            cap = min(cap, max(1, T // 2))
        t_blk = _largest_divisor_leq(T, cap)
    assert T % t_blk == 0, "t_blk must divide T (time is never zero-padded)"
    n_t = T // t_blk

    # ---- glue: layout / padding / dtype in plain JAX ------------------------
    # transpose+pad fuse into one relayout copy; the 3-D BlockSpec below avoids
    # a second flattened copy of x in HBM.
    x_tm = jnp.transpose(x, (1, 0, 2))                           # (T, B, D)
    x_tm = jnp.pad(x_tm, ((0, 0), (0, Bp - B), (0, Dp - D)))     # (T, Bp, Dp)
    x_tm = x_tm.astype(jnp.bfloat16)

    wih_t = _pad_gate_weight_t(w_ih, Dp, H, Hp).astype(jnp.bfloat16)  # (Dp, 4Hp)
    whh_t = _pad_gate_weight_t(w_hh, Hp, H, Hp).astype(jnp.bfloat16)  # (Hp, 4Hp)
    bias = _pad_gate_bias((b_ih + b_hh).astype(jnp.float32), H, Hp)   # (1, 4Hp)

    wfc_t = jnp.pad(jnp.transpose(w_fc),
                    ((0, Hp - H), (0, Op - O))).astype(jnp.bfloat16)  # (Hp, Op)
    # Padded logit columns get a huge negative bias so exp() kills them.
    bfc = jnp.pad(b_fc.astype(jnp.float32), (0, Op - O),
                  constant_values=-1e30).reshape(1, Op)               # (1, Op)

    kernel = functools.partial(_lstm_fc_kernel, t_blk=t_blk, hp=Hp,
                               unroll=min(8, t_blk))

    def _const_spec(shape, single_buffer):
        idx = lambda bi, ci: (0,) * len(shape)
        buffered = getattr(pl, "Buffered", None)
        if single_buffer and buffered is not None:
            try:
                return pl.BlockSpec(shape, idx, pipeline_mode=buffered(1))
            except TypeError:
                pass
        return pl.BlockSpec(shape, idx)

    def _run(single_buffer_consts):
        grid_spec = pltpu.PrefetchScalarGridSpec(
            num_scalar_prefetch=0,
            grid=(batch_blocks, n_t),
            in_specs=[
                pl.BlockSpec((t_blk, b_blk, Dp), lambda bi, ci: (ci, bi, 0)),
                _const_spec((Dp, 4 * Hp), single_buffer_consts),   # W_ih^T
                _const_spec((Hp, 4 * Hp), single_buffer_consts),   # W_hh^T
                _const_spec((1, 4 * Hp), single_buffer_consts),    # bias
                _const_spec((Hp, Op), single_buffer_consts),       # W_fc^T
                _const_spec((1, Op), single_buffer_consts),        # b_fc
            ],
            out_specs=pl.BlockSpec((b_blk, Op), lambda bi, ci: (bi, 0)),
            scratch_shapes=[
                pltpu.VMEM((b_blk, Hp), jnp.float32),               # h
                pltpu.VMEM((b_blk, Hp), jnp.float32),               # c
                pltpu.VMEM((t_blk, b_blk, 4 * Hp), jnp.bfloat16),   # gx slab
            ],
        )
        return pl.pallas_call(
            kernel,
            out_shape=jax.ShapeDtypeStruct((Bp, Op), jnp.float32),
            grid_spec=grid_spec,
            compiler_params=pltpu.CompilerParams(
                dimension_semantics=("parallel", "arbitrary"),
                vmem_limit_bytes=int(budget)),
        )(x_tm, wih_t, whh_t, bias, wfc_t, bfc)

    try:
        out = _run(True)    # single-buffer the never-refetched constant weights
    except Exception:
        out = _run(False)   # fall back if pipeline_mode=Buffered(1) unsupported

    return out[:B, :O]


# ---------------------------------------------------------------------------
# Params / reference / test
# ---------------------------------------------------------------------------
def init_params(key, input_size, hidden_size, output_size):
    # Deterministic init mimicking PyTorch's U(-1/sqrt(H), 1/sqrt(H)).
    ks = jax.random.split(key, 6)
    bound = 1.0 / jnp.sqrt(hidden_size)
    u = lambda k, shape: jax.random.uniform(k, shape, jnp.float32, -bound, bound)
    return {
        "w_ih": u(ks[0], (4 * hidden_size, input_size)),
        "w_hh": u(ks[1], (4 * hidden_size, hidden_size)),
        "b_ih": u(ks[2], (4 * hidden_size,)),
        "b_hh": u(ks[3], (4 * hidden_size,)),
        "w_fc": u(ks[4], (output_size, hidden_size)),
        "b_fc": u(ks[5], (output_size,)),
    }


def _reference(x, p):
    """Pure-JAX f32 reference of the PyTorch forward, for a sanity check."""
    B, T, _ = x.shape
    H = p["w_hh"].shape[1]
    h = jnp.zeros((B, H), jnp.float32)
    c = jnp.zeros((B, H), jnp.float32)
    for t in range(T):
        g = x[:, t, :] @ p["w_ih"].T + h @ p["w_hh"].T + p["b_ih"] + p["b_hh"]
        i, f, gg, o = jnp.split(g, 4, axis=1)
        c = jax.nn.sigmoid(f) * c + jax.nn.sigmoid(i) * jnp.tanh(gg)
        h = jax.nn.sigmoid(o) * jnp.tanh(c)
    logits = h @ p["w_fc"].T + p["b_fc"]
    return jax.nn.log_softmax(logits, axis=1)


if __name__ == "__main__":
    key = jax.random.PRNGKey(0)
    k_x, k_p, k_x2, k_p2 = jax.random.split(key, 4)

    # --- Test 1: module-sized toy shapes (B=2, T=8, D=16, H=32, O=10) -------
    B, T = 2, 8
    input_size, hidden_size, output_size = 16, 32, 10
    x = jax.random.normal(k_x, (B, T, input_size), jnp.float32)
    params = init_params(k_p, input_size, hidden_size, output_size)

    out = jax.block_until_ready(rnn_forward(x, params))
    ref = _reference(x, params)
    assert out.shape == (B, output_size)
    # bf16 MXU operands -> looser tolerance than pure f32.
    assert jnp.allclose(out, ref, atol=6e-2, rtol=6e-2), "mismatch (test 1)"

    # --- Test 2: exercise multi-chunk time axis and 2 batch blocks ----------
    B2, T2 = 32, 16
    in2, hid2, out_sz2 = 64, 128, 10
    x2 = jax.random.normal(k_x2, (B2, T2, in2), jnp.float32)
    params2 = init_params(k_p2, in2, hid2, out_sz2)
    o2 = jax.block_until_ready(rnn_forward(x2, params2, batch_blocks=2))
    r2 = _reference(x2, params2)
    assert o2.shape == (B2, out_sz2)
    assert jnp.allclose(o2, r2, atol=6e-2, rtol=6e-2), "mismatch (test 2)"

    print("KERNEL_OK")
</pallas_src>

<mosaic_0001>
module attributes {stable_mosaic.version = 11 : i64} {
  func.func @_lstm_fc_kernel(%arg0: i32, %arg1: i32, %arg2: memref<8x16x128xbf16, #tpu.memory_space<vmem>>, %arg3: memref<128x512xbf16, #tpu.memory_space<vmem>>, %arg4: memref<128x512xbf16, #tpu.memory_space<vmem>>, %arg5: memref<1x512xf32, #tpu.memory_space<vmem>>, %arg6: memref<128x128xbf16, #tpu.memory_space<vmem>>, %arg7: memref<1x128xf32, #tpu.memory_space<vmem>>, %arg8: memref<16x128xf32, #tpu.memory_space<vmem>>, %arg9: memref<16x128xf32, #tpu.memory_space<vmem>>, %arg10: memref<16x128xf32, #tpu.memory_space<vmem>>, %arg11: memref<8x16x512xbf16, #tpu.memory_space<vmem>>) attributes {dimension_semantics = [#tpu.dimension_semantics<parallel>, #tpu.dimension_semantics<arbitrary>], iteration_bounds = array<i64: 1, 1>, scalar_prefetch = 0 : i64, scratch_operands = 3 : i64, tpu.core_type = #tpu.core_type<tc>, window_params = [{transform_indices = @transform_0, window_bounds = array<i64: 8, 16, 128>}, {pipeline_mode = #tpu.pipeline_mode<synchronous>, transform_indices = @transform_1, window_bounds = array<i64: 128, 512>}, {pipeline_mode = #tpu.pipeline_mode<synchronous>, transform_indices = @transform_2, window_bounds = array<i64: 128, 512>}, {pipeline_mode = #tpu.pipeline_mode<synchronous>, transform_indices = @transform_3, window_bounds = array<i64: 1, 512>}, {pipeline_mode = #tpu.pipeline_mode<synchronous>, transform_indices = @transform_4, window_bounds = array<i64: 128, 128>}, {pipeline_mode = #tpu.pipeline_mode<synchronous>, transform_indices = @transform_5, window_bounds = array<i64: 1, 128>}, {transform_indices = @transform_6, window_bounds = array<i64: 16, 128>}]} {
    %c0_i32 = arith.constant 0 : i32
    %0 = arith.cmpi eq, %arg1, %c0_i32 : i32
    %1 = arith.extui %0 : i1 to i32
    %c0_i32_0 = arith.constant 0 : i32
    %2 = arith.cmpi ne, %1, %c0_i32_0 : i32
    scf.if %2 {
      %cst_85 = arith.constant 0.000000e+00 : f32
      %292 = vector.broadcast %cst_85 : f32 to vector<16x128xf32>
      %c0_86 = arith.constant 0 : index
      %c0_87 = arith.constant 0 : index
      %293 = vector.load %arg9[%c0_86, %c0_87] : memref<16x128xf32, #tpu.memory_space<vmem>>, vector<16x128xf32>
      tpu.vector_store %arg9[%c0_86, %c0_87], %292 {strides = array<i32>} : memref<16x128xf32, #tpu.memory_space<vmem>>, vector<16x128xf32>,
      %cst_88 = arith.constant 0.000000e+00 : f32
      %294 = vector.broadcast %cst_88 : f32 to vector<16x128xf32>
      %c0_89 = arith.constant 0 : index
      %c0_90 = arith.constant 0 : index
      %295 = vector.load %arg10[%c0_89, %c0_90] : memref<16x128xf32, #tpu.memory_space<vmem>>, vector<16x128xf32>
      tpu.vector_store %arg10[%c0_89, %c0_90], %294 {strides = array<i32>} : memref<16x128xf32, #tpu.memory_space<vmem>>, vector<16x128xf32>,
    } else {
    }
    %c0 = arith.constant 0 : index
    %c0_1 = arith.constant 0 : index
    %c0_2 = arith.constant 0 : index
    %3 = vector.load %arg2[%c0, %c0_1, %c0_2] : memref<8x16x128xbf16, #tpu.memory_space<vmem>>, vector<8x16x128xbf16>
    %4 = vector.shape_cast %3 : vector<8x16x128xbf16> to vector<128x128xbf16>
    %c0_3 = arith.constant 0 : index
    %c0_4 = arith.constant 0 : index
    %5 = vector.load %arg3[%c0_3, %c0_4] : memref<128x512xbf16, #tpu.memory_space<vmem>>, vector<128x512xbf16>
    %cst = arith.constant dense<0.000000e+00> : vector<128x512xf32>
    %6 = tpu.matmul %4, %5, %cst {dimension_numbers = #tpu.dot_dimension_numbers<[1], [0], [0], [1], [0, 0, 1, 1], [], []>} : vector<128x128xbf16>, vector<128x512xbf16>, vector<128x512xf32> -> vector<128x512xf32>
    %7 = vector.shape_cast %6 : vector<128x512xf32> to vector<8x16x512xf32>
    %8 = arith.truncf %7 : vector<8x16x512xf32> to vector<8x16x512xbf16>
    %c0_5 = arith.constant 0 : index
    %c0_6 = arith.constant 0 : index
    %c0_7 = arith.constant 0 : index
    %9 = vector.load %arg11[%c0_5, %c0_6, %c0_7] : memref<8x16x512xbf16, #tpu.memory_space<vmem>>, vector<8x16x512xbf16>
    tpu.vector_store %arg11[%c0_5, %c0_6, %c0_7], %8 {strides = array<i32>} : memref<8x16x512xbf16, #tpu.memory_space<vmem>>, vector<8x16x512xbf16>,
    %c0_8 = arith.constant 0 : index
    %c0_9 = arith.constant 0 : index
    %10 = vector.load %arg5[%c0_8, %c0_9] : memref<1x512xf32, #tpu.memory_space<vmem>>, vector<1x512xf32>
    %11 = vector.shape_cast %10 : vector<1x512xf32> to vector<1x512xf32>
    %12 = vector.broadcast %11 : vector<1x512xf32> to vector<16x512xf32>
    %c0_10 = arith.constant 0 : index
    %c0_11 = arith.constant 0 : index
    %13 = vector.load %arg9[%c0_10, %c0_11] : memref<16x128xf32, #tpu.memory_space<vmem>>, vector<16x128xf32>
    %c0_12 = arith.constant 0 : index
    %c0_13 = arith.constant 0 : index
    %14 = vector.load %arg10[%c0_12, %c0_13] : memref<16x128xf32, #tpu.memory_space<vmem>>, vector<16x128xf32>
    %c0_i32_14 = arith.constant 0 : i32
    %15 = arith.truncf %13 : vector<16x128xf32> to vector<16x128xbf16>
    %16 = arith.index_cast %c0_i32_14 : i32 to index
    %c0_15 = arith.constant 0 : index
    %c0_16 = arith.constant 0 : index
    %17 = vector.load %arg11[%16, %c0_15, %c0_16] : memref<8x16x512xbf16, #tpu.memory_space<vmem>>, vector<1x16x512xbf16>
    %18 = vector.shape_cast %17 : vector<1x16x512xbf16> to vector<16x512xbf16>
    %19 = arith.extf %18 : vector<16x512xbf16> to vector<16x512xf32>
    %c0_17 = arith.constant 0 : index
    %c0_18 = arith.constant 0 : index
    %20 = vector.load %arg4[%c0_17, %c0_18] : memref<128x512xbf16, #tpu.memory_space<vmem>>, vector<128x512xbf16>
    %cst_19 = arith.constant dense<0.000000e+00> : vector<16x512xf32>
    %21 = tpu.matmul %15, %20, %cst_19 {dimension_numbers = #tpu.dot_dimension_numbers<[1], [0], [0], [1], [0, 0, 1, 1], [], []>} : vector<16x128xbf16>, vector<128x512xbf16>, vector<16x512xf32> -> vector<16x512xf32>
    %22 = arith.addf %19, %21 : vector<16x512xf32>
    %23 = arith.addf %22, %12 : vector<16x512xf32>
    %24 = vector.extract_strided_slice %23 {offsets = [0, 0], sizes = [16, 128], strides = [1, 1]} : vector<16x512xf32> to vector<16x128xf32>
    %25 = arith.negf %24 : vector<16x128xf32>
    %26 = math.exp %25 : vector<16x128xf32>
    %cst_20 = arith.constant 1.000000e+00 : f32
    %27 = vector.broadcast %cst_20 : f32 to vector<16x128xf32>
    %28 = arith.addf %27, %26 : vector<16x128xf32>
    %29 = arith.divf %27, %28 : vector<16x128xf32>
    %30 = vector.extract_strided_slice %23 {offsets = [0, 128], sizes = [16, 128], strides = [1, 1]} : vector<16x512xf32> to vector<16x128xf32>
    %31 = arith.negf %30 : vector<16x128xf32>
    %32 = math.exp %31 : vector<16x128xf32>
    %cst_21 = arith.constant 1.000000e+00 : f32
    %33 = vector.broadcast %cst_21 : f32 to vector<16x128xf32>
    %34 = arith.addf %33, %32 : vector<16x128xf32>
    %35 = arith.divf %33, %34 : vector<16x128xf32>
    %36 = vector.extract_strided_slice %23 {offsets = [0, 256], sizes = [16, 128], strides = [1, 1]} : vector<16x512xf32> to vector<16x128xf32>
    %37 = math.tanh %36 : vector<16x128xf32>
    %38 = arith.mulf %35, %14 : vector<16x128xf32>
    %39 = arith.mulf %29, %37 : vector<16x128xf32>
    %40 = arith.addf %38, %39 : vector<16x128xf32>
    %41 = vector.extract_strided_slice %23 {offsets = [0, 384], sizes = [16, 128], strides = [1, 1]} : vector<16x512xf32> to vector<16x128xf32>
    %42 = arith.negf %41 : vector<16x128xf32>
    %43 = math.exp %42 : vector<16x128xf32>
    %cst_22 = arith.constant 1.000000e+00 : f32
    %44 = vector.broadcast %cst_22 : f32 to vector<16x128xf32>
    %45 = arith.addf %44, %43 : vector<16x128xf32>
    %46 = arith.divf %44, %45 : vector<16x128xf32>
    %47 = math.tanh %40 : vector<16x128xf32>
    %48 = arith.mulf %46, %47 : vector<16x128xf32>
    %c1_i32 = arith.constant 1 : i32
    %49 = arith.truncf %48 : vector<16x128xf32> to vector<16x128xbf16>
    %50 = arith.index_cast %c1_i32 : i32 to index
    %c0_23 = arith.constant 0 : index
    %c0_24 = arith.constant 0 : index
    %51 = vector.load %arg11[%50, %c0_23, %c0_24] : memref<8x16x512xbf16, #tpu.memory_space<vmem>>, vector<1x16x512xbf16>
    %52 = vector.shape_cast %51 : vector<1x16x512xbf16> to vector<16x512xbf16>
    %53 = arith.extf %52 : vector<16x512xbf16> to vector<16x512xf32>
    %c0_25 = arith.constant 0 : index
    %c0_26 = arith.constant 0 : index
    %54 = vector.load %arg4[%c0_25, %c0_26] : memref<128x512xbf16, #tpu.memory_space<vmem>>, vector<128x512xbf16>
    %cst_27 = arith.constant dense<0.000000e+00> : vector<16x512xf32>
    %55 = tpu.matmul %49, %54, %cst_27 {dimension_numbers = #tpu.dot_dimension_numbers<[1], [0], [0], [1], [0, 0, 1, 1], [], []>} : vector<16x128xbf16>, vector<128x512xbf16>, vector<16x512xf32> -> vector<16x512xf32>
    %56 = arith.addf %53, %55 : vector<16x512xf32>
    %57 = arith.addf %56, %12 : vector<16x512xf32>
    %58 = vector.extract_strided_slice %57 {offsets = [0, 0], sizes = [16, 128], strides = [1, 1]} : vector<16x512xf32> to vector<16x128xf32>
    %59 = arith.negf %58 : vector<16x128xf32>
    %60 = math.exp %59 : vector<16x128xf32>
    %cst_28 = arith.constant 1.000000e+00 : f32
    %61 = vector.broadcast %cst_28 : f32 to vector<16x128xf32>
    %62 = arith.addf %61, %60 : vector<16x128xf32>
    %63 = arith.divf %61, %62 : vector<16x128xf32>
    %64 = vector.extract_strided_slice %57 {offsets = [0, 128], sizes = [16, 128], strides = [1, 1]} : vector<16x512xf32> to vector<16x128xf32>
    %65 = arith.negf %64 : vector<16x128xf32>
    %66 = math.exp %65 : vector<16x128xf32>
    %cst_29 = arith.constant 1.000000e+00 : f32
    %67 = vector.broadcast %cst_29 : f32 to vector<16x128xf32>
    %68 = arith.addf %67, %66 : vector<16x128xf32>
    %69 = arith.divf %67, %68 : vector<16x128xf32>
    %70 = vector.extract_strided_slice %57 {offsets = [0, 256], sizes = [16, 128], strides = [1, 1]} : vector<16x512xf32> to vector<16x128xf32>
    %71 = math.tanh %70 : vector<16x128xf32>
    %72 = arith.mulf %69, %40 : vector<16x128xf32>
    %73 = arith.mulf %63, %71 : vector<16x128xf32>
    %74 = arith.addf %72, %73 : vector<16x128xf32>
    %75 = vector.extract_strided_slice %57 {offsets = [0, 384], sizes = [16, 128], strides = [1, 1]} : vector<16x512xf32> to vector<16x128xf32>
    %76 = arith.negf %75 : vector<16x128xf32>
    %77 = math.exp %76 : vector<16x128xf32>
    %cst_30 = arith.constant 1.000000e+00 : f32
    %78 = vector.broadcast %cst_30 : f32 to vector<16x128xf32>
    %79 = arith.addf %78, %77 : vector<16x128xf32>
    %80 = arith.divf %78, %79 : vector<16x128xf32>
    %81 = math.tanh %74 : vector<16x128xf32>
    %82 = arith.mulf %80, %81 : vector<16x128xf32>
    %c2_i32 = arith.constant 2 : i32
    %83 = arith.truncf %82 : vector<16x128xf32> to vector<16x128xbf16>
    %84 = arith.index_cast %c2_i32 : i32 to index
    %c0_31 = arith.constant 0 : index
    %c0_32 = arith.constant 0 : index
    %85 = vector.load %arg11[%84, %c0_31, %c0_32] : memref<8x16x512xbf16, #tpu.memory_space<vmem>>, vector<1x16x512xbf16>
    %86 = vector.shape_cast %85 : vector<1x16x512xbf16> to vector<16x512xbf16>
    %87 = arith.extf %86 : vector<16x512xbf16> to vector<16x512xf32>
    %c0_33 = arith.constant 0 : index
    %c0_34 = arith.constant 0 : index
    %88 = vector.load %arg4[%c0_33, %c0_34] : memref<128x512xbf16, #tpu.memory_space<vmem>>, vector<128x512xbf16>
    %cst_35 = arith.constant dense<0.000000e+00> : vector<16x512xf32>
    %89 = tpu.matmul %83, %88, %cst_35 {dimension_numbers = #tpu.dot_dimension_numbers<[1], [0], [0], [1], [0, 0, 1, 1], [], []>} : vector<16x128xbf16>, vector<128x512xbf16>, vector<16x512xf32> -> vector<16x512xf32>
    %90 = arith.addf %87, %89 : vector<16x512xf32>
    %91 = arith.addf %90, %12 : vector<16x512xf32>
    %92 = vector.extract_strided_slice %91 {offsets = [0, 0], sizes = [16, 128], strides = [1, 1]} : vector<16x512xf32> to vector<16x128xf32>
    %93 = arith.negf %92 : vector<16x128xf32>
    %94 = math.exp %93 : vector<16x128xf32>
    %cst_36 = arith.constant 1.000000e+00 : f32
    %95 = vector.broadcast %cst_36 : f32 to vector<16x128xf32>
    %96 = arith.addf %95, %94 : vector<16x128xf32>
    %97 = arith.divf %95, %96 : vector<16x128xf32>
    %98 = vector.extract_strided_slice %91 {offsets = [0, 128], sizes = [16, 128], strides = [1, 1]} : vector<16x512xf32> to vector<16x128xf32>
    %99 = arith.negf %98 : vector<16x128xf32>
    %100 = math.exp %99 : vector<16x128xf32>
    %cst_37 = arith.constant 1.000000e+00 : f32
    %101 = vector.broadcast %cst_37 : f32 to vector<16x128xf32>
    %102 = arith.addf %101, %100 : vector<16x128xf32>
    %103 = arith.divf %101, %102 : vector<16x128xf32>
    %104 = vector.extract_strided_slice %91 {offsets = [0, 256], sizes = [16, 128], strides = [1, 1]} : vector<16x512xf32> to vector<16x128xf32>
    %105 = math.tanh %104 : vector<16x128xf32>
    %106 = arith.mulf %103, %74 : vector<16x128xf32>
    %107 = arith.mulf %97, %105 : vector<16x128xf32>
    %108 = arith.addf %106, %107 : vector<16x128xf32>
    %109 = vector.extract_strided_slice %91 {offsets = [0, 384], sizes = [16, 128], strides = [1, 1]} : vector<16x512xf32> to vector<16x128xf32>
    %110 = arith.negf %109 : vector<16x128xf32>
    %111 = math.exp %110 : vector<16x128xf32>
    %cst_38 = arith.constant 1.000000e+00 : f32
    %112 = vector.broadcast %cst_38 : f32 to vector<16x128xf32>
    %113 = arith.addf %112, %111 : vector<16x128xf32>
    %114 = arith.divf %112, %113 : vector<16x128xf32>
    %115 = math.tanh %108 : vector<16x128xf32>
    %116 = arith.mulf %114, %115 : vector<16x128xf32>
    %c3_i32 = arith.constant 3 : i32
    %117 = arith.truncf %116 : vector<16x128xf32> to vector<16x128xbf16>
    %118 = arith.index_cast %c3_i32 : i32 to index
    %c0_39 = arith.constant 0 : index
    %c0_40 = arith.constant 0 : index
    %119 = vector.load %arg11[%118, %c0_39, %c0_40] : memref<8x16x512xbf16, #tpu.memory_space<vmem>>, vector<1x16x512xbf16>
    %120 = vector.shape_cast %119 : vector<1x16x512xbf16> to vector<16x512xbf16>
    %121 = arith.extf %120 : vector<16x512xbf16> to vector<16x512xf32>
    %c0_41 = arith.constant 0 : index
    %c0_42 = arith.constant 0 : index
    %122 = vector.load %arg4[%c0_41, %c0_42] : memref<128x512xbf16, #tpu.memory_space<vmem>>, vector<128x512xbf16>
    %cst_43 = arith.constant dense<0.000000e+00> : vector<16x512xf32>
    %123 = tpu.matmul %117, %122, %cst_43 {dimension_numbers = #tpu.dot_dimension_numbers<[1], [0], [0], [1], [0, 0, 1, 1], [], []>} : vector<16x128xbf16>, vector<128x512xbf16>, vector<16x512xf32> -> vector<16x512xf32>
    %124 = arith.addf %121, %123 : vector<16x512xf32>
    %125 = arith.addf %124, %12 : vector<16x512xf32>
    %126 = vector.extract_strided_slice %125 {offsets = [0, 0], sizes = [16, 128], strides = [1, 1]} : vector<16x512xf32> to vector<16x128xf32>
    %127 = arith.negf %126 : vector<16x128xf32>
    %128 = math.exp %127 : vector<16x128xf32>
    %cst_44 = arith.constant 1.000000e+00 : f32
    %129 = vector.broadcast %cst_44 : f32 to vector<16x128xf32>
    %130 = arith.addf %129, %128 : vector<16x128xf32>
    %131 = arith.divf %129, %130 : vector<16x128xf32>
    %132 = vector.extract_strided_slice %125 {offsets = [0, 128], sizes = [16, 128], strides = [1, 1]} : vector<16x512xf32> to vector<16x128xf32>
    %133 = arith.negf %132 : vector<16x128xf32>
    %134 = math.exp %133 : vector<16x128xf32>
    %cst_45 = arith.constant 1.000000e+00 : f32
    %135 = vector.broadcast %cst_45 : f32 to vector<16x128xf32>
    %136 = arith.addf %135, %134 : vector<16x128xf32>
    %137 = arith.divf %135, %136 : vector<16x128xf32>
    %138 = vector.extract_strided_slice %125 {offsets = [0, 256], sizes = [16, 128], strides = [1, 1]} : vector<16x512xf32> to vector<16x128xf32>
    %139 = math.tanh %138 : vector<16x128xf32>
    %140 = arith.mulf %137, %108 : vector<16x128xf32>
    %141 = arith.mulf %131, %139 : vector<16x128xf32>
    %142 = arith.addf %140, %141 : vector<16x128xf32>
    %143 = vector.extract_strided_slice %125 {offsets = [0, 384], sizes = [16, 128], strides = [1, 1]} : vector<16x512xf32> to vector<16x128xf32>
    %144 = arith.negf %143 : vector<16x128xf32>
    %145 = math.exp %144 : vector<16x128xf32>
    %cst_46 = arith.constant 1.000000e+00 : f32
    %146 = vector.broadcast %cst_46 : f32 to vector<16x128xf32>
    %147 = arith.addf %146, %145 : vector<16x128xf32>
    %148 = arith.divf %146, %147 : vector<16x128xf32>
    %149 = math.tanh %142 : vector<16x128xf32>
    %150 = arith.mulf %148, %149 : vector<16x128xf32>
    %c4_i32 = arith.constant 4 : i32
    %151 = arith.truncf %150 : vector<16x128xf32> to vector<16x128xbf16>
    %152 = arith.index_cast %c4_i32 : i32 to index
    %c0_47 = arith.constant 0 : index
    %c0_48 = arith.constant 0 : index
    %153 = vector.load %arg11[%152, %c0_47, %c0_48] : memref<8x16x512xbf16, #tpu.memory_space<vmem>>, vector<1x16x512xbf16>
    %154 = vector.shape_cast %153 : vector<1x16x512xbf16> to vector<16x512xbf16>
    %155 = arith.extf %154 : vector<16x512xbf16> to vector<16x512xf32>
    %c0_49 = arith.constant 0 : index
    %c0_50 = arith.constant 0 : index
    %156 = vector.load %arg4[%c0_49, %c0_50] : memref<128x512xbf16, #tpu.memory_space<vmem>>, vector<128x512xbf16>
    %cst_51 = arith.constant dense<0.000000e+00> : vector<16x512xf32>
    %157 = tpu.matmul %151, %156, %cst_51 {dimension_numbers = #tpu.dot_dimension_numbers<[1], [0], [0], [1], [0, 0, 1, 1], [], []>} : vector<16x128xbf16>, vector<128x512xbf16>, vector<16x512xf32> -> vector<16x512xf32>
    %158 = arith.addf %155, %157 : vector<16x512xf32>
    %159 = arith.addf %158, %12 : vector<16x512xf32>
    %160 = vector.extract_strided_slice %159 {offsets = [0, 0], sizes = [16, 128], strides = [1, 1]} : vector<16x512xf32> to vector<16x128xf32>
    %161 = arith.negf %160 : vector<16x128xf32>
    %162 = math.exp %161 : vector<16x128xf32>
    %cst_52 = arith.constant 1.000000e+00 : f32
    %163 = vector.broadcast %cst_52 : f32 to vector<16x128xf32>
    %164 = arith.addf %163, %162 : vector<16x128xf32>
    %165 = arith.divf %163, %164 : vector<16x128xf32>
    %166 = vector.extract_strided_slice %159 {offsets = [0, 128], sizes = [16, 128], strides = [1, 1]} : vector<16x512xf32> to vector<16x128xf32>
    %167 = arith.negf %166 : vector<16x128xf32>
    %168 = math.exp %167 : vector<16x128xf32>
    %cst_53 = arith.constant 1.000000e+00 : f32
    %169 = vector.broadcast %cst_53 : f32 to vector<16x128xf32>
    %170 = arith.addf %169, %168 : vector<16x128xf32>
    %171 = arith.divf %169, %170 : vector<16x128xf32>
    %172 = vector.extract_strided_slice %159 {offsets = [0, 256], sizes = [16, 128], strides = [1, 1]} : vector<16x512xf32> to vector<16x128xf32>
    %173 = math.tanh %172 : vector<16x128xf32>
    %174 = arith.mulf %171, %142 : vector<16x128xf32>
    %175 = arith.mulf %165, %173 : vector<16x128xf32>
    %176 = arith.addf %174, %175 : vector<16x128xf32>
    %177 = vector.extract_strided_slice %159 {offsets = [0, 384], sizes = [16, 128], strides = [1, 1]} : vector<16x512xf32> to vector<16x128xf32>
    %178 = arith.negf %177 : vector<16x128xf32>
    %179 = math.exp %178 : vector<16x128xf32>
    %cst_54 = arith.constant 1.000000e+00 : f32
    %180 = vector.broadcast %cst_54 : f32 to vector<16x128xf32>
    %181 = arith.addf %180, %179 : vector<16x128xf32>
    %182 = arith.divf %180, %181 : vector<16x128xf32>
    %183 = math.tanh %176 : vector<16x128xf32>
    %184 = arith.mulf %182, %183 : vector<16x128xf32>
    %c5_i32 = arith.constant 5 : i32
    %185 = arith.truncf %184 : vector<16x128xf32> to vector<16x128xbf16>
    %186 = arith.index_cast %c5_i32 : i32 to index
    %c0_55 = arith.constant 0 : index
    %c0_56 = arith.constant 0 : index
    %187 = vector.load %arg11[%186, %c0_55, %c0_56] : memref<8x16x512xbf16, #tpu.memory_space<vmem>>, vector<1x16x512xbf16>
    %188 = vector.shape_cast %187 : vector<1x16x512xbf16> to vector<16x512xbf16>
    %189 = arith.extf %188 : vector<16x512xbf16> to vector<16x512xf32>
    %c0_57 = arith.constant 0 : index
    %c0_58 = arith.constant 0 : index
    %190 = vector.load %arg4[%c0_57, %c0_58] : memref<128x512xbf16, #tpu.memory_space<vmem>>, vector<128x512xbf16>
    %cst_59 = arith.constant dense<0.000000e+00> : vector<16x512xf32>
    %191 = tpu.matmul %185, %190, %cst_59 {dimension_numbers = #tpu.dot_dimension_numbers<[1], [0], [0], [1], [0, 0, 1, 1], [], []>} : vector<16x128xbf16>, vector<128x512xbf16>, vector<16x512xf32> -> vector<16x512xf32>
    %192 = arith.addf %189, %191 : vector<16x512xf32>
    %193 = arith.addf %192, %12 : vector<16x512xf32>
    %194 = vector.extract_strided_slice %193 {offsets = [0, 0], sizes = [16, 128], strides = [1, 1]} : vector<16x512xf32> to vector<16x128xf32>
    %195 = arith.negf %194 : vector<16x128xf32>
    %196 = math.exp %195 : vector<16x128xf32>
    %cst_60 = arith.constant 1.000000e+00 : f32
    %197 = vector.broadcast %cst_60 : f32 to vector<16x128xf32>
    %198 = arith.addf %197, %196 : vector<16x128xf32>
    %199 = arith.divf %197, %198 : vector<16x128xf32>
    %200 = vector.extract_strided_slice %193 {offsets = [0, 128], sizes = [16, 128], strides = [1, 1]} : vector<16x512xf32> to vector<16x128xf32>
    %201 = arith.negf %200 : vector<16x128xf32>
    %202 = math.exp %201 : vector<16x128xf32>
    %cst_61 = arith.constant 1.000000e+00 : f32
    %203 = vector.broadcast %cst_61 : f32 to vector<16x128xf32>
    %204 = arith.addf %203, %202 : vector<16x128xf32>
    %205 = arith.divf %203, %204 : vector<16x128xf32>
    %206 = vector.extract_strided_slice %193 {offsets = [0, 256], sizes = [16, 128], strides = [1, 1]} : vector<16x512xf32> to vector<16x128xf32>
    %207 = math.tanh %206 : vector<16x128xf32>
    %208 = arith.mulf %205, %176 : vector<16x128xf32>
    %209 = arith.mulf %199, %207 : vector<16x128xf32>
    %210 = arith.addf %208, %209 : vector<16x128xf32>
    %211 = vector.extract_strided_slice %193 {offsets = [0, 384], sizes = [16, 128], strides = [1, 1]} : vector<16x512xf32> to vector<16x128xf32>
    %212 = arith.negf %211 : vector<16x128xf32>
    %213 = math.exp %212 : vector<16x128xf32>
    %cst_62 = arith.constant 1.000000e+00 : f32
    %214 = vector.broadcast %cst_62 : f32 to vector<16x128xf32>
    %215 = arith.addf %214, %213 : vector<16x128xf32>
    %216 = arith.divf %214, %215 : vector<16x128xf32>
    %217 = math.tanh %210 : vector<16x128xf32>
    %218 = arith.mulf %216, %217 : vector<16x128xf32>
    %c6_i32 = arith.constant 6 : i32
    %219 = arith.truncf %218 : vector<16x128xf32> to vector<16x128xbf16>
    %220 = arith.index_cast %c6_i32 : i32 to index
    %c0_63 = arith.constant 0 : index
    %c0_64 = arith.constant 0 : index
    %221 = vector.load %arg11[%220, %c0_63, %c0_64] : memref<8x16x512xbf16, #tpu.memory_space<vmem>>, vector<1x16x512xbf16>
    %222 = vector.shape_cast %221 : vector<1x16x512xbf16> to vector<16x512xbf16>
    %223 = arith.extf %222 : vector<16x512xbf16> to vector<16x512xf32>
    %c0_65 = arith.constant 0 : index
    %c0_66 = arith.constant 0 : index
    %224 = vector.load %arg4[%c0_65, %c0_66] : memref<128x512xbf16, #tpu.memory_space<vmem>>, vector<128x512xbf16>
    %cst_67 = arith.constant dense<0.000000e+00> : vector<16x512xf32>
    %225 = tpu.matmul %219, %224, %cst_67 {dimension_numbers = #tpu.dot_dimension_numbers<[1], [0], [0], [1], [0, 0, 1, 1], [], []>} : vector<16x128xbf16>, vector<128x512xbf16>, vector<16x512xf32> -> vector<16x512xf32>
    %226 = arith.addf %223, %225 : vector<16x512xf32>
    %227 = arith.addf %226, %12 : vector<16x512xf32>
    %228 = vector.extract_strided_slice %227 {offsets = [0, 0], sizes = [16, 128], strides = [1, 1]} : vector<16x512xf32> to vector<16x128xf32>
    %229 = arith.negf %228 : vector<16x128xf32>
    %230 = math.exp %229 : vector<16x128xf32>
    %cst_68 = arith.constant 1.000000e+00 : f32
    %231 = vector.broadcast %cst_68 : f32 to vector<16x128xf32>
    %232 = arith.addf %231, %230 : vector<16x128xf32>
    %233 = arith.divf %231, %232 : vector<16x128xf32>
    %234 = vector.extract_strided_slice %227 {offsets = [0, 128], sizes = [16, 128], strides = [1, 1]} : vector<16x512xf32> to vector<16x128xf32>
    %235 = arith.negf %234 : vector<16x128xf32>
    %236 = math.exp %235 : vector<16x128xf32>
    %cst_69 = arith.constant 1.000000e+00 : f32
    %237 = vector.broadcast %cst_69 : f32 to vector<16x128xf32>
    %238 = arith.addf %237, %236 : vector<16x128xf32>
    %239 = arith.divf %237, %238 : vector<16x128xf32>
    %240 = vector.extract_strided_slice %227 {offsets = [0, 256], sizes = [16, 128], strides = [1, 1]} : vector<16x512xf32> to vector<16x128xf32>
    %241 = math.tanh %240 : vector<16x128xf32>
    %242 = arith.mulf %239, %210 : vector<16x128xf32>
    %243 = arith.mulf %233, %241 : vector<16x128xf32>
    %244 = arith.addf %242, %243 : vector<16x128xf32>
    %245 = vector.extract_strided_slice %227 {offsets = [0, 384], sizes = [16, 128], strides = [1, 1]} : vector<16x512xf32> to vector<16x128xf32>
    %246 = arith.negf %245 : vector<16x128xf32>
    %247 = math.exp %246 : vector<16x128xf32>
    %cst_70 = arith.constant 1.000000e+00 : f32
    %248 = vector.broadcast %cst_70 : f32 to vector<16x128xf32>
    %249 = arith.addf %248, %247 : vector<16x128xf32>
    %250 = arith.divf %248, %249 : vector<16x128xf32>
    %251 = math.tanh %244 : vector<16x128xf32>
    %252 = arith.mulf %250, %251 : vector<16x128xf32>
    %c7_i32 = arith.constant 7 : i32
    %253 = arith.truncf %252 : vector<16x128xf32> to vector<16x128xbf16>
    %254 = arith.index_cast %c7_i32 : i32 to index
    %c0_71 = arith.constant 0 : index
    %c0_72 = arith.constant 0 : index
    %255 = vector.load %arg11[%254, %c0_71, %c0_72] : memref<8x16x512xbf16, #tpu.memory_space<vmem>>, vector<1x16x512xbf16>
    %256 = vector.shape_cast %255 : vector<1x16x512xbf16> to vector<16x512xbf16>
    %257 = arith.extf %256 : vector<16x512xbf16> to vector<16x512xf32>
    %c0_73 = arith.constant 0 : index
    %c0_74 = arith.constant 0 : index
    %258 = vector.load %arg4[%c0_73, %c0_74] : memref<128x512xbf16, #tpu.memory_space<vmem>>, vector<128x512xbf16>
    %cst_75 = arith.constant dense<0.000000e+00> : vector<16x512xf32>
    %259 = tpu.matmul %253, %258, %cst_75 {dimension_numbers = #tpu.dot_dimension_numbers<[1], [0], [0], [1], [0, 0, 1, 1], [], []>} : vector<16x128xbf16>, vector<128x512xbf16>, vector<16x512xf32> -> vector<16x512xf32>
    %260 = arith.addf %257, %259 : vector<16x512xf32>
    %261 = arith.addf %260, %12 : vector<16x512xf32>
    %262 = vector.extract_strided_slice %261 {offsets = [0, 0], sizes = [16, 128], strides = [1, 1]} : vector<16x512xf32> to vector<16x128xf32>
    %263 = arith.negf %262 : vector<16x128xf32>
    %264 = math.exp %263 : vector<16x128xf32>
    %cst_76 = arith.constant 1.000000e+00 : f32
    %265 = vector.broadcast %cst_76 : f32 to vector<16x128xf32>
    %266 = arith.addf %265, %264 : vector<16x128xf32>
    %267 = arith.divf %265, %266 : vector<16x128xf32>
    %268 = vector.extract_strided_slice %261 {offsets = [0, 128], sizes = [16, 128], strides = [1, 1]} : vector<16x512xf32> to vector<16x128xf32>
    %269 = arith.negf %268 : vector<16x128xf32>
    %270 = math.exp %269 : vector<16x128xf32>
    %cst_77 = arith.constant 1.000000e+00 : f32
    %271 = vector.broadcast %cst_77 : f32 to vector<16x128xf32>
    %272 = arith.addf %271, %270 : vector<16x128xf32>
    %273 = arith.divf %271, %272 : vector<16x128xf32>
    %274 = vector.extract_strided_slice %261 {offsets = [0, 256], sizes = [16, 128], strides = [1, 1]} : vector<16x512xf32> to vector<16x128xf32>
    %275 = math.tanh %274 : vector<16x128xf32>
    %276 = arith.mulf %273, %244 : vector<16x128xf32>
    %277 = arith.mulf %267, %275 : vector<16x128xf32>
    %278 = arith.addf %276, %277 : vector<16x128xf32>
    %279 = vector.extract_strided_slice %261 {offsets = [0, 384], sizes = [16, 128], strides = [1, 1]} : vector<16x512xf32> to vector<16x128xf32>
    %280 = arith.negf %279 : vector<16x128xf32>
    %281 = math.exp %280 : vector<16x128xf32>
    %cst_78 = arith.constant 1.000000e+00 : f32
    %282 = vector.broadcast %cst_78 : f32 to vector<16x128xf32>
    %283 = arith.addf %282, %281 : vector<16x128xf32>
    %284 = arith.divf %282, %283 : vector<16x128xf32>
    %285 = math.tanh %278 : vector<16x128xf32>
    %286 = arith.mulf %284, %285 : vector<16x128xf32>
    %c8_i32 = arith.constant 8 : i32
    %c0_79 = arith.constant 0 : index
    %c0_80 = arith.constant 0 : index
    %287 = vector.load %arg9[%c0_79, %c0_80] : memref<16x128xf32, #tpu.memory_space<vmem>>, vector<16x128xf32>
    tpu.vector_store %arg9[%c0_79, %c0_80], %286 {strides = array<i32>} : memref<16x128xf32, #tpu.memory_space<vmem>>, vector<16x128xf32>,
    %c0_81 = arith.constant 0 : index
    %c0_82 = arith.constant 0 : index
    %288 = vector.load %arg10[%c0_81, %c0_82] : memref<16x128xf32, #tpu.memory_space<vmem>>, vector<16x128xf32>
    tpu.vector_store %arg10[%c0_81, %c0_82], %278 {strides = array<i32>} : memref<16x128xf32, #tpu.memory_space<vmem>>, vector<16x128xf32>,
    %c0_i32_83 = arith.constant 0 : i32
    %289 = arith.cmpi eq, %arg1, %c0_i32_83 : i32
    %290 = arith.extui %289 : i1 to i32
    %c0_i32_84 = arith.constant 0 : i32
    %291 = arith.cmpi ne, %290, %c0_i32_84 : i32
    scf.if %291 {
      %292 = arith.truncf %286 : vector<16x128xf32> to vector<16x128xbf16>
      %c0_85 = arith.constant 0 : index
      %c0_86 = arith.constant 0 : index
      %293 = vector.load %arg6[%c0_85, %c0_86] : memref<128x128xbf16, #tpu.memory_space<vmem>>, vector<128x128xbf16>
      %cst_87 = arith.constant dense<0.000000e+00> : vector<16x128xf32>
      %294 = tpu.matmul %292, %293, %cst_87 {dimension_numbers = #tpu.dot_dimension_numbers<[1], [0], [0], [1], [0, 0, 1, 1], [], []>} : vector<16x128xbf16>, vector<128x128xbf16>, vector<16x128xf32> -> vector<16x128xf32>
      %c0_88 = arith.constant 0 : index
      %c0_89 = arith.constant 0 : index
      %295 = vector.load %arg7[%c0_88, %c0_89] : memref<1x128xf32, #tpu.memory_space<vmem>>, vector<1x128xf32>
      %296 = vector.broadcast %295 : vector<1x128xf32> to vector<16x128xf32>
      %297 = arith.addf %294, %296 : vector<16x128xf32>
      %cst_90 = arith.constant dense<0xFF800000> : vector<16xf32>
      %298 = vector.multi_reduction <maximumf>, %297, %cst_90 [1] : vector<16x128xf32> to vector<16xf32>
      %299 = vector.shape_cast %298 : vector<16xf32> to vector<16x1xf32>
      %300 = vector.broadcast %299 : vector<16x1xf32> to vector<16x128xf32>
      %301 = arith.subf %297, %300 : vector<16x128xf32>
      %302 = math.exp %301 : vector<16x128xf32>
      %cst_91 = arith.constant dense<0.000000e+00> : vector<16xf32>
      %303 = vector.multi_reduction <add>, %302, %cst_91 [1] : vector<16x128xf32> to vector<16xf32>
      %304 = vector.shape_cast %303 : vector<16xf32> to vector<16x1xf32>
      %305 = math.log %304 : vector<16x1xf32>
      %306 = vector.broadcast %305 : vector<16x1xf32> to vector<16x128xf32>
      %307 = arith.subf %301, %306 : vector<16x128xf32>
      %c0_92 = arith.constant 0 : index
      %c0_93 = arith.constant 0 : index
      %308 = vector.load %arg8[%c0_92, %c0_93] : memref<16x128xf32, #tpu.memory_space<vmem>>, vector<16x128xf32>
      tpu.vector_store %arg8[%c0_92, %c0_93], %307 {strides = array<i32>} : memref<16x128xf32, #tpu.memory_space<vmem>>, vector<16x128xf32>,
    } else {
    }
    return
  }
  func.func @transform_0(%arg0: i32, %arg1: i32) -> (i32, i32, i32) {
    %c0_i32 = arith.constant 0 : i32
    %c0_i32_0 = arith.constant 0 : i32
    return %arg1, %arg0, %c0_i32 : i32, i32, i32
  }
  func.func @transform_1(%arg0: i32, %arg1: i32) -> (i32, i32) {
    %c0_i32 = arith.constant 0 : i32
    %c0_i32_0 = arith.constant 0 : i32
    %c0_i32_1 = arith.constant 0 : i32
    return %c0_i32, %c0_i32_0 : i32, i32
  }
  func.func @transform_2(%arg0: i32, %arg1: i32) -> (i32, i32) {
    %c0_i32 = arith.constant 0 : i32
    %c0_i32_0 = arith.constant 0 : i32
    %c0_i32_1 = arith.constant 0 : i32
    return %c0_i32, %c0_i32_0 : i32, i32
  }
  func.func @transform_3(%arg0: i32, %arg1: i32) -> (i32, i32) {
    %c0_i32 = arith.constant 0 : i32
    %c0_i32_0 = arith.constant 0 : i32
    %c0_i32_1 = arith.constant 0 : i32
    return %c0_i32, %c0_i32_0 : i32, i32
  }
  func.func @transform_4(%arg0: i32, %arg1: i32) -> (i32, i32) {
    %c0_i32 = arith.constant 0 : i32
    %c0_i32_0 = arith.constant 0 : i32
    %c0_i32_1 = arith.constant 0 : i32
    return %c0_i32, %c0_i32_0 : i32, i32
  }
  func.func @transform_5(%arg0: i32, %arg1: i32) -> (i32, i32) {
    %c0_i32 = arith.constant 0 : i32
    %c0_i32_0 = arith.constant 0 : i32
    %c0_i32_1 = arith.constant 0 : i32
    return %c0_i32, %c0_i32_0 : i32, i32
  }
  func.func @transform_6(%arg0: i32, %arg1: i32) -> (i32, i32) {
    %c0_i32 = arith.constant 0 : i32
    %c0_i32_0 = arith.constant 0 : i32
    return %arg0, %c0_i32 : i32, i32
  }
}

module attributes {stable_mosaic.version = 11 : i64} {
  func.func @_lstm_fc_kernel(%arg0: i32, %arg1: i32, %arg2: memref<8x16x128xbf16, #tpu.memory_space<vmem>>, %arg3: memref<128x512xbf16, #tpu.memory_space<vmem>>, %arg4: memref<128x512xbf16, #tpu.memory_space<vmem>>, %arg5: memref<1x512xf32, #tpu.memory_space<vmem>>, %arg6: memref<128x128xbf16, #tpu.memory_space<vmem>>, %arg7: memref<1x128xf32, #tpu.memory_space<vmem>>, %arg8: memref<16x128xf32, #tpu.memory_space<vmem>>, %arg9: memref<16x128xf32, #tpu.memory_space<vmem>>, %arg10: memref<16x128xf32, #tpu.memory_space<vmem>>, %arg11: memref<8x16x512xbf16, #tpu.memory_space<vmem>>) attributes {dimension_semantics = [#tpu.dimension_semantics<parallel>, #tpu.dimension_semantics<arbitrary>], iteration_bounds = array<i64: 1, 1>, scalar_prefetch = 0 : i64, scratch_operands = 3 : i64, tpu.core_type = #tpu.core_type<tc>, window_params = [{transform_indices = @transform_0, window_bounds = array<i64: 8, 16, 128>}, {pipeline_mode = #tpu.pipeline_mode<synchronous>, transform_indices = @transform_1, window_bounds = array<i64: 128, 512>}, {pipeline_mode = #tpu.pipeline_mode<synchronous>, transform_indices = @transform_2, window_bounds = array<i64: 128, 512>}, {pipeline_mode = #tpu.pipeline_mode<synchronous>, transform_indices = @transform_3, window_bounds = array<i64: 1, 512>}, {pipeline_mode = #tpu.pipeline_mode<synchronous>, transform_indices = @transform_4, window_bounds = array<i64: 128, 128>}, {pipeline_mode = #tpu.pipeline_mode<synchronous>, transform_indices = @transform_5, window_bounds = array<i64: 1, 128>}, {transform_indices = @transform_6, window_bounds = array<i64: 16, 128>}]} {
    %c0_i32 = arith.constant 0 : i32
    %0 = arith.cmpi eq, %arg1, %c0_i32 : i32
    %1 = arith.extui %0 : i1 to i32
    %c0_i32_0 = arith.constant 0 : i32
    %2 = arith.cmpi ne, %1, %c0_i32_0 : i32
    scf.if %2 {
      %cst_85 = arith.constant 0.000000e+00 : f32
      %292 = vector.broadcast %cst_85 : f32 to vector<16x128xf32>
      %c0_86 = arith.constant 0 : index
      %c0_87 = arith.constant 0 : index
      %293 = vector.load %arg9[%c0_86, %c0_87] : memref<16x128xf32, #tpu.memory_space<vmem>>, vector<16x128xf32>
      tpu.vector_store %arg9[%c0_86, %c0_87], %292 {strides = array<i32>} : memref<16x128xf32, #tpu.memory_space<vmem>>, vector<16x128xf32>,
      %cst_88 = arith.constant 0.000000e+00 : f32
      %294 = vector.broadcast %cst_88 : f32 to vector<16x128xf32>
      %c0_89 = arith.constant 0 : index
      %c0_90 = arith.constant 0 : index
      %295 = vector.load %arg10[%c0_89, %c0_90] : memref<16x128xf32, #tpu.memory_space<vmem>>, vector<16x128xf32>
      tpu.vector_store %arg10[%c0_89, %c0_90], %294 {strides = array<i32>} : memref<16x128xf32, #tpu.memory_space<vmem>>, vector<16x128xf32>,
    } else {
    }
    %c0 = arith.constant 0 : index
    %c0_1 = arith.constant 0 : index
    %c0_2 = arith.constant 0 : index
    %3 = vector.load %arg2[%c0, %c0_1, %c0_2] : memref<8x16x128xbf16, #tpu.memory_space<vmem>>, vector<8x16x128xbf16>
    %4 = vector.shape_cast %3 : vector<8x16x128xbf16> to vector<128x128xbf16>
    %c0_3 = arith.constant 0 : index
    %c0_4 = arith.constant 0 : index
    %5 = vector.load %arg3[%c0_3, %c0_4] : memref<128x512xbf16, #tpu.memory_space<vmem>>, vector<128x512xbf16>
    %cst = arith.constant dense<0.000000e+00> : vector<128x512xf32>
    %6 = tpu.matmul %4, %5, %cst {dimension_numbers = #tpu.dot_dimension_numbers<[1], [0], [0], [1], [0, 0, 1, 1], [], []>} : vector<128x128xbf16>, vector<128x512xbf16>, vector<128x512xf32> -> vector<128x512xf32>
    %7 = vector.shape_cast %6 : vector<128x512xf32> to vector<8x16x512xf32>
    %8 = arith.truncf %7 : vector<8x16x512xf32> to vector<8x16x512xbf16>
    %c0_5 = arith.constant 0 : index
    %c0_6 = arith.constant 0 : index
    %c0_7 = arith.constant 0 : index
    %9 = vector.load %arg11[%c0_5, %c0_6, %c0_7] : memref<8x16x512xbf16, #tpu.memory_space<vmem>>, vector<8x16x512xbf16>
    tpu.vector_store %arg11[%c0_5, %c0_6, %c0_7], %8 {strides = array<i32>} : memref<8x16x512xbf16, #tpu.memory_space<vmem>>, vector<8x16x512xbf16>,
    %c0_8 = arith.constant 0 : index
    %c0_9 = arith.constant 0 : index
    %10 = vector.load %arg5[%c0_8, %c0_9] : memref<1x512xf32, #tpu.memory_space<vmem>>, vector<1x512xf32>
    %11 = vector.shape_cast %10 : vector<1x512xf32> to vector<1x512xf32>
    %12 = vector.broadcast %11 : vector<1x512xf32> to vector<16x512xf32>
    %c0_10 = arith.constant 0 : index
    %c0_11 = arith.constant 0 : index
    %13 = vector.load %arg9[%c0_10, %c0_11] : memref<16x128xf32, #tpu.memory_space<vmem>>, vector<16x128xf32>
    %c0_12 = arith.constant 0 : index
    %c0_13 = arith.constant 0 : index
    %14 = vector.load %arg10[%c0_12, %c0_13] : memref<16x128xf32, #tpu.memory_space<vmem>>, vector<16x128xf32>
    %c0_i32_14 = arith.constant 0 : i32
    %15 = arith.truncf %13 : vector<16x128xf32> to vector<16x128xbf16>
    %16 = arith.index_cast %c0_i32_14 : i32 to index
    %c0_15 = arith.constant 0 : index
    %c0_16 = arith.constant 0 : index
    %17 = vector.load %arg11[%16, %c0_15, %c0_16] : memref<8x16x512xbf16, #tpu.memory_space<vmem>>, vector<1x16x512xbf16>
    %18 = vector.shape_cast %17 : vector<1x16x512xbf16> to vector<16x512xbf16>
    %19 = arith.extf %18 : vector<16x512xbf16> to vector<16x512xf32>
    %c0_17 = arith.constant 0 : index
    %c0_18 = arith.constant 0 : index
    %20 = vector.load %arg4[%c0_17, %c0_18] : memref<128x512xbf16, #tpu.memory_space<vmem>>, vector<128x512xbf16>
    %cst_19 = arith.constant dense<0.000000e+00> : vector<16x512xf32>
    %21 = tpu.matmul %15, %20, %cst_19 {dimension_numbers = #tpu.dot_dimension_numbers<[1], [0], [0], [1], [0, 0, 1, 1], [], []>} : vector<16x128xbf16>, vector<128x512xbf16>, vector<16x512xf32> -> vector<16x512xf32>
    %22 = arith.addf %19, %21 : vector<16x512xf32>
    %23 = arith.addf %22, %12 : vector<16x512xf32>
    %24 = vector.extract_strided_slice %23 {offsets = [0, 0], sizes = [16, 128], strides = [1, 1]} : vector<16x512xf32> to vector<16x128xf32>
    %25 = arith.negf %24 : vector<16x128xf32>
    %26 = math.exp %25 : vector<16x128xf32>
    %cst_20 = arith.constant 1.000000e+00 : f32
    %27 = vector.broadcast %cst_20 : f32 to vector<16x128xf32>
    %28 = arith.addf %27, %26 : vector<16x128xf32>
    %29 = arith.divf %27, %28 : vector<16x128xf32>
    %30 = vector.extract_strided_slice %23 {offsets = [0, 128], sizes = [16, 128], strides = [1, 1]} : vector<16x512xf32> to vector<16x128xf32>
    %31 = arith.negf %30 : vector<16x128xf32>
    %32 = math.exp %31 : vector<16x128xf32>
    %cst_21 = arith.constant 1.000000e+00 : f32
    %33 = vector.broadcast %cst_21 : f32 to vector<16x128xf32>
    %34 = arith.addf %33, %32 : vector<16x128xf32>
    %35 = arith.divf %33, %34 : vector<16x128xf32>
    %36 = vector.extract_strided_slice %23 {offsets = [0, 256], sizes = [16, 128], strides = [1, 1]} : vector<16x512xf32> to vector<16x128xf32>
    %37 = math.tanh %36 : vector<16x128xf32>
    %38 = arith.mulf %35, %14 : vector<16x128xf32>
    %39 = arith.mulf %29, %37 : vector<16x128xf32>
    %40 = arith.addf %38, %39 : vector<16x128xf32>
    %41 = vector.extract_strided_slice %23 {offsets = [0, 384], sizes = [16, 128], strides = [1, 1]} : vector<16x512xf32> to vector<16x128xf32>
    %42 = arith.negf %41 : vector<16x128xf32>
    %43 = math.exp %42 : vector<16x128xf32>
    %cst_22 = arith.constant 1.000000e+00 : f32
    %44 = vector.broadcast %cst_22 : f32 to vector<16x128xf32>
    %45 = arith.addf %44, %43 : vector<16x128xf32>
    %46 = arith.divf %44, %45 : vector<16x128xf32>
    %47 = math.tanh %40 : vector<16x128xf32>
    %48 = arith.mulf %46, %47 : vector<16x128xf32>
    %c1_i32 = arith.constant 1 : i32
    %49 = arith.truncf %48 : vector<16x128xf32> to vector<16x128xbf16>
    %50 = arith.index_cast %c1_i32 : i32 to index
    %c0_23 = arith.constant 0 : index
    %c0_24 = arith.constant 0 : index
    %51 = vector.load %arg11[%50, %c0_23, %c0_24] : memref<8x16x512xbf16, #tpu.memory_space<vmem>>, vector<1x16x512xbf16>
    %52 = vector.shape_cast %51 : vector<1x16x512xbf16> to vector<16x512xbf16>
    %53 = arith.extf %52 : vector<16x512xbf16> to vector<16x512xf32>
    %c0_25 = arith.constant 0 : index
    %c0_26 = arith.constant 0 : index
    %54 = vector.load %arg4[%c0_25, %c0_26] : memref<128x512xbf16, #tpu.memory_space<vmem>>, vector<128x512xbf16>
    %cst_27 = arith.constant dense<0.000000e+00> : vector<16x512xf32>
    %55 = tpu.matmul %49, %54, %cst_27 {dimension_numbers = #tpu.dot_dimension_numbers<[1], [0], [0], [1], [0, 0, 1, 1], [], []>} : vector<16x128xbf16>, vector<128x512xbf16>, vector<16x512xf32> -> vector<16x512xf32>
    %56 = arith.addf %53, %55 : vector<16x512xf32>
    %57 = arith.addf %56, %12 : vector<16x512xf32>
    %58 = vector.extract_strided_slice %57 {offsets = [0, 0], sizes = [16, 128], strides = [1, 1]} : vector<16x512xf32> to vector<16x128xf32>
    %59 = arith.negf %58 : vector<16x128xf32>
    %60 = math.exp %59 : vector<16x128xf32>
    %cst_28 = arith.constant 1.000000e+00 : f32
    %61 = vector.broadcast %cst_28 : f32 to vector<16x128xf32>
    %62 = arith.addf %61, %60 : vector<16x128xf32>
    %63 = arith.divf %61, %62 : vector<16x128xf32>
    %64 = vector.extract_strided_slice %57 {offsets = [0, 128], sizes = [16, 128], strides = [1, 1]} : vector<16x512xf32> to vector<16x128xf32>
    %65 = arith.negf %64 : vector<16x128xf32>
    %66 = math.exp %65 : vector<16x128xf32>
    %cst_29 = arith.constant 1.000000e+00 : f32
    %67 = vector.broadcast %cst_29 : f32 to vector<16x128xf32>
    %68 = arith.addf %67, %66 : vector<16x128xf32>
    %69 = arith.divf %67, %68 : vector<16x128xf32>
    %70 = vector.extract_strided_slice %57 {offsets = [0, 256], sizes = [16, 128], strides = [1, 1]} : vector<16x512xf32> to vector<16x128xf32>
    %71 = math.tanh %70 : vector<16x128xf32>
    %72 = arith.mulf %69, %40 : vector<16x128xf32>
    %73 = arith.mulf %63, %71 : vector<16x128xf32>
    %74 = arith.addf %72, %73 : vector<16x128xf32>
    %75 = vector.extract_strided_slice %57 {offsets = [0, 384], sizes = [16, 128], strides = [1, 1]} : vector<16x512xf32> to vector<16x128xf32>
    %76 = arith.negf %75 : vector<16x128xf32>
    %77 = math.exp %76 : vector<16x128xf32>
    %cst_30 = arith.constant 1.000000e+00 : f32
    %78 = vector.broadcast %cst_30 : f32 to vector<16x128xf32>
    %79 = arith.addf %78, %77 : vector<16x128xf32>
    %80 = arith.divf %78, %79 : vector<16x128xf32>
    %81 = math.tanh %74 : vector<16x128xf32>
    %82 = arith.mulf %80, %81 : vector<16x128xf32>
    %c2_i32 = arith.constant 2 : i32
    %83 = arith.truncf %82 : vector<16x128xf32> to vector<16x128xbf16>
    %84 = arith.index_cast %c2_i32 : i32 to index
    %c0_31 = arith.constant 0 : index
    %c0_32 = arith.constant 0 : index
    %85 = vector.load %arg11[%84, %c0_31, %c0_32] : memref<8x16x512xbf16, #tpu.memory_space<vmem>>, vector<1x16x512xbf16>
    %86 = vector.shape_cast %85 : vector<1x16x512xbf16> to vector<16x512xbf16>
    %87 = arith.extf %86 : vector<16x512xbf16> to vector<16x512xf32>
    %c0_33 = arith.constant 0 : index
    %c0_34 = arith.constant 0 : index
    %88 = vector.load %arg4[%c0_33, %c0_34] : memref<128x512xbf16, #tpu.memory_space<vmem>>, vector<128x512xbf16>
    %cst_35 = arith.constant dense<0.000000e+00> : vector<16x512xf32>
    %89 = tpu.matmul %83, %88, %cst_35 {dimension_numbers = #tpu.dot_dimension_numbers<[1], [0], [0], [1], [0, 0, 1, 1], [], []>} : vector<16x128xbf16>, vector<128x512xbf16>, vector<16x512xf32> -> vector<16x512xf32>
    %90 = arith.addf %87, %89 : vector<16x512xf32>
    %91 = arith.addf %90, %12 : vector<16x512xf32>
    %92 = vector.extract_strided_slice %91 {offsets = [0, 0], sizes = [16, 128], strides = [1, 1]} : vector<16x512xf32> to vector<16x128xf32>
    %93 = arith.negf %92 : vector<16x128xf32>
    %94 = math.exp %93 : vector<16x128xf32>
    %cst_36 = arith.constant 1.000000e+00 : f32
    %95 = vector.broadcast %cst_36 : f32 to vector<16x128xf32>
    %96 = arith.addf %95, %94 : vector<16x128xf32>
    %97 = arith.divf %95, %96 : vector<16x128xf32>
    %98 = vector.extract_strided_slice %91 {offsets = [0, 128], sizes = [16, 128], strides = [1, 1]} : vector<16x512xf32> to vector<16x128xf32>
    %99 = arith.negf %98 : vector<16x128xf32>
    %100 = math.exp %99 : vector<16x128xf32>
    %cst_37 = arith.constant 1.000000e+00 : f32
    %101 = vector.broadcast %cst_37 : f32 to vector<16x128xf32>
    %102 = arith.addf %101, %100 : vector<16x128xf32>
    %103 = arith.divf %101, %102 : vector<16x128xf32>
    %104 = vector.extract_strided_slice %91 {offsets = [0, 256], sizes = [16, 128], strides = [1, 1]} : vector<16x512xf32> to vector<16x128xf32>
    %105 = math.tanh %104 : vector<16x128xf32>
    %106 = arith.mulf %103, %74 : vector<16x128xf32>
    %107 = arith.mulf %97, %105 : vector<16x128xf32>
    %108 = arith.addf %106, %107 : vector<16x128xf32>
    %109 = vector.extract_strided_slice %91 {offsets = [0, 384], sizes = [16, 128], strides = [1, 1]} : vector<16x512xf32> to vector<16x128xf32>
    %110 = arith.negf %109 : vector<16x128xf32>
    %111 = math.exp %110 : vector<16x128xf32>
    %cst_38 = arith.constant 1.000000e+00 : f32
    %112 = vector.broadcast %cst_38 : f32 to vector<16x128xf32>
    %113 = arith.addf %112, %111 : vector<16x128xf32>
    %114 = arith.divf %112, %113 : vector<16x128xf32>
    %115 = math.tanh %108 : vector<16x128xf32>
    %116 = arith.mulf %114, %115 : vector<16x128xf32>
    %c3_i32 = arith.constant 3 : i32
    %117 = arith.truncf %116 : vector<16x128xf32> to vector<16x128xbf16>
    %118 = arith.index_cast %c3_i32 : i32 to index
    %c0_39 = arith.constant 0 : index
    %c0_40 = arith.constant 0 : index
    %119 = vector.load %arg11[%118, %c0_39, %c0_40] : memref<8x16x512xbf16, #tpu.memory_space<vmem>>, vector<1x16x512xbf16>
    %120 = vector.shape_cast %119 : vector<1x16x512xbf16> to vector<16x512xbf16>
    %121 = arith.extf %120 : vector<16x512xbf16> to vector<16x512xf32>
    %c0_41 = arith.constant 0 : index
    %c0_42 = arith.constant 0 : index
    %122 = vector.load %arg4[%c0_41, %c0_42] : memref<128x512xbf16, #tpu.memory_space<vmem>>, vector<128x512xbf16>
    %cst_43 = arith.constant dense<0.000000e+00> : vector<16x512xf32>
    %123 = tpu.matmul %117, %122, %cst_43 {dimension_numbers = #tpu.dot_dimension_numbers<[1], [0], [0], [1], [0, 0, 1, 1], [], []>} : vector<16x128xbf16>, vector<128x512xbf16>, vector<16x512xf32> -> vector<16x512xf32>
    %124 = arith.addf %121, %123 : vector<16x512xf32>
    %125 = arith.addf %124, %12 : vector<16x512xf32>
    %126 = vector.extract_strided_slice %125 {offsets = [0, 0], sizes = [16, 128], strides = [1, 1]} : vector<16x512xf32> to vector<16x128xf32>
    %127 = arith.negf %126 : vector<16x128xf32>
    %128 = math.exp %127 : vector<16x128xf32>
    %cst_44 = arith.constant 1.000000e+00 : f32
    %129 = vector.broadcast %cst_44 : f32 to vector<16x128xf32>
    %130 = arith.addf %129, %128 : vector<16x128xf32>
    %131 = arith.divf %129, %130 : vector<16x128xf32>
    %132 = vector.extract_strided_slice %125 {offsets = [0, 128], sizes = [16, 128], strides = [1, 1]} : vector<16x512xf32> to vector<16x128xf32>
    %133 = arith.negf %132 : vector<16x128xf32>
    %134 = math.exp %133 : vector<16x128xf32>
    %cst_45 = arith.constant 1.000000e+00 : f32
    %135 = vector.broadcast %cst_45 : f32 to vector<16x128xf32>
    %136 = arith.addf %135, %134 : vector<16x128xf32>
    %137 = arith.divf %135, %136 : vector<16x128xf32>
    %138 = vector.extract_strided_slice %125 {offsets = [0, 256], sizes = [16, 128], strides = [1, 1]} : vector<16x512xf32> to vector<16x128xf32>
    %139 = math.tanh %138 : vector<16x128xf32>
    %140 = arith.mulf %137, %108 : vector<16x128xf32>
    %141 = arith.mulf %131, %139 : vector<16x128xf32>
    %142 = arith.addf %140, %141 : vector<16x128xf32>
    %143 = vector.extract_strided_slice %125 {offsets = [0, 384], sizes = [16, 128], strides = [1, 1]} : vector<16x512xf32> to vector<16x128xf32>
    %144 = arith.negf %143 : vector<16x128xf32>
    %145 = math.exp %144 : vector<16x128xf32>
    %cst_46 = arith.constant 1.000000e+00 : f32
    %146 = vector.broadcast %cst_46 : f32 to vector<16x128xf32>
    %147 = arith.addf %146, %145 : vector<16x128xf32>
    %148 = arith.divf %146, %147 : vector<16x128xf32>
    %149 = math.tanh %142 : vector<16x128xf32>
    %150 = arith.mulf %148, %149 : vector<16x128xf32>
    %c4_i32 = arith.constant 4 : i32
    %151 = arith.truncf %150 : vector<16x128xf32> to vector<16x128xbf16>
    %152 = arith.index_cast %c4_i32 : i32 to index
    %c0_47 = arith.constant 0 : index
    %c0_48 = arith.constant 0 : index
    %153 = vector.load %arg11[%152, %c0_47, %c0_48] : memref<8x16x512xbf16, #tpu.memory_space<vmem>>, vector<1x16x512xbf16>
    %154 = vector.shape_cast %153 : vector<1x16x512xbf16> to vector<16x512xbf16>
    %155 = arith.extf %154 : vector<16x512xbf16> to vector<16x512xf32>
    %c0_49 = arith.constant 0 : index
    %c0_50 = arith.constant 0 : index
    %156 = vector.load %arg4[%c0_49, %c0_50] : memref<128x512xbf16, #tpu.memory_space<vmem>>, vector<128x512xbf16>
    %cst_51 = arith.constant dense<0.000000e+00> : vector<16x512xf32>
    %157 = tpu.matmul %151, %156, %cst_51 {dimension_numbers = #tpu.dot_dimension_numbers<[1], [0], [0], [1], [0, 0, 1, 1], [], []>} : vector<16x128xbf16>, vector<128x512xbf16>, vector<16x512xf32> -> vector<16x512xf32>
    %158 = arith.addf %155, %157 : vector<16x512xf32>
    %159 = arith.addf %158, %12 : vector<16x512xf32>
    %160 = vector.extract_strided_slice %159 {offsets = [0, 0], sizes = [16, 128], strides = [1, 1]} : vector<16x512xf32> to vector<16x128xf32>
    %161 = arith.negf %160 : vector<16x128xf32>
    %162 = math.exp %161 : vector<16x128xf32>
    %cst_52 = arith.constant 1.000000e+00 : f32
    %163 = vector.broadcast %cst_52 : f32 to vector<16x128xf32>
    %164 = arith.addf %163, %162 : vector<16x128xf32>
    %165 = arith.divf %163, %164 : vector<16x128xf32>
    %166 = vector.extract_strided_slice %159 {offsets = [0, 128], sizes = [16, 128], strides = [1, 1]} : vector<16x512xf32> to vector<16x128xf32>
    %167 = arith.negf %166 : vector<16x128xf32>
    %168 = math.exp %167 : vector<16x128xf32>
    %cst_53 = arith.constant 1.000000e+00 : f32
    %169 = vector.broadcast %cst_53 : f32 to vector<16x128xf32>
    %170 = arith.addf %169, %168 : vector<16x128xf32>
    %171 = arith.divf %169, %170 : vector<16x128xf32>
    %172 = vector.extract_strided_slice %159 {offsets = [0, 256], sizes = [16, 128], strides = [1, 1]} : vector<16x512xf32> to vector<16x128xf32>
    %173 = math.tanh %172 : vector<16x128xf32>
    %174 = arith.mulf %171, %142 : vector<16x128xf32>
    %175 = arith.mulf %165, %173 : vector<16x128xf32>
    %176 = arith.addf %174, %175 : vector<16x128xf32>
    %177 = vector.extract_strided_slice %159 {offsets = [0, 384], sizes = [16, 128], strides = [1, 1]} : vector<16x512xf32> to vector<16x128xf32>
    %178 = arith.negf %177 : vector<16x128xf32>
    %179 = math.exp %178 : vector<16x128xf32>
    %cst_54 = arith.constant 1.000000e+00 : f32
    %180 = vector.broadcast %cst_54 : f32 to vector<16x128xf32>
    %181 = arith.addf %180, %179 : vector<16x128xf32>
    %182 = arith.divf %180, %181 : vector<16x128xf32>
    %183 = math.tanh %176 : vector<16x128xf32>
    %184 = arith.mulf %182, %183 : vector<16x128xf32>
    %c5_i32 = arith.constant 5 : i32
    %185 = arith.truncf %184 : vector<16x128xf32> to vector<16x128xbf16>
    %186 = arith.index_cast %c5_i32 : i32 to index
    %c0_55 = arith.constant 0 : index
    %c0_56 = arith.constant 0 : index
    %187 = vector.load %arg11[%186, %c0_55, %c0_56] : memref<8x16x512xbf16, #tpu.memory_space<vmem>>, vector<1x16x512xbf16>
    %188 = vector.shape_cast %187 : vector<1x16x512xbf16> to vector<16x512xbf16>
    %189 = arith.extf %188 : vector<16x512xbf16> to vector<16x512xf32>
    %c0_57 = arith.constant 0 : index
    %c0_58 = arith.constant 0 : index
    %190 = vector.load %arg4[%c0_57, %c0_58] : memref<128x512xbf16, #tpu.memory_space<vmem>>, vector<128x512xbf16>
    %cst_59 = arith.constant dense<0.000000e+00> : vector<16x512xf32>
    %191 = tpu.matmul %185, %190, %cst_59 {dimension_numbers = #tpu.dot_dimension_numbers<[1], [0], [0], [1], [0, 0, 1, 1], [], []>} : vector<16x128xbf16>, vector<128x512xbf16>, vector<16x512xf32> -> vector<16x512xf32>
    %192 = arith.addf %189, %191 : vector<16x512xf32>
    %193 = arith.addf %192, %12 : vector<16x512xf32>
    %194 = vector.extract_strided_slice %193 {offsets = [0, 0], sizes = [16, 128], strides = [1, 1]} : vector<16x512xf32> to vector<16x128xf32>
    %195 = arith.negf %194 : vector<16x128xf32>
    %196 = math.exp %195 : vector<16x128xf32>
    %cst_60 = arith.constant 1.000000e+00 : f32
    %197 = vector.broadcast %cst_60 : f32 to vector<16x128xf32>
    %198 = arith.addf %197, %196 : vector<16x128xf32>
    %199 = arith.divf %197, %198 : vector<16x128xf32>
    %200 = vector.extract_strided_slice %193 {offsets = [0, 128], sizes = [16, 128], strides = [1, 1]} : vector<16x512xf32> to vector<16x128xf32>
    %201 = arith.negf %200 : vector<16x128xf32>
    %202 = math.exp %201 : vector<16x128xf32>
    %cst_61 = arith.constant 1.000000e+00 : f32
    %203 = vector.broadcast %cst_61 : f32 to vector<16x128xf32>
    %204 = arith.addf %203, %202 : vector<16x128xf32>
    %205 = arith.divf %203, %204 : vector<16x128xf32>
    %206 = vector.extract_strided_slice %193 {offsets = [0, 256], sizes = [16, 128], strides = [1, 1]} : vector<16x512xf32> to vector<16x128xf32>
    %207 = math.tanh %206 : vector<16x128xf32>
    %208 = arith.mulf %205, %176 : vector<16x128xf32>
    %209 = arith.mulf %199, %207 : vector<16x128xf32>
    %210 = arith.addf %208, %209 : vector<16x128xf32>
    %211 = vector.extract_strided_slice %193 {offsets = [0, 384], sizes = [16, 128], strides = [1, 1]} : vector<16x512xf32> to vector<16x128xf32>
    %212 = arith.negf %211 : vector<16x128xf32>
    %213 = math.exp %212 : vector<16x128xf32>
    %cst_62 = arith.constant 1.000000e+00 : f32
    %214 = vector.broadcast %cst_62 : f32 to vector<16x128xf32>
    %215 = arith.addf %214, %213 : vector<16x128xf32>
    %216 = arith.divf %214, %215 : vector<16x128xf32>
    %217 = math.tanh %210 : vector<16x128xf32>
    %218 = arith.mulf %216, %217 : vector<16x128xf32>
    %c6_i32 = arith.constant 6 : i32
    %219 = arith.truncf %218 : vector<16x128xf32> to vector<16x128xbf16>
    %220 = arith.index_cast %c6_i32 : i32 to index
    %c0_63 = arith.constant 0 : index
    %c0_64 = arith.constant 0 : index
    %221 = vector.load %arg11[%220, %c0_63, %c0_64] : memref<8x16x512xbf16, #tpu.memory_space<vmem>>, vector<1x16x512xbf16>
    %222 = vector.shape_cast %221 : vector<1x16x512xbf16> to vector<16x512xbf16>
    %223 = arith.extf %222 : vector<16x512xbf16> to vector<16x512xf32>
    %c0_65 = arith.constant 0 : index
    %c0_66 = arith.constant 0 : index
    %224 = vector.load %arg4[%c0_65, %c0_66] : memref<128x512xbf16, #tpu.memory_space<vmem>>, vector<128x512xbf16>
    %cst_67 = arith.constant dense<0.000000e+00> : vector<16x512xf32>
    %225 = tpu.matmul %219, %224, %cst_67 {dimension_numbers = #tpu.dot_dimension_numbers<[1], [0], [0], [1], [0, 0, 1, 1], [], []>} : vector<16x128xbf16>, vector<128x512xbf16>, vector<16x512xf32> -> vector<16x512xf32>
    %226 = arith.addf %223, %225 : vector<16x512xf32>
    %227 = arith.addf %226, %12 : vector<16x512xf32>
    %228 = vector.extract_strided_slice %227 {offsets = [0, 0], sizes = [16, 128], strides = [1, 1]} : vector<16x512xf32> to vector<16x128xf32>
    %229 = arith.negf %228 : vector<16x128xf32>
    %230 = math.exp %229 : vector<16x128xf32>
    %cst_68 = arith.constant 1.000000e+00 : f32
    %231 = vector.broadcast %cst_68 : f32 to vector<16x128xf32>
    %232 = arith.addf %231, %230 : vector<16x128xf32>
    %233 = arith.divf %231, %232 : vector<16x128xf32>
    %234 = vector.extract_strided_slice %227 {offsets = [0, 128], sizes = [16, 128], strides = [1, 1]} : vector<16x512xf32> to vector<16x128xf32>
    %235 = arith.negf %234 : vector<16x128xf32>
    %236 = math.exp %235 : vector<16x128xf32>
    %cst_69 = arith.constant 1.000000e+00 : f32
    %237 = vector.broadcast %cst_69 : f32 to vector<16x128xf32>
    %238 = arith.addf %237, %236 : vector<16x128xf32>
    %239 = arith.divf %237, %238 : vector<16x128xf32>
    %240 = vector.extract_strided_slice %227 {offsets = [0, 256], sizes = [16, 128], strides = [1, 1]} : vector<16x512xf32> to vector<16x128xf32>
    %241 = math.tanh %240 : vector<16x128xf32>
    %242 = arith.mulf %239, %210 : vector<16x128xf32>
    %243 = arith.mulf %233, %241 : vector<16x128xf32>
    %244 = arith.addf %242, %243 : vector<16x128xf32>
    %245 = vector.extract_strided_slice %227 {offsets = [0, 384], sizes = [16, 128], strides = [1, 1]} : vector<16x512xf32> to vector<16x128xf32>
    %246 = arith.negf %245 : vector<16x128xf32>
    %247 = math.exp %246 : vector<16x128xf32>
    %cst_70 = arith.constant 1.000000e+00 : f32
    %248 = vector.broadcast %cst_70 : f32 to vector<16x128xf32>
    %249 = arith.addf %248, %247 : vector<16x128xf32>
    %250 = arith.divf %248, %249 : vector<16x128xf32>
    %251 = math.tanh %244 : vector<16x128xf32>
    %252 = arith.mulf %250, %251 : vector<16x128xf32>
    %c7_i32 = arith.constant 7 : i32
    %253 = arith.truncf %252 : vector<16x128xf32> to vector<16x128xbf16>
    %254 = arith.index_cast %c7_i32 : i32 to index
    %c0_71 = arith.constant 0 : index
    %c0_72 = arith.constant 0 : index
    %255 = vector.load %arg11[%254, %c0_71, %c0_72] : memref<8x16x512xbf16, #tpu.memory_space<vmem>>, vector<1x16x512xbf16>
    %256 = vector.shape_cast %255 : vector<1x16x512xbf16> to vector<16x512xbf16>
    %257 = arith.extf %256 : vector<16x512xbf16> to vector<16x512xf32>
    %c0_73 = arith.constant 0 : index
    %c0_74 = arith.constant 0 : index
    %258 = vector.load %arg4[%c0_73, %c0_74] : memref<128x512xbf16, #tpu.memory_space<vmem>>, vector<128x512xbf16>
    %cst_75 = arith.constant dense<0.000000e+00> : vector<16x512xf32>
    %259 = tpu.matmul %253, %258, %cst_75 {dimension_numbers = #tpu.dot_dimension_numbers<[1], [0], [0], [1], [0, 0, 1, 1], [], []>} : vector<16x128xbf16>, vector<128x512xbf16>, vector<16x512xf32> -> vector<16x512xf32>
    %260 = arith.addf %257, %259 : vector<16x512xf32>
    %261 = arith.addf %260, %12 : vector<16x512xf32>
    %262 = vector.extract_strided_slice %261 {offsets = [0, 0], sizes = [16, 128], strides = [1, 1]} : vector<16x512xf32> to vector<16x128xf32>
    %263 = arith.negf %262 : vector<16x128xf32>
    %264 = math.exp %263 : vector<16x128xf32>
    %cst_76 = arith.constant 1.000000e+00 : f32
    %265 = vector.broadcast %cst_76 : f32 to vector<16x128xf32>
    %266 = arith.addf %265, %264 : vector<16x128xf32>
    %267 = arith.divf %265, %266 : vector<16x128xf32>
    %268 = vector.extract_strided_slice %261 {offsets = [0, 128], sizes = [16, 128], strides = [1, 1]} : vector<16x512xf32> to vector<16x128xf32>
    %269 = arith.negf %268 : vector<16x128xf32>
    %270 = math.exp %269 : vector<16x128xf32>
    %cst_77 = arith.constant 1.000000e+00 : f32
    %271 = vector.broadcast %cst_77 : f32 to vector<16x128xf32>
    %272 = arith.addf %271, %270 : vector<16x128xf32>
    %273 = arith.divf %271, %272 : vector<16x128xf32>
    %274 = vector.extract_strided_slice %261 {offsets = [0, 256], sizes = [16, 128], strides = [1, 1]} : vector<16x512xf32> to vector<16x128xf32>
    %275 = math.tanh %274 : vector<16x128xf32>
    %276 = arith.mulf %273, %244 : vector<16x128xf32>
    %277 = arith.mulf %267, %275 : vector<16x128xf32>
    %278 = arith.addf %276, %277 : vector<16x128xf32>
    %279 = vector.extract_strided_slice %261 {offsets = [0, 384], sizes = [16, 128], strides = [1, 1]} : vector<16x512xf32> to vector<16x128xf32>
    %280 = arith.negf %279 : vector<16x128xf32>
    %281 = math.exp %280 : vector<16x128xf32>
    %cst_78 = arith.constant 1.000000e+00 : f32
    %282 = vector.broadcast %cst_78 : f32 to vector<16x128xf32>
    %283 = arith.addf %282, %281 : vector<16x128xf32>
    %284 = arith.divf %282, %283 : vector<16x128xf32>
    %285 = math.tanh %278 : vector<16x128xf32>
    %286 = arith.mulf %284, %285 : vector<16x128xf32>
    %c8_i32 = arith.constant 8 : i32
    %c0_79 = arith.constant 0 : index
    %c0_80 = arith.constant 0 : index
    %287 = vector.load %arg9[%c0_79, %c0_80] : memref<16x128xf32, #tpu.memory_space<vmem>>, vector<16x128xf32>
    tpu.vector_store %arg9[%c0_79, %c0_80], %286 {strides = array<i32>} : memref<16x128xf32, #tpu.memory_space<vmem>>, vector<16x128xf32>,
    %c0_81 = arith.constant 0 : index
    %c0_82 = arith.constant 0 : index
    %288 = vector.load %arg10[%c0_81, %c0_82] : memref<16x128xf32, #tpu.memory_space<vmem>>, vector<16x128xf32>
    tpu.vector_store %arg10[%c0_81, %c0_82], %278 {strides = array<i32>} : memref<16x128xf32, #tpu.memory_space<vmem>>, vector<16x128xf32>,
    %c0_i32_83 = arith.constant 0 : i32
    %289 = arith.cmpi eq, %arg1, %c0_i32_83 : i32
    %290 = arith.extui %289 : i1 to i32
    %c0_i32_84 = arith.constant 0 : i32
    %291 = arith.cmpi ne, %290, %c0_i32_84 : i32
    scf.if %291 {
      %292 = arith.truncf %286 : vector<16x128xf32> to vector<16x128xbf16>
      %c0_85 = arith.constant 0 : index
      %c0_86 = arith.constant 0 : index
      %293 = vector.load %arg6[%c0_85, %c0_86] : memref<128x128xbf16, #tpu.memory_space<vmem>>, vector<128x128xbf16>
      %cst_87 = arith.constant dense<0.000000e+00> : vector<16x128xf32>
      %294 = tpu.matmul %292, %293, %cst_87 {dimension_numbers = #tpu.dot_dimension_numbers<[1], [0], [0], [1], [0, 0, 1, 1], [], []>} : vector<16x128xbf16>, vector<128x128xbf16>, vector<16x128xf32> -> vector<16x128xf32>
      %c0_88 = arith.constant 0 : index
      %c0_89 = arith.constant 0 : index
      %295 = vector.load %arg7[%c0_88, %c0_89] : memref<1x128xf32, #tpu.memory_space<vmem>>, vector<1x128xf32>
      %296 = vector.broadcast %295 : vector<1x128xf32> to vector<16x128xf32>
      %297 = arith.addf %294, %296 : vector<16x128xf32>
      %cst_90 = arith.constant dense<0xFF800000> : vector<16xf32>
      %298 = vector.multi_reduction <maximumf>, %297, %cst_90 [1] : vector<16x128xf32> to vector<16xf32>
      %299 = vector.shape_cast %298 : vector<16xf32> to vector<16x1xf32>
      %300 = vector.broadcast %299 : vector<16x1xf32> to vector<16x128xf32>
      %301 = arith.subf %297, %300 : vector<16x128xf32>
      %302 = math.exp %301 : vector<16x128xf32>
      %cst_91 = arith.constant dense<0.000000e+00> : vector<16xf32>
      %303 = vector.multi_reduction <add>, %302, %cst_91 [1] : vector<16x128xf32> to vector<16xf32>
      %304 = vector.shape_cast %303 : vector<16xf32> to vector<16x1xf32>
      %305 = math.log %304 : vector<16x1xf32>
      %306 = vector.broadcast %305 : vector<16x1xf32> to vector<16x128xf32>
      %307 = arith.subf %301, %306 : vector<16x128xf32>
      %c0_92 = arith.constant 0 : index
      %c0_93 = arith.constant 0 : index
      %308 = vector.load %arg8[%c0_92, %c0_93] : memref<16x128xf32, #tpu.memory_space<vmem>>, vector<16x128xf32>
      tpu.vector_store %arg8[%c0_92, %c0_93], %307 {strides = array<i32>} : memref<16x128xf32, #tpu.memory_space<vmem>>, vector<16x128xf32>,
    } else {
    }
    return
  }
  func.func @transform_0(%arg0: i32, %arg1: i32) -> (i32, i32, i32) {
    %c0_i32 = arith.constant 0 : i32
    %c0_i32_0 = arith.constant 0 : i32
    return %arg1, %arg0, %c0_i32 : i32, i32, i32
  }
  func.func @transform_1(%arg0: i32, %arg1: i32) -> (i32, i32) {
    %c0_i32 = arith.constant 0 : i32
    %c0_i32_0 = arith.constant 0 : i32
    %c0_i32_1 = arith.constant 0 : i32
    return %c0_i32, %c0_i32_0 : i32, i32
  }
  func.func @transform_2(%arg0: i32, %arg1: i32) -> (i32, i32) {
    %c0_i32 = arith.constant 0 : i32
    %c0_i32_0 = arith.constant 0 : i32
    %c0_i32_1 = arith.constant 0 : i32
    return %c0_i32, %c0_i32_0 : i32, i32
  }
  func.func @transform_3(%arg0: i32, %arg1: i32) -> (i32, i32) {
    %c0_i32 = arith.constant 0 : i32
    %c0_i32_0 = arith.constant 0 : i32
    %c0_i32_1 = arith.constant 0 : i32
    return %c0_i32, %c0_i32_0 : i32, i32
  }
  func.func @transform_4(%arg0: i32, %arg1: i32) -> (i32, i32) {
    %c0_i32 = arith.constant 0 : i32
    %c0_i32_0 = arith.constant 0 : i32
    %c0_i32_1 = arith.constant 0 : i32
    return %c0_i32, %c0_i32_0 : i32, i32
  }
  func.func @transform_5(%arg0: i32, %arg1: i32) -> (i32, i32) {
    %c0_i32 = arith.constant 0 : i32
    %c0_i32_0 = arith.constant 0 : i32
    %c0_i32_1 = arith.constant 0 : i32
    return %c0_i32, %c0_i32_0 : i32, i32
  }
  func.func @transform_6(%arg0: i32, %arg1: i32) -> (i32, i32) {
    %c0_i32 = arith.constant 0 : i32
    %c0_i32_0 = arith.constant 0 : i32
    return %arg0, %c0_i32 : i32, i32
  }
}

</mosaic_0001>

<llo_original>
// kernel: tpu_custom_call.1
$region0: #{tpu_custom_call.1}
  #allocation0 [shape = 'u32[]', space=smem, size = 0x4, offset = 0x4, fixed_abs, tag = 'smem constant byte address 0x4 - core index']
  #allocation1 [shape = 'u32[144,128]{1,0:T(1,128)}', space=vmem, size = 0x12000, scoped, tag = 'internal scratch']
  #allocation2 [shape = 'f32[16,128]{1,0:T(8,128)}', space=vmem, size = 0x2000, scoped, tag = 'scratch operand']
  #allocation3 [shape = 'f32[16,128]{1,0:T(8,128)}', space=vmem, size = 0x2000, scoped, tag = 'scratch operand']
  #allocation4 [shape = 'bf16[8,16,512]{2,1,0:T(8,128)(2,1)}', space=vmem, size = 0x20000, scoped, tag = 'scratch operand']
  %s0 = inlined_call_operand.hbm [shape: bf16[8,16,128], index: 0, kind: input, shape index: {}]
  %s1 = inlined_call_operand.hbm [shape: bf16[128,512], index: 1, kind: input, shape index: {}]
  %s2 = inlined_call_operand.hbm [shape: bf16[128,512], index: 2, kind: input, shape index: {}]
  %s3 = inlined_call_operand.vmem [shape: f32[1,512], index: 3, kind: input, shape index: {}]
  %s4 = inlined_call_operand.hbm [shape: bf16[128,128], index: 4, kind: input, shape index: {}]
  %s5 = inlined_call_operand.vmem [shape: f32[1,128], index: 5, kind: input, shape index: {}]
  %s6 = inlined_call_operand.hbm [shape: f32[16,128], index: 6, kind: output, shape index: {}]
  %s7 = sld [smem:[#allocation0]]
  $region58: #{tpu_custom_call.1} parent=0
    _
  %s9 = ssub.s32 1, %s7
  %s10 = scalar_select 0, %s9, %s7
  $region1: #{tpu_custom_call.1} parent=0
    #allocation5 [shape = 'u8[32768]{0}', space=vmem, size = 0x8000, scoped, tag = 'input window, operand 0, single buffered']
    #allocation6 [shape = 's32[1]{0}', space=sflag, size = 0x4, scoped, tag = 'scoped memory for tpu_custom_call.1']
    #allocation7 [shape = 's32[1]{0}', space=sflag, size = 0x4, scoped, tag = 'scoped memory for tpu_custom_call.1']
    #allocation8 [shape = 'u8[131072]{0}', space=vmem, size = 0x20000, scoped, tag = 'input window, operand 1, single buffered']
    #allocation9 [shape = 's32[1]{0}', space=sflag, size = 0x4, scoped, tag = 'scoped memory for tpu_custom_call.1']
    #allocation10 [shape = 'u8[131072]{0}', space=vmem, size = 0x20000, scoped, tag = 'input window, operand 2, single buffered']
    #allocation11 [shape = 'u8[32768]{0}', space=vmem, size = 0x8000, scoped, tag = 'input window, operand 4, single buffered']
    #allocation12 [shape = 's32[1]{0}', space=sflag, size = 0x4, scoped, tag = 'scoped memory for tpu_custom_call.1']
    #allocation13 [shape = 'u8[8192]{0}', space=vmem, size = 0x2000, scoped, tag = 'output window, operand 0, single buffered']
    %11 = vsyncpa [#allocation6], 0
    %12 = vsyncpa [#allocation9], 0
    %13 = vsyncpa [#allocation12], 0
    %14 = vsyncpa [#allocation7], 0
    // Predicated region
    $region2: #{tpu_custom_call.1} parent=1 // pred_check
      _
    $region3: #{tpu_custom_call.1} parent=1 // pred_check_branch
      %16 = sbr.rel (0) target = $region5
    $region4: #{tpu_custom_call.1} parent=1 // pred_region
      %s18 = ssub.s32 1024, 1024
      %19 = vsyncadd [#allocation6], %s18
      %s20 = sshll.u32 [#allocation5], 4
      %s21 = int_to_ptr.vmem [resolvable:$true] %s20
      %26 = dma.hbm_to_vmem [thread:$0]  %s0, 1024, %s21, [#allocation6], 64, 64, 4
    $region5: #{tpu_custom_call.1} parent=1 // pred_fallthru
      _
    // Predicated region
    $region6: #{tpu_custom_call.1} parent=1 // pred_check
      _
    $region7: #{tpu_custom_call.1} parent=1 // pred_check_branch
      %28 = sbr.rel (0) target = $region9
    $region8: #{tpu_custom_call.1} parent=1 // pred_region
      %s30 = ssub.s32 4096, 4096
      %31 = vsyncadd [#allocation9], %s30
      %s32 = sshll.u32 [#allocation8], 4
      %s33 = int_to_ptr.vmem [resolvable:$true] %s32
      %38 = dma.hbm_to_vmem [thread:$0]  %s1, 4096, %s33, [#allocation9], 256, 256, 16
    $region9: #{tpu_custom_call.1} parent=1 // pred_fallthru
      _
    // Predicated region
    $region10: #{tpu_custom_call.1} parent=1 // pred_check
      _
    $region11: #{tpu_custom_call.1} parent=1 // pred_check_branch
      %40 = sbr.rel (0) target = $region13
    $region12: #{tpu_custom_call.1} parent=1 // pred_region
      %s42 = ssub.s32 4096, 4096
      %43 = vsyncadd [#allocation9], %s42
      %s44 = sshll.u32 [#allocation10], 4
      %s45 = int_to_ptr.vmem [resolvable:$true] %s44
      %50 = dma.hbm_to_vmem [thread:$0]  %s2, 4096, %s45, [#allocation9], 256, 256, 16
    $region13: #{tpu_custom_call.1} parent=1 // pred_fallthru
      _
    // Predicated region
    $region14: #{tpu_custom_call.1} parent=1 // pred_check
      _
    $region15: #{tpu_custom_call.1} parent=1 // pred_check_branch
      %52 = sbr.rel (0) target = $region17
    $region16: #{tpu_custom_call.1} parent=1 // pred_region
      _
    $region17: #{tpu_custom_call.1} parent=1 // pred_fallthru
      _
    // Predicated region
    $region18: #{tpu_custom_call.1} parent=1 // pred_check
      _
    $region19: #{tpu_custom_call.1} parent=1 // pred_check_branch
      %54 = sbr.rel (0) target = $region21
    $region20: #{tpu_custom_call.1} parent=1 // pred_region
      %s56 = ssub.s32 1024, 1024
      %57 = vsyncadd [#allocation12], %s56
      %s58 = sshll.u32 [#allocation11], 4
      %s59 = int_to_ptr.vmem [resolvable:$true] %s58
      %64 = dma.hbm_to_vmem [thread:$0]  %s4, 1024, %s59, [#allocation12], 64, 64, 4
    $region21: #{tpu_custom_call.1} parent=1 // pred_fallthru
      _
    // Predicated region
    $region22: #{tpu_custom_call.1} parent=1 // pred_check
      _
    $region23: #{tpu_custom_call.1} parent=1 // pred_check_branch
      %66 = sbr.rel (0) target = $region25
    $region24: #{tpu_custom_call.1} parent=1 // pred_region
      _
    $region25: #{tpu_custom_call.1} parent=1 // pred_fallthru
      _
    // Predicated region
    $region26: #{tpu_custom_call.1} parent=1 // pred_check
      _
    $region27: #{tpu_custom_call.1} parent=1 // pred_check_branch
      %68 = sbr.rel (0) target = $region29
    $region28: #{tpu_custom_call.1} parent=1 // pred_region
      %69 = dma.done [#allocation6], 1024
    $region29: #{tpu_custom_call.1} parent=1 // pred_fallthru
      _
    // Predicated region
    $region30: #{tpu_custom_call.1} parent=1 // pred_check
      _
    $region31: #{tpu_custom_call.1} parent=1 // pred_check_branch
      %71 = sbr.rel (0) target = $region33
    $region32: #{tpu_custom_call.1} parent=1 // pred_region
      %72 = dma.done [#allocation9], 4096
    $region33: #{tpu_custom_call.1} parent=1 // pred_fallthru
      _
    // Predicated region
    $region34: #{tpu_custom_call.1} parent=1 // pred_check
      _
    $region35: #{tpu_custom_call.1} parent=1 // pred_check_branch
      %74 = sbr.rel (0) target = $region37
    $region36: #{tpu_custom_call.1} parent=1 // pred_region
      %75 = dma.done [#allocation9], 4096
    $region37: #{tpu_custom_call.1} parent=1 // pred_fallthru
      _
    // Predicated region
    $region38: #{tpu_custom_call.1} parent=1 // pred_check
      _
    $region39: #{tpu_custom_call.1} parent=1 // pred_check_branch
      %77 = sbr.rel (0) target = $region41
    $region40: #{tpu_custom_call.1} parent=1 // pred_region
      %78 = dma.done [#allocation12], 1024
    $region41: #{tpu_custom_call.1} parent=1 // pred_fallthru
      _
    %p80 = scmp.eq.s32.totalorder 0, 0
    // Predicated region
    $region42: #{tpu_custom_call.1} parent=1 // pred_check
      %p81 = pneg %p80
    $region43: #{tpu_custom_call.1} parent=1 // pred_check_branch
      %83 = sbr.rel (%p81) target = $region45
    $region44: #{tpu_custom_call.1} parent=1 // pred_region
      %84 = vst [vmem:[#allocation2] sm:$0xff] 0.0
      %85 = vst [vmem:[#allocation2 + $0x8] sm:$0xff] 0.0
      %86 = vst [vmem:[#allocation3] sm:$0xff] 0.0
      %87 = vst [vmem:[#allocation3 + $0x8] sm:$0xff] 0.0
    $region45: #{tpu_custom_call.1} parent=1 // pred_fallthru
      _
    %v88 = vld [vmem:[#allocation5] sm:$0xf]
    %v89 = vld [vmem:[#allocation5 + $0x4] sm:$0xf]
    %v90 = vld [vmem:[#allocation5 + $0x8] sm:$0xf]
    %v91 = vld [vmem:[#allocation5 + $0xc] sm:$0xf]
    %v92 = vld [vmem:[#allocation5 + $0x10] sm:$0xf]
    %v93 = vld [vmem:[#allocation5 + $0x14] sm:$0xf]
    %v94 = vld [vmem:[#allocation5 + $0x18] sm:$0xf]
    %v95 = vld [vmem:[#allocation5 + $0x1c] sm:$0xf]
    %v96 = vld [vmem:[#allocation5 + $0x20] sm:$0xf]
    %v97 = vld [vmem:[#allocation5 + $0x24] sm:$0xf]
    %v98 = vld [vmem:[#allocation5 + $0x28] sm:$0xf]
    %v99 = vld [vmem:[#allocation5 + $0x2c] sm:$0xf]
    %v100 = vld [vmem:[#allocation5 + $0x30] sm:$0xf]
    %v101 = vld [vmem:[#allocation5 + $0x34] sm:$0xf]
    %v102 = vld [vmem:[#allocation5 + $0x38] sm:$0xf]
    %v103 = vld [vmem:[#allocation5 + $0x3c] sm:$0xf]
    %v104 = vld [vmem:[#allocation8] sm:$0xff]
    %v105 = vld [vmem:[#allocation8 + $0x8] sm:$0xff]
    %v106 = vld [vmem:[#allocation8 + $0x10] sm:$0xff]
    %v107 = vld [vmem:[#allocation8 + $0x18] sm:$0xff]
    %v108 = vld [vmem:[#allocation8 + $0x20] sm:$0xff]
    %v109 = vld [vmem:[#allocation8 + $0x28] sm:$0xff]
    %v110 = vld [vmem:[#allocation8 + $0x30] sm:$0xff]
    %v111 = vld [vmem:[#allocation8 + $0x38] sm:$0xff]
    %v112 = vld [vmem:[#allocation8 + $0x40] sm:$0xff]
    %v113 = vld [vmem:[#allocation8 + $0x48] sm:$0xff]
    %v114 = vld [vmem:[#allocation8 + $0x50] sm:$0xff]
    %v115 = vld [vmem:[#allocation8 + $0x58] sm:$0xff]
    %v116 = vld [vmem:[#allocation8 + $0x60] sm:$0xff]
    %v117 = vld [vmem:[#allocation8 + $0x68] sm:$0xff]
    %v118 = vld [vmem:[#allocation8 + $0x70] sm:$0xff]
    %v119 = vld [vmem:[#allocation8 + $0x78] sm:$0xff]
    %v120 = vld [vmem:[#allocation8 + $0x80] sm:$0xff]
    %v121 = vld [vmem:[#allocation8 + $0x88] sm:$0xff]
    %v122 = vld [vmem:[#allocation8 + $0x90] sm:$0xff]
    %v123 = vld [vmem:[#allocation8 + $0x98] sm:$0xff]
    %v124 = vld [vmem:[#allocation8 + $0xa0] sm:$0xff]
    %v125 = vld [vmem:[#allocation8 + $0xa8] sm:$0xff]
    %v126 = vld [vmem:[#allocation8 + $0xb0] sm:$0xff]
    %v127 = vld [vmem:[#allocation8 + $0xb8] sm:$0xff]
    %v128 = vld [vmem:[#allocation8 + $0xc0] sm:$0xff]
    %v129 = vld [vmem:[#allocation8 + $0xc8] sm:$0xff]
    %v130 = vld [vmem:[#allocation8 + $0xd0] sm:$0xff]
    %v131 = vld [vmem:[#allocation8 + $0xd8] sm:$0xff]
    %v132 = vld [vmem:[#allocation8 + $0xe0] sm:$0xff]
    %v133 = vld [vmem:[#allocation8 + $0xe8] sm:$0xff]
    %v134 = vld [vmem:[#allocation8 + $0xf0] sm:$0xff]
    %v135 = vld [vmem:[#allocation8 + $0xf8] sm:$0xff]
    %v152 = vunpack.c.l.b16 %v88
    %v153 = vunpack.c.l.b16 %v89
    %v154 = vunpack.c.l.b16 %v90
    %v155 = vunpack.c.l.b16 %v91
    %v156 = vunpack.c.l.b16 %v92
    %v157 = vunpack.c.l.b16 %v93
    %v158 = vunpack.c.l.b16 %v94
    %v159 = vunpack.c.l.b16 %v95
    %v160 = vunpack.c.l.b16 %v96
    %v161 = vunpack.c.l.b16 %v97
    %v162 = vunpack.c.l.b16 %v98
    %v163 = vunpack.c.l.b16 %v99
    %v164 = vunpack.c.l.b16 %v100
    %v165 = vunpack.c.l.b16 %v101
    %v166 = vunpack.c.l.b16 %v102
    %v167 = vunpack.c.l.b16 %v103
    %v168 = vpack.c.b16 %v153, %v152
    %v169 = vpack.c.b16 %v155, %v154
    %v170 = vpack.c.b16 %v157, %v156
    %v171 = vpack.c.b16 %v159, %v158
    %v172 = vpack.c.b16 %v161, %v160
    %v173 = vpack.c.b16 %v163, %v162
    %v174 = vpack.c.b16 %v165, %v164
    %v175 = vpack.c.b16 %v167, %v166
    %v216 = vunpack.c.l.b16 %v104
    %v217 = vunpack.c.h.b16 %v104
    %v218 = vunpack.c.l.b16 %v105
    %v219 = vunpack.c.h.b16 %v105
    %v220 = vunpack.c.l.b16 %v106
    %v221 = vunpack.c.h.b16 %v106
    %v222 = vunpack.c.l.b16 %v107
    %v223 = vunpack.c.h.b16 %v107
    %v224 = vunpack.c.l.b16 %v108
    %v225 = vunpack.c.h.b16 %v108
    %v226 = vunpack.c.l.b16 %v109
    %v227 = vunpack.c.h.b16 %v109
    %v228 = vunpack.c.l.b16 %v110
    %v229 = vunpack.c.h.b16 %v110
    %v230 = vunpack.c.l.b16 %v111
    %v231 = vunpack.c.h.b16 %v111
    %v232 = vunpack.c.l.b16 %v112
    %v233 = vunpack.c.h.b16 %v112
    %v234 = vunpack.c.l.b16 %v113
    %v235 = vunpack.c.h.b16 %v113
    %v236 = vunpack.c.l.b16 %v114
    %v237 = vunpack.c.h.b16 %v114
    %v238 = vunpack.c.l.b16 %v115
    %v239 = vunpack.c.h.b16 %v115
    %v240 = vunpack.c.l.b16 %v116
    %v241 = vunpack.c.h.b16 %v116
    %v242 = vunpack.c.l.b16 %v117
    %v243 = vunpack.c.h.b16 %v117
    %v244 = vunpack.c.l.b16 %v118
    %v245 = vunpack.c.h.b16 %v118
    %v246 = vunpack.c.l.b16 %v119
    %v247 = vunpack.c.h.b16 %v119
    %v248 = vunpack.c.l.b16 %v120
    %v249 = vunpack.c.h.b16 %v120
    %v250 = vunpack.c.l.b16 %v121
    %v251 = vunpack.c.h.b16 %v121
    %v252 = vunpack.c.l.b16 %v122
    %v253 = vunpack.c.h.b16 %v122
    %v254 = vunpack.c.l.b16 %v123
    %v255 = vunpack.c.h.b16 %v123
    %v256 = vunpack.c.l.b16 %v124
    %v257 = vunpack.c.h.b16 %v124
    %v258 = vunpack.c.l.b16 %v125
    %v259 = vunpack.c.h.b16 %v125
    %v260 = vunpack.c.l.b16 %v126
    %v261 = vunpack.c.h.b16 %v126
    %v262 = vunpack.c.l.b16 %v127
    %v263 = vunpack.c.h.b16 %v127
    %v264 = vunpack.c.l.b16 %v128
    %v265 = vunpack.c.h.b16 %v128
    %v266 = vunpack.c.l.b16 %v129
    %v267 = vunpack.c.h.b16 %v129
    %v268 = vunpack.c.l.b16 %v130
    %v269 = vunpack.c.h.b16 %v130
    %v270 = vunpack.c.l.b16 %v131
    %v271 = vunpack.c.h.b16 %v131
    %v272 = vunpack.c.l.b16 %v132
    %v273 = vunpack.c.h.b16 %v132
    %v274 = vunpack.c.l.b16 %v133
    %v275 = vunpack.c.h.b16 %v133
    %v276 = vunpack.c.l.b16 %v134
    %v277 = vunpack.c.h.b16 %v134
    %v278 = vunpack.c.l.b16 %v135
    %v279 = vunpack.c.h.b16 %v135
    %v280 = vpack.c.b16 %v220, %v216
    %v281 = vpack.c.b16 %v221, %v217
    %v282 = vpack.c.b16 %v222, %v218
    %v283 = vpack.c.b16 %v223, %v219
    %v284 = vpack.c.b16 %v228, %v224
    %v285 = vpack.c.b16 %v229, %v225
    %v286 = vpack.c.b16 %v230, %v226
    %v287 = vpack.c.b16 %v231, %v227
    %v288 = vpack.c.b16 %v236, %v232
    %v289 = vpack.c.b16 %v237, %v233
    %v290 = vpack.c.b16 %v238, %v234
    %v291 = vpack.c.b16 %v239, %v235
    %v292 = vpack.c.b16 %v244, %v240
    %v293 = vpack.c.b16 %v245, %v241
    %v294 = vpack.c.b16 %v246, %v242
    %v295 = vpack.c.b16 %v247, %v243
    %v296 = vpack.c.b16 %v252, %v248
    %v297 = vpack.c.b16 %v253, %v249
    %v298 = vpack.c.b16 %v254, %v250
    %v299 = vpack.c.b16 %v255, %v251
    %v300 = vpack.c.b16 %v260, %v256
    %v301 = vpack.c.b16 %v261, %v257
    %v302 = vpack.c.b16 %v262, %v258
    %v303 = vpack.c.b16 %v263, %v259
    %v304 = vpack.c.b16 %v268, %v264
    %v305 = vpack.c.b16 %v269, %v265
    %v306 = vpack.c.b16 %v270, %v266
    %v307 = vpack.c.b16 %v271, %v267
    %v308 = vpack.c.b16 %v276, %v272
    %v309 = vpack.c.b16 %v277, %v273
    %v310 = vpack.c.b16 %v278, %v274
    %v311 = vpack.c.b16 %v279, %v275
    %344 = vmatprep.subr.bf16.mxu0 %v309
    %345 = vmatpush1.bf16.msra.mxu0 %v308
    %346 = vmatprep.subr.bf16.mxu0 %v305
    %347 = vmatpush1.bf16.msra.mxu0 %v304
    %348 = vmatprep.subr.bf16.mxu0 %v301
    %349 = vmatpush1.bf16.msra.mxu0 %v300
    %350 = vmatprep.subr.bf16.mxu0 %v297
    %351 = vmatpush1.bf16.msra.mxu0 %v296
    %352 = vmatprep.subr.bf16.mxu0 %v293
    %353 = vmatpush1.bf16.msra.mxu0 %v292
    %354 = vmatprep.subr.bf16.mxu0 %v289
    %355 = vmatpush1.bf16.msra.mxu0 %v288
    %356 = vmatprep.subr.bf16.mxu0 %v285
    %357 = vmatpush1.bf16.msra.mxu0 %v284
    %358 = vmatprep.subr.bf16.mxu0 %v281
    %359 = vmatpush1.bf16.msra.mxu0 %v280
    %360 = vmatprep.subr.bf16.mxu0 0
    %361 = vmatpush2.bf16.msra.mxu0 0
    %362 = vmatprep.subr.bf16.mxu0 0
    %363 = vmatpush2.bf16.msra.mxu0 0
    %364 = vmatprep.subr.bf16.mxu0 0
    %365 = vmatpush2.bf16.msra.mxu0 0
    %366 = vmatprep.subr.bf16.mxu0 0
    %367 = vmatpush2.bf16.msra.mxu0 0
    %368 = vmatprep.subr.bf16.mxu0 0
    %369 = vmatpush2.bf16.msra.mxu0 0
    %370 = vmatprep.subr.bf16.mxu0 0
    %371 = vmatpush2.bf16.msra.mxu0 0
    %372 = vmatprep.subr.bf16.mxu0 0
    %373 = vmatpush2.bf16.msra.mxu0 0
    %374 = vmatprep.subr.bf16.mxu0 0
    %375 = vmatpush2.bf16.msra.mxu0 0
    %376 = vmatprep.mubr.bf16.mxu0 0
    %377 = vmatmul.mubr.bf16.gmra.mxu0 %v168
    %v378 = vpop.f32.mrf.mxu0
    %v379 = vadd.f32 0.0, %v378
    %v380 = vpop.f32.mrf.mxu0
    %v381 = vadd.f32 0.0, %v380
    %v382 = vpop.f32.mrf.mxu0
    %v383 = vadd.f32 0.0, %v382
    %v384 = vpop.f32.mrf.mxu0
    %v385 = vadd.f32 0.0, %v384
    %386 = vmatprep.mubr.bf16.mxu0 0
    %387 = vmatmul.mubr.bf16.gmra.mxu0 %v169
    %v388 = vpop.f32.mrf.mxu0
    %v389 = vadd.f32 0.0, %v388
    %v390 = vpop.f32.mrf.mxu0
    %v391 = vadd.f32 0.0, %v390
    %v392 = vpop.f32.mrf.mxu0
    %v393 = vadd.f32 0.0, %v392
    %v394 = vpop.f32.mrf.mxu0
    %v395 = vadd.f32 0.0, %v394
    %396 = vmatprep.mubr.bf16.mxu0 0
    %397 = vmatmul.mubr.bf16.gmra.mxu0 %v170
    %v398 = vpop.f32.mrf.mxu0
    %v399 = vadd.f32 0.0, %v398
    %v400 = vpop.f32.mrf.mxu0
    %v401 = vadd.f32 0.0, %v400
    %v402 = vpop.f32.mrf.mxu0
    %v403 = vadd.f32 0.0, %v402
    %v404 = vpop.f32.mrf.mxu0
    %v405 = vadd.f32 0.0, %v404
    %406 = vmatprep.mubr.bf16.mxu0 0
    %407 = vmatmul.mubr.bf16.gmra.mxu0 %v171
    %v408 = vpop.f32.mrf.mxu0
    %v409 = vadd.f32 0.0, %v408
    %v410 = vpop.f32.mrf.mxu0
    %v411 = vadd.f32 0.0, %v410
    %v412 = vpop.f32.mrf.mxu0
    %v413 = vadd.f32 0.0, %v412
    %v414 = vpop.f32.mrf.mxu0
    %v415 = vadd.f32 0.0, %v414
    %416 = vmatprep.mubr.bf16.mxu0 0
    %417 = vmatmul.mubr.bf16.gmra.mxu0 %v172
    %v418 = vpop.f32.mrf.mxu0
    %v419 = vadd.f32 0.0, %v418
    %v420 = vpop.f32.mrf.mxu0
    %v421 = vadd.f32 0.0, %v420
    %v422 = vpop.f32.mrf.mxu0
    %v423 = vadd.f32 0.0, %v422
    %v424 = vpop.f32.mrf.mxu0
    %v425 = vadd.f32 0.0, %v424
    %426 = vmatprep.mubr.bf16.mxu0 0
    %427 = vmatmul.mubr.bf16.gmra.mxu0 %v173
    %v428 = vpop.f32.mrf.mxu0
    %v429 = vadd.f32 0.0, %v428
    %v430 = vpop.f32.mrf.mxu0
    %v431 = vadd.f32 0.0, %v430
    %v432 = vpop.f32.mrf.mxu0
    %v433 = vadd.f32 0.0, %v432
    %v434 = vpop.f32.mrf.mxu0
    %v435 = vadd.f32 0.0, %v434
    %436 = vmatprep.mubr.bf16.mxu0 0
    %437 = vmatmul.mubr.bf16.gmra.mxu0 %v174
    %v438 = vpop.f32.mrf.mxu0
    %v439 = vadd.f32 0.0, %v438
    %v440 = vpop.f32.mrf.mxu0
    %v441 = vadd.f32 0.0, %v440
    %v442 = vpop.f32.mrf.mxu0
    %v443 = vadd.f32 0.0, %v442
    %v444 = vpop.f32.mrf.mxu0
    %v445 = vadd.f32 0.0, %v444
    %446 = vmatprep.mubr.bf16.mxu0 0
    %447 = vmatmul.mubr.bf16.gmra.mxu0 %v175
    %v448 = vpop.f32.mrf.mxu0
    %v449 = vadd.f32 0.0, %v448
    %v450 = vpop.f32.mrf.mxu0
    %v451 = vadd.f32 0.0, %v450
    %v452 = vpop.f32.mrf.mxu0
    %v453 = vadd.f32 0.0, %v452
    %v454 = vpop.f32.mrf.mxu0
    %v455 = vadd.f32 0.0, %v454
    %456 = vdwg.mxu0
    %457 = vmatprep.subr.bf16.mxu0 %v311
    %458 = vmatpush1.bf16.msra.mxu0 %v310
    %459 = vmatprep.subr.bf16.mxu0 %v307
    %460 = vmatpush1.bf16.msra.mxu0 %v306
    %461 = vmatprep.subr.bf16.mxu0 %v303
    %462 = vmatpush1.bf16.msra.mxu0 %v302
    %463 = vmatprep.subr.bf16.mxu0 %v299
    %464 = vmatpush1.bf16.msra.mxu0 %v298
    %465 = vmatprep.subr.bf16.mxu0 %v295
    %466 = vmatpush1.bf16.msra.mxu0 %v294
    %467 = vmatprep.subr.bf16.mxu0 %v291
    %468 = vmatpush1.bf16.msra.mxu0 %v290
    %469 = vmatprep.subr.bf16.mxu0 %v287
    %470 = vmatpush1.bf16.msra.mxu0 %v286
    %471 = vmatprep.subr.bf16.mxu0 %v283
    %472 = vmatpush1.bf16.msra.mxu0 %v282
    %473 = vmatprep.subr.bf16.mxu0 0
    %474 = vmatpush2.bf16.msra.mxu0 0
    %475 = vmatprep.subr.bf16.mxu0 0
    %476 = vmatpush2.bf16.msra.mxu0 0
    %477 = vmatprep.subr.bf16.mxu0 0
    %478 = vmatpush2.bf16.msra.mxu0 0
    %479 = vmatprep.subr.bf16.mxu0 0
    %480 = vmatpush2.bf16.msra.mxu0 0
    %481 = vmatprep.subr.bf16.mxu0 0
    %482 = vmatpush2.bf16.msra.mxu0 0
    %483 = vmatprep.subr.bf16.mxu0 0
    %484 = vmatpush2.bf16.msra.mxu0 0
    %485 = vmatprep.subr.bf16.mxu0 0
    %486 = vmatpush2.bf16.msra.mxu0 0
    %487 = vmatprep.subr.bf16.mxu0 0
    %488 = vmatpush2.bf16.msra.mxu0 0
    %489 = vmatprep.mubr.bf16.mxu0 0
    %490 = vmatmul.mubr.bf16.gmra.mxu0 %v168
    %v491 = vpop.f32.mrf.mxu0
    %v492 = vadd.f32 0.0, %v491
    %v493 = vpop.f32.mrf.mxu0
    %v494 = vadd.f32 0.0, %v493
    %v495 = vpop.f32.mrf.mxu0
    %v496 = vadd.f32 0.0, %v495
    %v497 = vpop.f32.mrf.mxu0
    %v498 = vadd.f32 0.0, %v497
    %499 = vmatprep.mubr.bf16.mxu0 0
    %500 = vmatmul.mubr.bf16.gmra.mxu0 %v169
    %v501 = vpop.f32.mrf.mxu0
    %v502 = vadd.f32 0.0, %v501
    %v503 = vpop.f32.mrf.mxu0
    %v504 = vadd.f32 0.0, %v503
    %v505 = vpop.f32.mrf.mxu0
    %v506 = vadd.f32 0.0, %v505
    %v507 = vpop.f32.mrf.mxu0
    %v508 = vadd.f32 0.0, %v507
    %509 = vmatprep.mubr.bf16.mxu0 0
    %510 = vmatmul.mubr.bf16.gmra.mxu0 %v170
    %v511 = vpop.f32.mrf.mxu0
    %v512 = vadd.f32 0.0, %v511
    %v513 = vpop.f32.mrf.mxu0
    %v514 = vadd.f32 0.0, %v513
    %v515 = vpop.f32.mrf.mxu0
    %v516 = vadd.f32 0.0, %v515
    %v517 = vpop.f32.mrf.mxu0
    %v518 = vadd.f32 0.0, %v517
    %519 = vmatprep.mubr.bf16.mxu0 0
    %520 = vmatmul.mubr.bf16.gmra.mxu0 %v171
    %v521 = vpop.f32.mrf.mxu0
    %v522 = vadd.f32 0.0, %v521
    %v523 = vpop.f32.mrf.mxu0
    %v524 = vadd.f32 0.0, %v523
    %v525 = vpop.f32.mrf.mxu0
    %v526 = vadd.f32 0.0, %v525
    %v527 = vpop.f32.mrf.mxu0
    %v528 = vadd.f32 0.0, %v527
    %529 = vmatprep.mubr.bf16.mxu0 0
    %530 = vmatmul.mubr.bf16.gmra.mxu0 %v172
    %v531 = vpop.f32.mrf.mxu0
    %v532 = vadd.f32 0.0, %v531
    %v533 = vpop.f32.mrf.mxu0
    %v534 = vadd.f32 0.0, %v533
    %v535 = vpop.f32.mrf.mxu0
    %v536 = vadd.f32 0.0, %v535
    %v537 = vpop.f32.mrf.mxu0
    %v538 = vadd.f32 0.0, %v537
    %539 = vmatprep.mubr.bf16.mxu0 0
    %540 = vmatmul.mubr.bf16.gmra.mxu0 %v173
    %v541 = vpop.f32.mrf.mxu0
    %v542 = vadd.f32 0.0, %v541
    %v543 = vpop.f32.mrf.mxu0
    %v544 = vadd.f32 0.0, %v543
    %v545 = vpop.f32.mrf.mxu0
    %v546 = vadd.f32 0.0, %v545
    %v547 = vpop.f32.mrf.mxu0
    %v548 = vadd.f32 0.0, %v547
    %549 = vmatprep.mubr.bf16.mxu0 0
    %550 = vmatmul.mubr.bf16.gmra.mxu0 %v174
    %v551 = vpop.f32.mrf.mxu0
    %v552 = vadd.f32 0.0, %v551
    %v553 = vpop.f32.mrf.mxu0
    %v554 = vadd.f32 0.0, %v553
    %v555 = vpop.f32.mrf.mxu0
    %v556 = vadd.f32 0.0, %v555
    %v557 = vpop.f32.mrf.mxu0
    %v558 = vadd.f32 0.0, %v557
    %559 = vmatprep.mubr.bf16.mxu0 0
    %560 = vmatmul.mubr.bf16.gmra.mxu0 %v175
    %v561 = vpop.f32.mrf.mxu0
    %v562 = vadd.f32 0.0, %v561
    %v563 = vpop.f32.mrf.mxu0
    %v564 = vadd.f32 0.0, %v563
    %v565 = vpop.f32.mrf.mxu0
    %v566 = vadd.f32 0.0, %v565
    %v567 = vpop.f32.mrf.mxu0
    %v568 = vadd.f32 0.0, %v567
    %569 = vdwg.mxu0
    %v570 = vpack.c.bf16 %v383, %v379
    %v571 = vpack.c.bf16 %v385, %v381
    %v572 = vpack.c.bf16 %v496, %v492
    %v573 = vpack.c.bf16 %v498, %v494
    %v574 = vpack.c.bf16 %v393, %v389
    %v575 = vpack.c.bf16 %v395, %v391
    %v576 = vpack.c.bf16 %v506, %v502
    %v577 = vpack.c.bf16 %v508, %v504
    %v578 = vpack.c.bf16 %v403, %v399
    %v579 = vpack.c.bf16 %v405, %v401
    %v580 = vpack.c.bf16 %v516, %v512
    %v581 = vpack.c.bf16 %v518, %v514
    %v582 = vpack.c.bf16 %v413, %v409
    %v583 = vpack.c.bf16 %v415, %v411
    %v584 = vpack.c.bf16 %v526, %v522
    %v585 = vpack.c.bf16 %v528, %v524
    %v586 = vpack.c.bf16 %v423, %v419
    %v587 = vpack.c.bf16 %v425, %v421
    %v588 = vpack.c.bf16 %v536, %v532
    %v589 = vpack.c.bf16 %v538, %v534
    %v590 = vpack.c.bf16 %v433, %v429
    %v591 = vpack.c.bf16 %v435, %v431
    %v592 = vpack.c.bf16 %v546, %v542
    %v593 = vpack.c.bf16 %v548, %v544
    %v594 = vpack.c.bf16 %v443, %v439
    %v595 = vpack.c.bf16 %v445, %v441
    %v596 = vpack.c.bf16 %v556, %v552
    %v597 = vpack.c.bf16 %v558, %v554
    %v598 = vpack.c.bf16 %v453, %v449
    %v599 = vpack.c.bf16 %v455, %v451
    %v600 = vpack.c.bf16 %v566, %v562
    %v601 = vpack.c.bf16 %v568, %v564
    %v634 = vunpack.c.l.b16 %v570
    %v635 = vunpack.c.l.b16 %v571
    %v636 = vunpack.c.l.b16 %v572
    %v637 = vunpack.c.l.b16 %v573
    %v638 = vunpack.c.h.b16 %v570
    %v639 = vunpack.c.h.b16 %v571
    %v640 = vunpack.c.h.b16 %v572
    %v641 = vunpack.c.h.b16 %v573
    %v642 = vunpack.c.l.b16 %v574
    %v643 = vunpack.c.l.b16 %v575
    %v644 = vunpack.c.l.b16 %v576
    %v645 = vunpack.c.l.b16 %v577
    %v646 = vunpack.c.h.b16 %v574
    %v647 = vunpack.c.h.b16 %v575
    %v648 = vunpack.c.h.b16 %v576
    %v649 = vunpack.c.h.b16 %v577
    %v650 = vunpack.c.l.b16 %v578
    %v651 = vunpack.c.l.b16 %v579
    %v652 = vunpack.c.l.b16 %v580
    %v653 = vunpack.c.l.b16 %v581
    %v654 = vunpack.c.h.b16 %v578
    %v655 = vunpack.c.h.b16 %v579
    %v656 = vunpack.c.h.b16 %v580
    %v657 = vunpack.c.h.b16 %v581
    %v658 = vunpack.c.l.b16 %v582
    %v659 = vunpack.c.l.b16 %v583
    %v660 = vunpack.c.l.b16 %v584
    %v661 = vunpack.c.l.b16 %v585
    %v662 = vunpack.c.h.b16 %v582
    %v663 = vunpack.c.h.b16 %v583
    %v664 = vunpack.c.h.b16 %v584
    %v665 = vunpack.c.h.b16 %v585
    %v666 = vunpack.c.l.b16 %v586
    %v667 = vunpack.c.l.b16 %v587
    %v668 = vunpack.c.l.b16 %v588
    %v669 = vunpack.c.l.b16 %v589
    %v670 = vunpack.c.h.b16 %v586
    %v671 = vunpack.c.h.b16 %v587
    %v672 = vunpack.c.h.b16 %v588
    %v673 = vunpack.c.h.b16 %v589
    %v674 = vunpack.c.l.b16 %v590
    %v675 = vunpack.c.l.b16 %v591
    %v676 = vunpack.c.l.b16 %v592
    %v677 = vunpack.c.l.b16 %v593
    %v678 = vunpack.c.h.b16 %v590
    %v679 = vunpack.c.h.b16 %v591
    %v680 = vunpack.c.h.b16 %v592
    %v681 = vunpack.c.h.b16 %v593
    %v682 = vunpack.c.l.b16 %v594
    %v683 = vunpack.c.l.b16 %v595
    %v684 = vunpack.c.l.b16 %v596
    %v685 = vunpack.c.l.b16 %v597
    %v686 = vunpack.c.h.b16 %v594
    %v687 = vunpack.c.h.b16 %v595
    %v688 = vunpack.c.h.b16 %v596
    %v689 = vunpack.c.h.b16 %v597
    %v690 = vunpack.c.l.b16 %v598
    %v691 = vunpack.c.l.b16 %v599
    %v692 = vunpack.c.l.b16 %v600
    %v693 = vunpack.c.l.b16 %v601
    %v694 = vunpack.c.h.b16 %v598
    %v695 = vunpack.c.h.b16 %v599
    %v696 = vunpack.c.h.b16 %v600
    %v697 = vunpack.c.h.b16 %v601
    %v698 = vpack.c.b16 %v635, %v634
    %v699 = vpack.c.b16 %v637, %v636
    %v700 = vpack.c.b16 %v639, %v638
    %v701 = vpack.c.b16 %v641, %v640
    %v702 = vpack.c.b16 %v643, %v642
    %v703 = vpack.c.b16 %v645, %v644
    %v704 = vpack.c.b16 %v647, %v646
    %v705 = vpack.c.b16 %v649, %v648
    %v706 = vpack.c.b16 %v651, %v650
    %v707 = vpack.c.b16 %v653, %v652
    %v708 = vpack.c.b16 %v655, %v654
    %v709 = vpack.c.b16 %v657, %v656
    %v710 = vpack.c.b16 %v659, %v658
    %v711 = vpack.c.b16 %v661, %v660
    %v712 = vpack.c.b16 %v663, %v662
    %v713 = vpack.c.b16 %v665, %v664
    %v714 = vpack.c.b16 %v667, %v666
    %v715 = vpack.c.b16 %v669, %v668
    %v716 = vpack.c.b16 %v671, %v670
    %v717 = vpack.c.b16 %v673, %v672
    %v718 = vpack.c.b16 %v675, %v674
    %v719 = vpack.c.b16 %v677, %v676
    %v720 = vpack.c.b16 %v679, %v678
    %v721 = vpack.c.b16 %v681, %v680
    %v722 = vpack.c.b16 %v683, %v682
    %v723 = vpack.c.b16 %v685, %v684
    %v724 = vpack.c.b16 %v687, %v686
    %v725 = vpack.c.b16 %v689, %v688
    %v726 = vpack.c.b16 %v691, %v690
    %v727 = vpack.c.b16 %v693, %v692
    %v728 = vpack.c.b16 %v695, %v694
    %v729 = vpack.c.b16 %v697, %v696
    %762 = vst [vmem:[#allocation4] sm:$0xff] %v698
    %763 = vst [vmem:[#allocation4 + $0x8] sm:$0xff] %v699
    %764 = vst [vmem:[#allocation4 + $0x10] sm:$0xff] %v700
    %765 = vst [vmem:[#allocation4 + $0x18] sm:$0xff] %v701
    %766 = vst [vmem:[#allocation4 + $0x20] sm:$0xff] %v702
    %767 = vst [vmem:[#allocation4 + $0x28] sm:$0xff] %v703
    %768 = vst [vmem:[#allocation4 + $0x30] sm:$0xff] %v704
    %769 = vst [vmem:[#allocation4 + $0x38] sm:$0xff] %v705
    %770 = vst [vmem:[#allocation4 + $0x40] sm:$0xff] %v706
    %771 = vst [vmem:[#allocation4 + $0x48] sm:$0xff] %v707
    %772 = vst [vmem:[#allocation4 + $0x50] sm:$0xff] %v708
    %773 = vst [vmem:[#allocation4 + $0x58] sm:$0xff] %v709
    %774 = vst [vmem:[#allocation4 + $0x60] sm:$0xff] %v710
    %775 = vst [vmem:[#allocation4 + $0x68] sm:$0xff] %v711
    %776 = vst [vmem:[#allocation4 + $0x70] sm:$0xff] %v712
    %777 = vst [vmem:[#allocation4 + $0x78] sm:$0xff] %v713
    %778 = vst [vmem:[#allocation4 + $0x80] sm:$0xff] %v714
    %779 = vst [vmem:[#allocation4 + $0x88] sm:$0xff] %v715
    %780 = vst [vmem:[#allocation4 + $0x90] sm:$0xff] %v716
    %781 = vst [vmem:[#allocation4 + $0x98] sm:$0xff] %v717
    %782 = vst [vmem:[#allocation4 + $0xa0] sm:$0xff] %v718
    %783 = vst [vmem:[#allocation4 + $0xa8] sm:$0xff] %v719
    %784 = vst [vmem:[#allocation4 + $0xb0] sm:$0xff] %v720
    %785 = vst [vmem:[#allocation4 + $0xb8] sm:$0xff] %v721
    %786 = vst [vmem:[#allocation4 + $0xc0] sm:$0xff] %v722
    %787 = vst [vmem:[#allocation4 + $0xc8] sm:$0xff] %v723
    %788 = vst [vmem:[#allocation4 + $0xd0] sm:$0xff] %v724
    %789 = vst [vmem:[#allocation4 + $0xd8] sm:$0xff] %v725
    %790 = vst [vmem:[#allocation4 + $0xe0] sm:$0xff] %v726
    %791 = vst [vmem:[#allocation4 + $0xe8] sm:$0xff] %v727
    %792 = vst [vmem:[#allocation4 + $0xf0] sm:$0xff] %v728
    %793 = vst [vmem:[#allocation4 + $0xf8] sm:$0xff] %v729
    %v794 = vld [vmem:[%s3] sm:$0xf]
    %v796 = vlaneseq
    %v797 = vshrl.u32 %v796, 7
    %v798 = vsub.s32 0, %v797
    %v799 = vrot.slane %v794, %v798
    %v800 = vlaneseq
    %v801 = vshrl.u32 %v800, 7
    %v802 = vsub.s32 1, %v801
    %v803 = vrot.slane %v794, %v802
    %v804 = vlaneseq
    %v805 = vshrl.u32 %v804, 7
    %v806 = vsub.s32 2, %v805
    %v807 = vrot.slane %v794, %v806
    %v808 = vlaneseq
    %v809 = vshrl.u32 %v808, 7
    %v810 = vsub.s32 3, %v809
    %v811 = vrot.slane %v794, %v810
    %v816 = vld [vmem:[#allocation2] sm:$0xff]
    %v817 = vld [vmem:[#allocation2 + $0x8] sm:$0xff]
    %v818 = vld [vmem:[#allocation3] sm:$0xff]
    %v819 = vld [vmem:[#allocation3 + $0x8] sm:$0xff]
    %v820 = vpack.c.bf16 %v817, %v816
    %v821 = vld [vmem:[#allocation4] sm:$0xff]
    %v822 = vld [vmem:[#allocation4 + $0x8] sm:$0xff]
    %v823 = vld [vmem:[#allocation4 + $0x10] sm:$0xff]
    %v824 = vld [vmem:[#allocation4 + $0x18] sm:$0xff]
    %v825 = vunpack.c.l.bf16 %v821
    %v826 = vunpack.c.h.bf16 %v821
    %v827 = vunpack.c.l.bf16 %v822
    %v828 = vunpack.c.h.bf16 %v822
    %v829 = vunpack.c.l.bf16 %v823
    %v830 = vunpack.c.h.bf16 %v823
    %v831 = vunpack.c.l.bf16 %v824
    %v832 = vunpack.c.h.bf16 %v824
    %v833 = vld [vmem:[#allocation10] sm:$0xff]
    %v834 = vld [vmem:[#allocation10 + $0x8] sm:$0xff]
    %v835 = vld [vmem:[#allocation10 + $0x10] sm:$0xff]
    %v836 = vld [vmem:[#allocation10 + $0x18] sm:$0xff]
    %v837 = vld [vmem:[#allocation10 + $0x20] sm:$0xff]
    %v838 = vld [vmem:[#allocation10 + $0x28] sm:$0xff]
    %v839 = vld [vmem:[#allocation10 + $0x30] sm:$0xff]
    %v840 = vld [vmem:[#allocation10 + $0x38] sm:$0xff]
    %v841 = vld [vmem:[#allocation10 + $0x40] sm:$0xff]
    %v842 = vld [vmem:[#allocation10 + $0x48] sm:$0xff]
    %v843 = vld [vmem:[#allocation10 + $0x50] sm:$0xff]
    %v844 = vld [vmem:[#allocation10 + $0x58] sm:$0xff]
    %v845 = vld [vmem:[#allocation10 + $0x60] sm:$0xff]
    %v846 = vld [vmem:[#allocation10 + $0x68] sm:$0xff]
    %v847 = vld [vmem:[#allocation10 + $0x70] sm:$0xff]
    %v848 = vld [vmem:[#allocation10 + $0x78] sm:$0xff]
    %v849 = vld [vmem:[#allocation10 + $0x80] sm:$0xff]
    %v850 = vld [vmem:[#allocation10 + $0x88] sm:$0xff]
    %v851 = vld [vmem:[#allocation10 + $0x90] sm:$0xff]
    %v852 = vld [vmem:[#allocation10 + $0x98] sm:$0xff]
    %v853 = vld [vmem:[#allocation10 + $0xa0] sm:$0xff]
    %v854 = vld [vmem:[#allocation10 + $0xa8] sm:$0xff]
    %v855 = vld [vmem:[#allocation10 + $0xb0] sm:$0xff]
    %v856 = vld [vmem:[#allocation10 + $0xb8] sm:$0xff]
    %v857 = vld [vmem:[#allocation10 + $0xc0] sm:$0xff]
    %v858 = vld [vmem:[#allocation10 + $0xc8] sm:$0xff]
    %v859 = vld [vmem:[#allocation10 + $0xd0] sm:$0xff]
    %v860 = vld [vmem:[#allocation10 + $0xd8] sm:$0xff]
    %v861 = vld [vmem:[#allocation10 + $0xe0] sm:$0xff]
    %v862 = vld [vmem:[#allocation10 + $0xe8] sm:$0xff]
    %v863 = vld [vmem:[#allocation10 + $0xf0] sm:$0xff]
    %v864 = vld [vmem:[#allocation10 + $0xf8] sm:$0xff]
    %v897 = vunpack.c.l.b16 %v833
    %v898 = vunpack.c.h.b16 %v833
    %v899 = vunpack.c.l.b16 %v834
    %v900 = vunpack.c.h.b16 %v834
    %v901 = vunpack.c.l.b16 %v835
    %v902 = vunpack.c.h.b16 %v835
    %v903 = vunpack.c.l.b16 %v836
    %v904 = vunpack.c.h.b16 %v836
    %v905 = vunpack.c.l.b16 %v837
    %v906 = vunpack.c.h.b16 %v837
    %v907 = vunpack.c.l.b16 %v838
    %v908 = vunpack.c.h.b16 %v838
    %v909 = vunpack.c.l.b16 %v839
    %v910 = vunpack.c.h.b16 %v839
    %v911 = vunpack.c.l.b16 %v840
    %v912 = vunpack.c.h.b16 %v840
    %v913 = vunpack.c.l.b16 %v841
    %v914 = vunpack.c.h.b16 %v841
    %v915 = vunpack.c.l.b16 %v842
    %v916 = vunpack.c.h.b16 %v842
    %v917 = vunpack.c.l.b16 %v843
    %v918 = vunpack.c.h.b16 %v843
    %v919 = vunpack.c.l.b16 %v844
    %v920 = vunpack.c.h.b16 %v844
    %v921 = vunpack.c.l.b16 %v845
    %v922 = vunpack.c.h.b16 %v845
    %v923 = vunpack.c.l.b16 %v846
    %v924 = vunpack.c.h.b16 %v846
    %v925 = vunpack.c.l.b16 %v847
    %v926 = vunpack.c.h.b16 %v847
    %v927 = vunpack.c.l.b16 %v848
    %v928 = vunpack.c.h.b16 %v848
    %v929 = vunpack.c.l.b16 %v849
    %v930 = vunpack.c.h.b16 %v849
    %v931 = vunpack.c.l.b16 %v850
    %v932 = vunpack.c.h.b16 %v850
    %v933 = vunpack.c.l.b16 %v851
    %v934 = vunpack.c.h.b16 %v851
    %v935 = vunpack.c.l.b16 %v852
    %v936 = vunpack.c.h.b16 %v852
    %v937 = vunpack.c.l.b16 %v853
    %v938 = vunpack.c.h.b16 %v853
    %v939 = vunpack.c.l.b16 %v854
    %v940 = vunpack.c.h.b16 %v854
    %v941 = vunpack.c.l.b16 %v855
    %v942 = vunpack.c.h.b16 %v855
    %v943 = vunpack.c.l.b16 %v856
    %v944 = vunpack.c.h.b16 %v856
    %v945 = vunpack.c.l.b16 %v857
    %v946 = vunpack.c.h.b16 %v857
    %v947 = vunpack.c.l.b16 %v858
    %v948 = vunpack.c.h.b16 %v858
    %v949 = vunpack.c.l.b16 %v859
    %v950 = vunpack.c.h.b16 %v859
    %v951 = vunpack.c.l.b16 %v860
    %v952 = vunpack.c.h.b16 %v860
    %v953 = vunpack.c.l.b16 %v861
    %v954 = vunpack.c.h.b16 %v861
    %v955 = vunpack.c.l.b16 %v862
    %v956 = vunpack.c.h.b16 %v862
    %v957 = vunpack.c.l.b16 %v863
    %v958 = vunpack.c.h.b16 %v863
    %v959 = vunpack.c.l.b16 %v864
    %v960 = vunpack.c.h.b16 %v864
    %v961 = vpack.c.b16 %v901, %v897
    %v962 = vpack.c.b16 %v902, %v898
    %v963 = vpack.c.b16 %v903, %v899
    %v964 = vpack.c.b16 %v904, %v900
    %v965 = vpack.c.b16 %v909, %v905
    %v966 = vpack.c.b16 %v910, %v906
    %v967 = vpack.c.b16 %v911, %v907
    %v968 = vpack.c.b16 %v912, %v908
    %v969 = vpack.c.b16 %v917, %v913
    %v970 = vpack.c.b16 %v918, %v914
    %v971 = vpack.c.b16 %v919, %v915
    %v972 = vpack.c.b16 %v920, %v916
    %v973 = vpack.c.b16 %v925, %v921
    %v974 = vpack.c.b16 %v926, %v922
    %v975 = vpack.c.b16 %v927, %v923
    %v976 = vpack.c.b16 %v928, %v924
    %v977 = vpack.c.b16 %v933, %v929
    %v978 = vpack.c.b16 %v934, %v930
    %v979 = vpack.c.b16 %v935, %v931
    %v980 = vpack.c.b16 %v936, %v932
    %v981 = vpack.c.b16 %v941, %v937
    %v982 = vpack.c.b16 %v942, %v938
    %v983 = vpack.c.b16 %v943, %v939
    %v984 = vpack.c.b16 %v944, %v940
    %v985 = vpack.c.b16 %v949, %v945
    %v986 = vpack.c.b16 %v950, %v946
    %v987 = vpack.c.b16 %v951, %v947
    %v988 = vpack.c.b16 %v952, %v948
    %v989 = vpack.c.b16 %v957, %v953
    %v990 = vpack.c.b16 %v958, %v954
    %v991 = vpack.c.b16 %v959, %v955
    %v992 = vpack.c.b16 %v960, %v956
    %1025 = vmatprep.subr.bf16.mxu0 %v990
    %1026 = vmatpush1.bf16.msra.mxu0 %v989
    %1027 = vmatprep.subr.bf16.mxu0 %v986
    %1028 = vmatpush1.bf16.msra.mxu0 %v985
    %1029 = vmatprep.subr.bf16.mxu0 %v982
    %1030 = vmatpush1.bf16.msra.mxu0 %v981
    %1031 = vmatprep.subr.bf16.mxu0 %v978
    %1032 = vmatpush1.bf16.msra.mxu0 %v977
    %1033 = vmatprep.subr.bf16.mxu0 %v974
    %1034 = vmatpush1.bf16.msra.mxu0 %v973
    %1035 = vmatprep.subr.bf16.mxu0 %v970
    %1036 = vmatpush1.bf16.msra.mxu0 %v969
    %1037 = vmatprep.subr.bf16.mxu0 %v966
    %1038 = vmatpush1.bf16.msra.mxu0 %v965
    %1039 = vmatprep.subr.bf16.mxu0 %v962
    %1040 = vmatpush1.bf16.msra.mxu0 %v961
    %1041 = vmatprep.subr.bf16.mxu0 0
    %1042 = vmatpush2.bf16.msra.mxu0 0
    %1043 = vmatprep.subr.bf16.mxu0 0
    %1044 = vmatpush2.bf16.msra.mxu0 0
    %1045 = vmatprep.subr.bf16.mxu0 0
    %1046 = vmatpush2.bf16.msra.mxu0 0
    %1047 = vmatprep.subr.bf16.mxu0 0
    %1048 = vmatpush2.bf16.msra.mxu0 0
    %1049 = vmatprep.subr.bf16.mxu0 0
    %1050 = vmatpush2.bf16.msra.mxu0 0
    %1051 = vmatprep.subr.bf16.mxu0 0
    %1052 = vmatpush2.bf16.msra.mxu0 0
    %1053 = vmatprep.subr.bf16.mxu0 0
    %1054 = vmatpush2.bf16.msra.mxu0 0
    %1055 = vmatprep.subr.bf16.mxu0 0
    %1056 = vmatpush2.bf16.msra.mxu0 0
    %1057 = vmatprep.mubr.bf16.mxu0 0
    %1058 = vmatmul.mubr.bf16.gmra.mxu0 %v820
    %v1059 = vpop.f32.mrf.mxu0
    %v1060 = vadd.f32 0.0, %v1059
    %v1061 = vpop.f32.mrf.mxu0
    %v1062 = vadd.f32 0.0, %v1061
    %v1063 = vpop.f32.mrf.mxu0
    %v1064 = vadd.f32 0.0, %v1063
    %v1065 = vpop.f32.mrf.mxu0
    %v1066 = vadd.f32 0.0, %v1065
    %1067 = vdwg.mxu0
    %1068 = vmatprep.subr.bf16.mxu0 %v992
    %1069 = vmatpush1.bf16.msra.mxu0 %v991
    %1070 = vmatprep.subr.bf16.mxu0 %v988
    %1071 = vmatpush1.bf16.msra.mxu0 %v987
    %1072 = vmatprep.subr.bf16.mxu0 %v984
    %1073 = vmatpush1.bf16.msra.mxu0 %v983
    %1074 = vmatprep.subr.bf16.mxu0 %v980
    %1075 = vmatpush1.bf16.msra.mxu0 %v979
    %1076 = vmatprep.subr.bf16.mxu0 %v976
    %1077 = vmatpush1.bf16.msra.mxu0 %v975
    %1078 = vmatprep.subr.bf16.mxu0 %v972
    %1079 = vmatpush1.bf16.msra.mxu0 %v971
    %1080 = vmatprep.subr.bf16.mxu0 %v968
    %1081 = vmatpush1.bf16.msra.mxu0 %v967
    %1082 = vmatprep.subr.bf16.mxu0 %v964
    %1083 = vmatpush1.bf16.msra.mxu0 %v963
    %1084 = vmatprep.subr.bf16.mxu0 0
    %1085 = vmatpush2.bf16.msra.mxu0 0
    %1086 = vmatprep.subr.bf16.mxu0 0
    %1087 = vmatpush2.bf16.msra.mxu0 0
    %1088 = vmatprep.subr.bf16.mxu0 0
    %1089 = vmatpush2.bf16.msra.mxu0 0
    %1090 = vmatprep.subr.bf16.mxu0 0
    %1091 = vmatpush2.bf16.msra.mxu0 0
    %1092 = vmatprep.subr.bf16.mxu0 0
    %1093 = vmatpush2.bf16.msra.mxu0 0
    %1094 = vmatprep.subr.bf16.mxu0 0
    %1095 = vmatpush2.bf16.msra.mxu0 0
    %1096 = vmatprep.subr.bf16.mxu0 0
    %1097 = vmatpush2.bf16.msra.mxu0 0
    %1098 = vmatprep.subr.bf16.mxu0 0
    %1099 = vmatpush2.bf16.msra.mxu0 0
    %1100 = vmatprep.mubr.bf16.mxu0 0
    %1101 = vmatmul.mubr.bf16.gmra.mxu0 %v820
    %v1102 = vpop.f32.mrf.mxu0
    %v1103 = vadd.f32 0.0, %v1102
    %v1104 = vpop.f32.mrf.mxu0
    %v1105 = vadd.f32 0.0, %v1104
    %v1106 = vpop.f32.mrf.mxu0
    %v1107 = vadd.f32 0.0, %v1106
    %v1108 = vpop.f32.mrf.mxu0
    %v1109 = vadd.f32 0.0, %v1108
    %1110 = vdwg.mxu0
    %v1111 = vadd.f32 %v825, %v1060
    %v1112 = vadd.f32 %v826, %v1062
    %v1113 = vadd.f32 %v827, %v1103
    %v1114 = vadd.f32 %v828, %v1105
    %v1115 = vadd.f32 %v829, %v1064
    %v1116 = vadd.f32 %v830, %v1066
    %v1117 = vadd.f32 %v831, %v1107
    %v1118 = vadd.f32 %v832, %v1109
    %v1119 = vadd.f32 %v1111, %v799
    %v1120 = vadd.f32 %v1112, %v803
    %v1121 = vadd.f32 %v1113, %v807
    %v1122 = vadd.f32 %v1114, %v811
    %v1123 = vadd.f32 %v1115, %v799
    %v1124 = vadd.f32 %v1116, %v803
    %v1125 = vadd.f32 %v1117, %v807
    %v1126 = vadd.f32 %v1118, %v811
    %v1127 = vxor.u32 %v1119, 2147483648
    %v1128 = vxor.u32 %v1123, 2147483648
    %v1129 = vmul.f32 %v1127, 1.442695
    %v1130 = vpow.pop %v1129
    %v1131 = vmul.f32 %v1128, 1.442695
    %v1132 = vpow.pop %v1131
    %v1133 = vadd.f32 %v1130, 1.0
    %v1134 = vadd.f32 %v1132, 1.0
    %v1135 = vrcp.pop %v1133
    %v1136 = vmul.f32 1.0, %v1135
    %v1137 = vrcp.pop %v1134
    %v1138 = vmul.f32 1.0, %v1137
    %v1139 = vxor.u32 %v1120, 2147483648
    %v1140 = vxor.u32 %v1124, 2147483648
    %v1141 = vmul.f32 %v1139, 1.442695
    %v1142 = vpow.pop %v1141
    %v1143 = vmul.f32 %v1140, 1.442695
    %v1144 = vpow.pop %v1143
    %v1145 = vadd.f32 %v1142, 1.0
    %v1146 = vadd.f32 %v1144, 1.0
    %v1147 = vrcp.pop %v1145
    %v1148 = vmul.f32 1.0, %v1147
    %v1149 = vrcp.pop %v1146
    %v1150 = vmul.f32 1.0, %v1149
    %v1151 = vtanh.pop %v1121
    %v1152 = vtanh.pop %v1125
    %v1153 = vmul.f32 %v1148, %v818
    %v1154 = vmul.f32 %v1150, %v819
    %v1155 = vmul.f32 %v1136, %v1151
    %v1156 = vmul.f32 %v1138, %v1152
    %v1157 = vadd.f32 %v1153, %v1155
    %v1158 = vadd.f32 %v1154, %v1156
    %v1159 = vxor.u32 %v1122, 2147483648
    %v1160 = vxor.u32 %v1126, 2147483648
    %v1161 = vmul.f32 %v1159, 1.442695
    %v1162 = vpow.pop %v1161
    %v1163 = vmul.f32 %v1160, 1.442695
    %v1164 = vpow.pop %v1163
    %v1165 = vadd.f32 %v1162, 1.0
    %v1166 = vadd.f32 %v1164, 1.0
    %v1167 = vrcp.pop %v1165
    %v1168 = vmul.f32 1.0, %v1167
    %v1169 = vrcp.pop %v1166
    %v1170 = vmul.f32 1.0, %v1169
    %v1171 = vtanh.pop %v1157
    %v1172 = vtanh.pop %v1158
    %v1173 = vmul.f32 %v1168, %v1171
    %v1174 = vmul.f32 %v1170, %v1172
    %v1175 = vpack.c.bf16 %v1174, %v1173
    %s1176 = scalar_lea.vmem [#allocation4], 32
    %v1177 = vld [vmem:[%s1176] sm:$0xff]
    %v1178 = vld [vmem:[%s1176 + $0x8] sm:$0xff]
    %v1179 = vld [vmem:[%s1176 + $0x10] sm:$0xff]
    %v1180 = vld [vmem:[%s1176 + $0x18] sm:$0xff]
    %v1181 = vunpack.c.l.bf16 %v1177
    %v1182 = vunpack.c.h.bf16 %v1177
    %v1183 = vunpack.c.l.bf16 %v1178
    %v1184 = vunpack.c.h.bf16 %v1178
    %v1185 = vunpack.c.l.bf16 %v1179
    %v1186 = vunpack.c.h.bf16 %v1179
    %v1187 = vunpack.c.l.bf16 %v1180
    %v1188 = vunpack.c.h.bf16 %v1180
    %1189 = vmatprep.subr.bf16.mxu0 %v990
    %1190 = vmatpush1.bf16.msra.mxu0 %v989
    %1191 = vmatprep.subr.bf16.mxu0 %v986
    %1192 = vmatpush1.bf16.msra.mxu0 %v985
    %1193 = vmatprep.subr.bf16.mxu0 %v982
    %1194 = vmatpush1.bf16.msra.mxu0 %v981
    %1195 = vmatprep.subr.bf16.mxu0 %v978
    %1196 = vmatpush1.bf16.msra.mxu0 %v977
    %1197 = vmatprep.subr.bf16.mxu0 %v974
    %1198 = vmatpush1.bf16.msra.mxu0 %v973
    %1199 = vmatprep.subr.bf16.mxu0 %v970
    %1200 = vmatpush1.bf16.msra.mxu0 %v969
    %1201 = vmatprep.subr.bf16.mxu0 %v966
    %1202 = vmatpush1.bf16.msra.mxu0 %v965
    %1203 = vmatprep.subr.bf16.mxu0 %v962
    %1204 = vmatpush1.bf16.msra.mxu0 %v961
    %1205 = vmatprep.subr.bf16.mxu0 0
    %1206 = vmatpush2.bf16.msra.mxu0 0
    %1207 = vmatprep.subr.bf16.mxu0 0
    %1208 = vmatpush2.bf16.msra.mxu0 0
    %1209 = vmatprep.subr.bf16.mxu0 0
    %1210 = vmatpush2.bf16.msra.mxu0 0
    %1211 = vmatprep.subr.bf16.mxu0 0
    %1212 = vmatpush2.bf16.msra.mxu0 0
    %1213 = vmatprep.subr.bf16.mxu0 0
    %1214 = vmatpush2.bf16.msra.mxu0 0
    %1215 = vmatprep.subr.bf16.mxu0 0
    %1216 = vmatpush2.bf16.msra.mxu0 0
    %1217 = vmatprep.subr.bf16.mxu0 0
    %1218 = vmatpush2.bf16.msra.mxu0 0
    %1219 = vmatprep.subr.bf16.mxu0 0
    %1220 = vmatpush2.bf16.msra.mxu0 0
    %1221 = vmatprep.mubr.bf16.mxu0 0
    %1222 = vmatmul.mubr.bf16.gmra.mxu0 %v1175
    %v1223 = vpop.f32.mrf.mxu0
    %v1224 = vadd.f32 0.0, %v1223
    %v1225 = vpop.f32.mrf.mxu0
    %v1226 = vadd.f32 0.0, %v1225
    %v1227 = vpop.f32.mrf.mxu0
    %v1228 = vadd.f32 0.0, %v1227
    %v1229 = vpop.f32.mrf.mxu0
    %v1230 = vadd.f32 0.0, %v1229
    %1231 = vdwg.mxu0
    %1232 = vmatprep.subr.bf16.mxu0 %v992
    %1233 = vmatpush1.bf16.msra.mxu0 %v991
    %1234 = vmatprep.subr.bf16.mxu0 %v988
    %1235 = vmatpush1.bf16.msra.mxu0 %v987
    %1236 = vmatprep.subr.bf16.mxu0 %v984
    %1237 = vmatpush1.bf16.msra.mxu0 %v983
    %1238 = vmatprep.subr.bf16.mxu0 %v980
    %1239 = vmatpush1.bf16.msra.mxu0 %v979
    %1240 = vmatprep.subr.bf16.mxu0 %v976
    %1241 = vmatpush1.bf16.msra.mxu0 %v975
    %1242 = vmatprep.subr.bf16.mxu0 %v972
    %1243 = vmatpush1.bf16.msra.mxu0 %v971
    %1244 = vmatprep.subr.bf16.mxu0 %v968
    %1245 = vmatpush1.bf16.msra.mxu0 %v967
    %1246 = vmatprep.subr.bf16.mxu0 %v964
    %1247 = vmatpush1.bf16.msra.mxu0 %v963
    %1248 = vmatprep.subr.bf16.mxu0 0
    %1249 = vmatpush2.bf16.msra.mxu0 0
    %1250 = vmatprep.subr.bf16.mxu0 0
    %1251 = vmatpush2.bf16.msra.mxu0 0
    %1252 = vmatprep.subr.bf16.mxu0 0
    %1253 = vmatpush2.bf16.msra.mxu0 0
    %1254 = vmatprep.subr.bf16.mxu0 0
    %1255 = vmatpush2.bf16.msra.mxu0 0
    %1256 = vmatprep.subr.bf16.mxu0 0
    %1257 = vmatpush2.bf16.msra.mxu0 0
    %1258 = vmatprep.subr.bf16.mxu0 0
    %1259 = vmatpush2.bf16.msra.mxu0 0
    %1260 = vmatprep.subr.bf16.mxu0 0
    %1261 = vmatpush2.bf16.msra.mxu0 0
    %1262 = vmatprep.subr.bf16.mxu0 0
    %1263 = vmatpush2.bf16.msra.mxu0 0
    %1264 = vmatprep.mubr.bf16.mxu0 0
    %1265 = vmatmul.mubr.bf16.gmra.mxu0 %v1175
    %v1266 = vpop.f32.mrf.mxu0
    %v1267 = vadd.f32 0.0, %v1266
    %v1268 = vpop.f32.mrf.mxu0
    %v1269 = vadd.f32 0.0, %v1268
    %v1270 = vpop.f32.mrf.mxu0
    %v1271 = vadd.f32 0.0, %v1270
    %v1272 = vpop.f32.mrf.mxu0
    %v1273 = vadd.f32 0.0, %v1272
    %1274 = vdwg.mxu0
    %v1275 = vadd.f32 %v1181, %v1224
    %v1276 = vadd.f32 %v1182, %v1226
    %v1277 = vadd.f32 %v1183, %v1267
    %v1278 = vadd.f32 %v1184, %v1269
    %v1279 = vadd.f32 %v1185, %v1228
    %v1280 = vadd.f32 %v1186, %v1230
    %v1281 = vadd.f32 %v1187, %v1271
    %v1282 = vadd.f32 %v1188, %v1273
    %v1283 = vadd.f32 %v1275, %v799
    %v1284 = vadd.f32 %v1276, %v803
    %v1285 = vadd.f32 %v1277, %v807
    %v1286 = vadd.f32 %v1278, %v811
    %v1287 = vadd.f32 %v1279, %v799
    %v1288 = vadd.f32 %v1280, %v803
    %v1289 = vadd.f32 %v1281, %v807
    %v1290 = vadd.f32 %v1282, %v811
    %v1291 = vxor.u32 %v1283, 2147483648
    %v1292 = vxor.u32 %v1287, 2147483648
    %v1293 = vmul.f32 %v1291, 1.442695
    %v1294 = vpow.pop %v1293
    %v1295 = vmul.f32 %v1292, 1.442695
    %v1296 = vpow.pop %v1295
    %v1297 = vadd.f32 %v1294, 1.0
    %v1298 = vadd.f32 %v1296, 1.0
    %v1299 = vrcp.pop %v1297
    %v1300 = vmul.f32 1.0, %v1299
    %v1301 = vrcp.pop %v1298
    %v1302 = vmul.f32 1.0, %v1301
    %v1303 = vxor.u32 %v1284, 2147483648
    %v1304 = vxor.u32 %v1288, 2147483648
    %v1305 = vmul.f32 %v1303, 1.442695
    %v1306 = vpow.pop %v1305
    %v1307 = vmul.f32 %v1304, 1.442695
    %v1308 = vpow.pop %v1307
    %v1309 = vadd.f32 %v1306, 1.0
    %v1310 = vadd.f32 %v1308, 1.0
    %v1311 = vrcp.pop %v1309
    %v1312 = vmul.f32 1.0, %v1311
    %v1313 = vrcp.pop %v1310
    %v1314 = vmul.f32 1.0, %v1313
    %v1315 = vtanh.pop %v1285
    %v1316 = vtanh.pop %v1289
    %v1317 = vmul.f32 %v1312, %v1157
    %v1318 = vmul.f32 %v1314, %v1158
    %v1319 = vmul.f32 %v1300, %v1315
    %v1320 = vmul.f32 %v1302, %v1316
    %v1321 = vadd.f32 %v1317, %v1319
    %v1322 = vadd.f32 %v1318, %v1320
    %v1323 = vxor.u32 %v1286, 2147483648
    %v1324 = vxor.u32 %v1290, 2147483648
    %v1325 = vmul.f32 %v1323, 1.442695
    %v1326 = vpow.pop %v1325
    %v1327 = vmul.f32 %v1324, 1.442695
    %v1328 = vpow.pop %v1327
    %v1329 = vadd.f32 %v1326, 1.0
    %v1330 = vadd.f32 %v1328, 1.0
    %v1331 = vrcp.pop %v1329
    %v1332 = vmul.f32 1.0, %v1331
    %v1333 = vrcp.pop %v1330
    %v1334 = vmul.f32 1.0, %v1333
    %v1335 = vtanh.pop %v1321
    %v1336 = vtanh.pop %v1322
    %v1337 = vmul.f32 %v1332, %v1335
    %v1338 = vmul.f32 %v1334, %v1336
    %v1339 = vpack.c.bf16 %v1338, %v1337
    %s1340 = scalar_lea.vmem [#allocation4], 64
    %v1341 = vld [vmem:[%s1340] sm:$0xff]
    %v1342 = vld [vmem:[%s1340 + $0x8] sm:$0xff]
    %v1343 = vld [vmem:[%s1340 + $0x10] sm:$0xff]
    %v1344 = vld [vmem:[%s1340 + $0x18] sm:$0xff]
    %v1345 = vunpack.c.l.bf16 %v1341
    %v1346 = vunpack.c.h.bf16 %v1341
    %v1347 = vunpack.c.l.bf16 %v1342
    %v1348 = vunpack.c.h.bf16 %v1342
    %v1349 = vunpack.c.l.bf16 %v1343
    %v1350 = vunpack.c.h.bf16 %v1343
    %v1351 = vunpack.c.l.bf16 %v1344
    %v1352 = vunpack.c.h.bf16 %v1344
    %1353 = vmatprep.subr.bf16.mxu0 %v990
    %1354 = vmatpush1.bf16.msra.mxu0 %v989
    %1355 = vmatprep.subr.bf16.mxu0 %v986
    %1356 = vmatpush1.bf16.msra.mxu0 %v985
    %1357 = vmatprep.subr.bf16.mxu0 %v982
    %1358 = vmatpush1.bf16.msra.mxu0 %v981
    %1359 = vmatprep.subr.bf16.mxu0 %v978
    %1360 = vmatpush1.bf16.msra.mxu0 %v977
    %1361 = vmatprep.subr.bf16.mxu0 %v974
    %1362 = vmatpush1.bf16.msra.mxu0 %v973
    %1363 = vmatprep.subr.bf16.mxu0 %v970
    %1364 = vmatpush1.bf16.msra.mxu0 %v969
    %1365 = vmatprep.subr.bf16.mxu0 %v966
    %1366 = vmatpush1.bf16.msra.mxu0 %v965
    %1367 = vmatprep.subr.bf16.mxu0 %v962
    %1368 = vmatpush1.bf16.msra.mxu0 %v961
    %1369 = vmatprep.subr.bf16.mxu0 0
    %1370 = vmatpush2.bf16.msra.mxu0 0
    %1371 = vmatprep.subr.bf16.mxu0 0
    %1372 = vmatpush2.bf16.msra.mxu0 0
    %1373 = vmatprep.subr.bf16.mxu0 0
    %1374 = vmatpush2.bf16.msra.mxu0 0
    %1375 = vmatprep.subr.bf16.mxu0 0
    %1376 = vmatpush2.bf16.msra.mxu0 0
    %1377 = vmatprep.subr.bf16.mxu0 0
    %1378 = vmatpush2.bf16.msra.mxu0 0
    %1379 = vmatprep.subr.bf16.mxu0 0
    %1380 = vmatpush2.bf16.msra.mxu0 0
    %1381 = vmatprep.subr.bf16.mxu0 0
    %1382 = vmatpush2.bf16.msra.mxu0 0
    %1383 = vmatprep.subr.bf16.mxu0 0
    %1384 = vmatpush2.bf16.msra.mxu0 0
    %1385 = vmatprep.mubr.bf16.mxu0 0
    %1386 = vmatmul.mubr.bf16.gmra.mxu0 %v1339
    %v1387 = vpop.f32.mrf.mxu0
    %v1388 = vadd.f32 0.0, %v1387
    %v1389 = vpop.f32.mrf.mxu0
    %v1390 = vadd.f32 0.0, %v1389
    %v1391 = vpop.f32.mrf.mxu0
    %v1392 = vadd.f32 0.0, %v1391
    %v1393 = vpop.f32.mrf.mxu0
    %v1394 = vadd.f32 0.0, %v1393
    %1395 = vdwg.mxu0
    %1396 = vmatprep.subr.bf16.mxu0 %v992
    %1397 = vmatpush1.bf16.msra.mxu0 %v991
    %1398 = vmatprep.subr.bf16.mxu0 %v988
    %1399 = vmatpush1.bf16.msra.mxu0 %v987
    %1400 = vmatprep.subr.bf16.mxu0 %v984
    %1401 = vmatpush1.bf16.msra.mxu0 %v983
    %1402 = vmatprep.subr.bf16.mxu0 %v980
    %1403 = vmatpush1.bf16.msra.mxu0 %v979
    %1404 = vmatprep.subr.bf16.mxu0 %v976
    %1405 = vmatpush1.bf16.msra.mxu0 %v975
    %1406 = vmatprep.subr.bf16.mxu0 %v972
    %1407 = vmatpush1.bf16.msra.mxu0 %v971
    %1408 = vmatprep.subr.bf16.mxu0 %v968
    %1409 = vmatpush1.bf16.msra.mxu0 %v967
    %1410 = vmatprep.subr.bf16.mxu0 %v964
    %1411 = vmatpush1.bf16.msra.mxu0 %v963
    %1412 = vmatprep.subr.bf16.mxu0 0
    %1413 = vmatpush2.bf16.msra.mxu0 0
    %1414 = vmatprep.subr.bf16.mxu0 0
    %1415 = vmatpush2.bf16.msra.mxu0 0
    %1416 = vmatprep.subr.bf16.mxu0 0
    %1417 = vmatpush2.bf16.msra.mxu0 0
    %1418 = vmatprep.subr.bf16.mxu0 0
    %1419 = vmatpush2.bf16.msra.mxu0 0
    %1420 = vmatprep.subr.bf16.mxu0 0
    %1421 = vmatpush2.bf16.msra.mxu0 0
    %1422 = vmatprep.subr.bf16.mxu0 0
    %1423 = vmatpush2.bf16.msra.mxu0 0
    %1424 = vmatprep.subr.bf16.mxu0 0
    %1425 = vmatpush2.bf16.msra.mxu0 0
    %1426 = vmatprep.subr.bf16.mxu0 0
    %1427 = vmatpush2.bf16.msra.mxu0 0
    %1428 = vmatprep.mubr.bf16.mxu0 0
    %1429 = vmatmul.mubr.bf16.gmra.mxu0 %v1339
    %v1430 = vpop.f32.mrf.mxu0
    %v1431 = vadd.f32 0.0, %v1430
    %v1432 = vpop.f32.mrf.mxu0
    %v1433 = vadd.f32 0.0, %v1432
    %v1434 = vpop.f32.mrf.mxu0
    %v1435 = vadd.f32 0.0, %v1434
    %v1436 = vpop.f32.mrf.mxu0
    %v1437 = vadd.f32 0.0, %v1436
    %1438 = vdwg.mxu0
    %v1439 = vadd.f32 %v1345, %v1388
    %v1440 = vadd.f32 %v1346, %v1390
    %v1441 = vadd.f32 %v1347, %v1431
    %v1442 = vadd.f32 %v1348, %v1433
    %v1443 = vadd.f32 %v1349, %v1392
    %v1444 = vadd.f32 %v1350, %v1394
    %v1445 = vadd.f32 %v1351, %v1435
    %v1446 = vadd.f32 %v1352, %v1437
    %v1447 = vadd.f32 %v1439, %v799
    %v1448 = vadd.f32 %v1440, %v803
    %v1449 = vadd.f32 %v1441, %v807
    %v1450 = vadd.f32 %v1442, %v811
    %v1451 = vadd.f32 %v1443, %v799
    %v1452 = vadd.f32 %v1444, %v803
    %v1453 = vadd.f32 %v1445, %v807
    %v1454 = vadd.f32 %v1446, %v811
    %v1455 = vxor.u32 %v1447, 2147483648
    %v1456 = vxor.u32 %v1451, 2147483648
    %v1457 = vmul.f32 %v1455, 1.442695
    %v1458 = vpow.pop %v1457
    %v1459 = vmul.f32 %v1456, 1.442695
    %v1460 = vpow.pop %v1459
    %v1461 = vadd.f32 %v1458, 1.0
    %v1462 = vadd.f32 %v1460, 1.0
    %v1463 = vrcp.pop %v1461
    %v1464 = vmul.f32 1.0, %v1463
    %v1465 = vrcp.pop %v1462
    %v1466 = vmul.f32 1.0, %v1465
    %v1467 = vxor.u32 %v1448, 2147483648
    %v1468 = vxor.u32 %v1452, 2147483648
    %v1469 = vmul.f32 %v1467, 1.442695
    %v1470 = vpow.pop %v1469
    %v1471 = vmul.f32 %v1468, 1.442695
    %v1472 = vpow.pop %v1471
    %v1473 = vadd.f32 %v1470, 1.0
    %v1474 = vadd.f32 %v1472, 1.0
    %v1475 = vrcp.pop %v1473
    %v1476 = vmul.f32 1.0, %v1475
    %v1477 = vrcp.pop %v1474
    %v1478 = vmul.f32 1.0, %v1477
    %v1479 = vtanh.pop %v1449
    %v1480 = vtanh.pop %v1453
    %v1481 = vmul.f32 %v1476, %v1321
    %v1482 = vmul.f32 %v1478, %v1322
    %v1483 = vmul.f32 %v1464, %v1479
    %v1484 = vmul.f32 %v1466, %v1480
    %v1485 = vadd.f32 %v1481, %v1483
    %v1486 = vadd.f32 %v1482, %v1484
    %v1487 = vxor.u32 %v1450, 2147483648
    %v1488 = vxor.u32 %v1454, 2147483648
    %v1489 = vmul.f32 %v1487, 1.442695
    %v1490 = vpow.pop %v1489
    %v1491 = vmul.f32 %v1488, 1.442695
    %v1492 = vpow.pop %v1491
    %v1493 = vadd.f32 %v1490, 1.0
    %v1494 = vadd.f32 %v1492, 1.0
    %v1495 = vrcp.pop %v1493
    %v1496 = vmul.f32 1.0, %v1495
    %v1497 = vrcp.pop %v1494
    %v1498 = vmul.f32 1.0, %v1497
    %v1499 = vtanh.pop %v1485
    %v1500 = vtanh.pop %v1486
    %v1501 = vmul.f32 %v1496, %v1499
    %v1502 = vmul.f32 %v1498, %v1500
    %v1503 = vpack.c.bf16 %v1502, %v1501
    %s1504 = scalar_lea.vmem [#allocation4], 96
    %v1505 = vld [vmem:[%s1504] sm:$0xff]
    %v1506 = vld [vmem:[%s1504 + $0x8] sm:$0xff]
    %v1507 = vld [vmem:[%s1504 + $0x10] sm:$0xff]
    %v1508 = vld [vmem:[%s1504 + $0x18] sm:$0xff]
    %v1509 = vunpack.c.l.bf16 %v1505
    %v1510 = vunpack.c.h.bf16 %v1505
    %v1511 = vunpack.c.l.bf16 %v1506
    %v1512 = vunpack.c.h.bf16 %v1506
    %v1513 = vunpack.c.l.bf16 %v1507
    %v1514 = vunpack.c.h.bf16 %v1507
    %v1515 = vunpack.c.l.bf16 %v1508
    %v1516 = vunpack.c.h.bf16 %v1508
    %1517 = vmatprep.subr.bf16.mxu0 %v990
    %1518 = vmatpush1.bf16.msra.mxu0 %v989
    %1519 = vmatprep.subr.bf16.mxu0 %v986
    %1520 = vmatpush1.bf16.msra.mxu0 %v985
    %1521 = vmatprep.subr.bf16.mxu0 %v982
    %1522 = vmatpush1.bf16.msra.mxu0 %v981
    %1523 = vmatprep.subr.bf16.mxu0 %v978
    %1524 = vmatpush1.bf16.msra.mxu0 %v977
    %1525 = vmatprep.subr.bf16.mxu0 %v974
    %1526 = vmatpush1.bf16.msra.mxu0 %v973
    %1527 = vmatprep.subr.bf16.mxu0 %v970
    %1528 = vmatpush1.bf16.msra.mxu0 %v969
    %1529 = vmatprep.subr.bf16.mxu0 %v966
    %1530 = vmatpush1.bf16.msra.mxu0 %v965
    %1531 = vmatprep.subr.bf16.mxu0 %v962
    %1532 = vmatpush1.bf16.msra.mxu0 %v961
    %1533 = vmatprep.subr.bf16.mxu0 0
    %1534 = vmatpush2.bf16.msra.mxu0 0
    %1535 = vmatprep.subr.bf16.mxu0 0
    %1536 = vmatpush2.bf16.msra.mxu0 0
    %1537 = vmatprep.subr.bf16.mxu0 0
    %1538 = vmatpush2.bf16.msra.mxu0 0
    %1539 = vmatprep.subr.bf16.mxu0 0
    %1540 = vmatpush2.bf16.msra.mxu0 0
    %1541 = vmatprep.subr.bf16.mxu0 0
    %1542 = vmatpush2.bf16.msra.mxu0 0
    %1543 = vmatprep.subr.bf16.mxu0 0
    %1544 = vmatpush2.bf16.msra.mxu0 0
    %1545 = vmatprep.subr.bf16.mxu0 0
    %1546 = vmatpush2.bf16.msra.mxu0 0
    %1547 = vmatprep.subr.bf16.mxu0 0
    %1548 = vmatpush2.bf16.msra.mxu0 0
    %1549 = vmatprep.mubr.bf16.mxu0 0
    %1550 = vmatmul.mubr.bf16.gmra.mxu0 %v1503
    %v1551 = vpop.f32.mrf.mxu0
    %v1552 = vadd.f32 0.0, %v1551
    %v1553 = vpop.f32.mrf.mxu0
    %v1554 = vadd.f32 0.0, %v1553
    %v1555 = vpop.f32.mrf.mxu0
    %v1556 = vadd.f32 0.0, %v1555
    %v1557 = vpop.f32.mrf.mxu0
    %v1558 = vadd.f32 0.0, %v1557
    %1559 = vdwg.mxu0
    %1560 = vmatprep.subr.bf16.mxu0 %v992
    %1561 = vmatpush1.bf16.msra.mxu0 %v991
    %1562 = vmatprep.subr.bf16.mxu0 %v988
    %1563 = vmatpush1.bf16.msra.mxu0 %v987
    %1564 = vmatprep.subr.bf16.mxu0 %v984
    %1565 = vmatpush1.bf16.msra.mxu0 %v983
    %1566 = vmatprep.subr.bf16.mxu0 %v980
    %1567 = vmatpush1.bf16.msra.mxu0 %v979
    %1568 = vmatprep.subr.bf16.mxu0 %v976
    %1569 = vmatpush1.bf16.msra.mxu0 %v975
    %1570 = vmatprep.subr.bf16.mxu0 %v972
    %1571 = vmatpush1.bf16.msra.mxu0 %v971
    %1572 = vmatprep.subr.bf16.mxu0 %v968
    %1573 = vmatpush1.bf16.msra.mxu0 %v967
    %1574 = vmatprep.subr.bf16.mxu0 %v964
    %1575 = vmatpush1.bf16.msra.mxu0 %v963
    %1576 = vmatprep.subr.bf16.mxu0 0
    %1577 = vmatpush2.bf16.msra.mxu0 0
    %1578 = vmatprep.subr.bf16.mxu0 0
    %1579 = vmatpush2.bf16.msra.mxu0 0
    %1580 = vmatprep.subr.bf16.mxu0 0
    %1581 = vmatpush2.bf16.msra.mxu0 0
    %1582 = vmatprep.subr.bf16.mxu0 0
    %1583 = vmatpush2.bf16.msra.mxu0 0
    %1584 = vmatprep.subr.bf16.mxu0 0
    %1585 = vmatpush2.bf16.msra.mxu0 0
    %1586 = vmatprep.subr.bf16.mxu0 0
    %1587 = vmatpush2.bf16.msra.mxu0 0
    %1588 = vmatprep.subr.bf16.mxu0 0
    %1589 = vmatpush2.bf16.msra.mxu0 0
    %1590 = vmatprep.subr.bf16.mxu0 0
    %1591 = vmatpush2.bf16.msra.mxu0 0
    %1592 = vmatprep.mubr.bf16.mxu0 0
    %1593 = vmatmul.mubr.bf16.gmra.mxu0 %v1503
    %v1594 = vpop.f32.mrf.mxu0
    %v1595 = vadd.f32 0.0, %v1594
    %v1596 = vpop.f32.mrf.mxu0
    %v1597 = vadd.f32 0.0, %v1596
    %v1598 = vpop.f32.mrf.mxu0
    %v1599 = vadd.f32 0.0, %v1598
    %v1600 = vpop.f32.mrf.mxu0
    %v1601 = vadd.f32 0.0, %v1600
    %1602 = vdwg.mxu0
    %v1603 = vadd.f32 %v1509, %v1552
    %v1604 = vadd.f32 %v1510, %v1554
    %v1605 = vadd.f32 %v1511, %v1595
    %v1606 = vadd.f32 %v1512, %v1597
    %v1607 = vadd.f32 %v1513, %v1556
    %v1608 = vadd.f32 %v1514, %v1558
    %v1609 = vadd.f32 %v1515, %v1599
    %v1610 = vadd.f32 %v1516, %v1601
    %v1611 = vadd.f32 %v1603, %v799
    %v1612 = vadd.f32 %v1604, %v803
    %v1613 = vadd.f32 %v1605, %v807
    %v1614 = vadd.f32 %v1606, %v811
    %v1615 = vadd.f32 %v1607, %v799
    %v1616 = vadd.f32 %v1608, %v803
    %v1617 = vadd.f32 %v1609, %v807
    %v1618 = vadd.f32 %v1610, %v811
    %v1619 = vxor.u32 %v1611, 2147483648
    %v1620 = vxor.u32 %v1615, 2147483648
    %v1621 = vmul.f32 %v1619, 1.442695
    %v1622 = vpow.pop %v1621
    %v1623 = vmul.f32 %v1620, 1.442695
    %v1624 = vpow.pop %v1623
    %v1625 = vadd.f32 %v1622, 1.0
    %v1626 = vadd.f32 %v1624, 1.0
    %v1627 = vrcp.pop %v1625
    %v1628 = vmul.f32 1.0, %v1627
    %v1629 = vrcp.pop %v1626
    %v1630 = vmul.f32 1.0, %v1629
    %v1631 = vxor.u32 %v1612, 2147483648
    %v1632 = vxor.u32 %v1616, 2147483648
    %v1633 = vmul.f32 %v1631, 1.442695
    %v1634 = vpow.pop %v1633
    %v1635 = vmul.f32 %v1632, 1.442695
    %v1636 = vpow.pop %v1635
    %v1637 = vadd.f32 %v1634, 1.0
    %v1638 = vadd.f32 %v1636, 1.0
    %v1639 = vrcp.pop %v1637
    %v1640 = vmul.f32 1.0, %v1639
    %v1641 = vrcp.pop %v1638
    %v1642 = vmul.f32 1.0, %v1641
    %v1643 = vtanh.pop %v1613
    %v1644 = vtanh.pop %v1617
    %v1645 = vmul.f32 %v1640, %v1485
    %v1646 = vmul.f32 %v1642, %v1486
    %v1647 = vmul.f32 %v1628, %v1643
    %v1648 = vmul.f32 %v1630, %v1644
    %v1649 = vadd.f32 %v1645, %v1647
    %v1650 = vadd.f32 %v1646, %v1648
    %v1651 = vxor.u32 %v1614, 2147483648
    %v1652 = vxor.u32 %v1618, 2147483648
    %v1653 = vmul.f32 %v1651, 1.442695
    %v1654 = vpow.pop %v1653
    %v1655 = vmul.f32 %v1652, 1.442695
    %v1656 = vpow.pop %v1655
    %v1657 = vadd.f32 %v1654, 1.0
    %v1658 = vadd.f32 %v1656, 1.0
    %v1659 = vrcp.pop %v1657
    %v1660 = vmul.f32 1.0, %v1659
    %v1661 = vrcp.pop %v1658
    %v1662 = vmul.f32 1.0, %v1661
    %v1663 = vtanh.pop %v1649
    %v1664 = vtanh.pop %v1650
    %v1665 = vmul.f32 %v1660, %v1663
    %v1666 = vmul.f32 %v1662, %v1664
    %v1667 = vpack.c.bf16 %v1666, %v1665
    %s1668 = scalar_lea.vmem [#allocation4], 128
    %v1669 = vld [vmem:[%s1668] sm:$0xff]
    %v1670 = vld [vmem:[%s1668 + $0x8] sm:$0xff]
    %v1671 = vld [vmem:[%s1668 + $0x10] sm:$0xff]
    %v1672 = vld [vmem:[%s1668 + $0x18] sm:$0xff]
    %v1673 = vunpack.c.l.bf16 %v1669
    %v1674 = vunpack.c.h.bf16 %v1669
    %v1675 = vunpack.c.l.bf16 %v1670
    %v1676 = vunpack.c.h.bf16 %v1670
    %v1677 = vunpack.c.l.bf16 %v1671
    %v1678 = vunpack.c.h.bf16 %v1671
    %v1679 = vunpack.c.l.bf16 %v1672
    %v1680 = vunpack.c.h.bf16 %v1672
    %1681 = vmatprep.subr.bf16.mxu0 %v990
    %1682 = vmatpush1.bf16.msra.mxu0 %v989
    %1683 = vmatprep.subr.bf16.mxu0 %v986
    %1684 = vmatpush1.bf16.msra.mxu0 %v985
    %1685 = vmatprep.subr.bf16.mxu0 %v982
    %1686 = vmatpush1.bf16.msra.mxu0 %v981
    %1687 = vmatprep.subr.bf16.mxu0 %v978
    %1688 = vmatpush1.bf16.msra.mxu0 %v977
    %1689 = vmatprep.subr.bf16.mxu0 %v974
    %1690 = vmatpush1.bf16.msra.mxu0 %v973
    %1691 = vmatprep.subr.bf16.mxu0 %v970
    %1692 = vmatpush1.bf16.msra.mxu0 %v969
    %1693 = vmatprep.subr.bf16.mxu0 %v966
    %1694 = vmatpush1.bf16.msra.mxu0 %v965
    %1695 = vmatprep.subr.bf16.mxu0 %v962
    %1696 = vmatpush1.bf16.msra.mxu0 %v961
    %1697 = vmatprep.subr.bf16.mxu0 0
    %1698 = vmatpush2.bf16.msra.mxu0 0
    %1699 = vmatprep.subr.bf16.mxu0 0
    %1700 = vmatpush2.bf16.msra.mxu0 0
    %1701 = vmatprep.subr.bf16.mxu0 0
    %1702 = vmatpush2.bf16.msra.mxu0 0
    %1703 = vmatprep.subr.bf16.mxu0 0
    %1704 = vmatpush2.bf16.msra.mxu0 0
    %1705 = vmatprep.subr.bf16.mxu0 0
    %1706 = vmatpush2.bf16.msra.mxu0 0
    %1707 = vmatprep.subr.bf16.mxu0 0
    %1708 = vmatpush2.bf16.msra.mxu0 0
    %1709 = vmatprep.subr.bf16.mxu0 0
    %1710 = vmatpush2.bf16.msra.mxu0 0
    %1711 = vmatprep.subr.bf16.mxu0 0
    %1712 = vmatpush2.bf16.msra.mxu0 0
    %1713 = vmatprep.mubr.bf16.mxu0 0
    %1714 = vmatmul.mubr.bf16.gmra.mxu0 %v1667
    %v1715 = vpop.f32.mrf.mxu0
    %v1716 = vadd.f32 0.0, %v1715
    %v1717 = vpop.f32.mrf.mxu0
    %v1718 = vadd.f32 0.0, %v1717
    %v1719 = vpop.f32.mrf.mxu0
    %v1720 = vadd.f32 0.0, %v1719
    %v1721 = vpop.f32.mrf.mxu0
    %v1722 = vadd.f32 0.0, %v1721
    %1723 = vdwg.mxu0
    %1724 = vmatprep.subr.bf16.mxu0 %v992
    %1725 = vmatpush1.bf16.msra.mxu0 %v991
    %1726 = vmatprep.subr.bf16.mxu0 %v988
    %1727 = vmatpush1.bf16.msra.mxu0 %v987
    %1728 = vmatprep.subr.bf16.mxu0 %v984
    %1729 = vmatpush1.bf16.msra.mxu0 %v983
    %1730 = vmatprep.subr.bf16.mxu0 %v980
    %1731 = vmatpush1.bf16.msra.mxu0 %v979
    %1732 = vmatprep.subr.bf16.mxu0 %v976
    %1733 = vmatpush1.bf16.msra.mxu0 %v975
    %1734 = vmatprep.subr.bf16.mxu0 %v972
    %1735 = vmatpush1.bf16.msra.mxu0 %v971
    %1736 = vmatprep.subr.bf16.mxu0 %v968
    %1737 = vmatpush1.bf16.msra.mxu0 %v967
    %1738 = vmatprep.subr.bf16.mxu0 %v964
    %1739 = vmatpush1.bf16.msra.mxu0 %v963
    %1740 = vmatprep.subr.bf16.mxu0 0
    %1741 = vmatpush2.bf16.msra.mxu0 0
    %1742 = vmatprep.subr.bf16.mxu0 0
    %1743 = vmatpush2.bf16.msra.mxu0 0
    %1744 = vmatprep.subr.bf16.mxu0 0
    %1745 = vmatpush2.bf16.msra.mxu0 0
    %1746 = vmatprep.subr.bf16.mxu0 0
    %1747 = vmatpush2.bf16.msra.mxu0 0
    %1748 = vmatprep.subr.bf16.mxu0 0
    %1749 = vmatpush2.bf16.msra.mxu0 0
    %1750 = vmatprep.subr.bf16.mxu0 0
    %1751 = vmatpush2.bf16.msra.mxu0 0
    %1752 = vmatprep.subr.bf16.mxu0 0
    %1753 = vmatpush2.bf16.msra.mxu0 0
    %1754 = vmatprep.subr.bf16.mxu0 0
    %1755 = vmatpush2.bf16.msra.mxu0 0
    %1756 = vmatprep.mubr.bf16.mxu0 0
    %1757 = vmatmul.mubr.bf16.gmra.mxu0 %v1667
    %v1758 = vpop.f32.mrf.mxu0
    %v1759 = vadd.f32 0.0, %v1758
    %v1760 = vpop.f32.mrf.mxu0
    %v1761 = vadd.f32 0.0, %v1760
    %v1762 = vpop.f32.mrf.mxu0
    %v1763 = vadd.f32 0.0, %v1762
    %v1764 = vpop.f32.mrf.mxu0
    %v1765 = vadd.f32 0.0, %v1764
    %1766 = vdwg.mxu0
    %v1767 = vadd.f32 %v1673, %v1716
    %v1768 = vadd.f32 %v1674, %v1718
    %v1769 = vadd.f32 %v1675, %v1759
    %v1770 = vadd.f32 %v1676, %v1761
    %v1771 = vadd.f32 %v1677, %v1720
    %v1772 = vadd.f32 %v1678, %v1722
    %v1773 = vadd.f32 %v1679, %v1763
    %v1774 = vadd.f32 %v1680, %v1765
    %v1775 = vadd.f32 %v1767, %v799
    %v1776 = vadd.f32 %v1768, %v803
    %v1777 = vadd.f32 %v1769, %v807
    %v1778 = vadd.f32 %v1770, %v811
    %v1779 = vadd.f32 %v1771, %v799
    %v1780 = vadd.f32 %v1772, %v803
    %v1781 = vadd.f32 %v1773, %v807
    %v1782 = vadd.f32 %v1774, %v811
    %v1783 = vxor.u32 %v1775, 2147483648
    %v1784 = vxor.u32 %v1779, 2147483648
    %v1785 = vmul.f32 %v1783, 1.442695
    %v1786 = vpow.pop %v1785
    %v1787 = vmul.f32 %v1784, 1.442695
    %v1788 = vpow.pop %v1787
    %v1789 = vadd.f32 %v1786, 1.0
    %v1790 = vadd.f32 %v1788, 1.0
    %v1791 = vrcp.pop %v1789
    %v1792 = vmul.f32 1.0, %v1791
    %v1793 = vrcp.pop %v1790
    %v1794 = vmul.f32 1.0, %v1793
    %v1795 = vxor.u32 %v1776, 2147483648
    %v1796 = vxor.u32 %v1780, 2147483648
    %v1797 = vmul.f32 %v1795, 1.442695
    %v1798 = vpow.pop %v1797
    %v1799 = vmul.f32 %v1796, 1.442695
    %v1800 = vpow.pop %v1799
    %v1801 = vadd.f32 %v1798, 1.0
    %v1802 = vadd.f32 %v1800, 1.0
    %v1803 = vrcp.pop %v1801
    %v1804 = vmul.f32 1.0, %v1803
    %v1805 = vrcp.pop %v1802
    %v1806 = vmul.f32 1.0, %v1805
    %v1807 = vtanh.pop %v1777
    %v1808 = vtanh.pop %v1781
    %v1809 = vmul.f32 %v1804, %v1649
    %v1810 = vmul.f32 %v1806, %v1650
    %v1811 = vmul.f32 %v1792, %v1807
    %v1812 = vmul.f32 %v1794, %v1808
    %v1813 = vadd.f32 %v1809, %v1811
    %v1814 = vadd.f32 %v1810, %v1812
    %v1815 = vxor.u32 %v1778, 2147483648
    %v1816 = vxor.u32 %v1782, 2147483648
    %v1817 = vmul.f32 %v1815, 1.442695
    %v1818 = vpow.pop %v1817
    %v1819 = vmul.f32 %v1816, 1.442695
    %v1820 = vpow.pop %v1819
    %v1821 = vadd.f32 %v1818, 1.0
    %v1822 = vadd.f32 %v1820, 1.0
    %v1823 = vrcp.pop %v1821
    %v1824 = vmul.f32 1.0, %v1823
    %v1825 = vrcp.pop %v1822
    %v1826 = vmul.f32 1.0, %v1825
    %v1827 = vtanh.pop %v1813
    %v1828 = vtanh.pop %v1814
    %v1829 = vmul.f32 %v1824, %v1827
    %v1830 = vmul.f32 %v1826, %v1828
    %v1831 = vpack.c.bf16 %v1830, %v1829
    %s1832 = scalar_lea.vmem [#allocation4], 160
    %v1833 = vld [vmem:[%s1832] sm:$0xff]
    %v1834 = vld [vmem:[%s1832 + $0x8] sm:$0xff]
    %v1835 = vld [vmem:[%s1832 + $0x10] sm:$0xff]
    %v1836 = vld [vmem:[%s1832 + $0x18] sm:$0xff]
    %v1837 = vunpack.c.l.bf16 %v1833
    %v1838 = vunpack.c.h.bf16 %v1833
    %v1839 = vunpack.c.l.bf16 %v1834
    %v1840 = vunpack.c.h.bf16 %v1834
    %v1841 = vunpack.c.l.bf16 %v1835
    %v1842 = vunpack.c.h.bf16 %v1835
    %v1843 = vunpack.c.l.bf16 %v1836
    %v1844 = vunpack.c.h.bf16 %v1836
    %1845 = vmatprep.subr.bf16.mxu0 %v990
    %1846 = vmatpush1.bf16.msra.mxu0 %v989
    %1847 = vmatprep.subr.bf16.mxu0 %v986
    %1848 = vmatpush1.bf16.msra.mxu0 %v985
    %1849 = vmatprep.subr.bf16.mxu0 %v982
    %1850 = vmatpush1.bf16.msra.mxu0 %v981
    %1851 = vmatprep.subr.bf16.mxu0 %v978
    %1852 = vmatpush1.bf16.msra.mxu0 %v977
    %1853 = vmatprep.subr.bf16.mxu0 %v974
    %1854 = vmatpush1.bf16.msra.mxu0 %v973
    %1855 = vmatprep.subr.bf16.mxu0 %v970
    %1856 = vmatpush1.bf16.msra.mxu0 %v969
    %1857 = vmatprep.subr.bf16.mxu0 %v966
    %1858 = vmatpush1.bf16.msra.mxu0 %v965
    %1859 = vmatprep.subr.bf16.mxu0 %v962
    %1860 = vmatpush1.bf16.msra.mxu0 %v961
    %1861 = vmatprep.subr.bf16.mxu0 0
    %1862 = vmatpush2.bf16.msra.mxu0 0
    %1863 = vmatprep.subr.bf16.mxu0 0
    %1864 = vmatpush2.bf16.msra.mxu0 0
    %1865 = vmatprep.subr.bf16.mxu0 0
    %1866 = vmatpush2.bf16.msra.mxu0 0
    %1867 = vmatprep.subr.bf16.mxu0 0
    %1868 = vmatpush2.bf16.msra.mxu0 0
    %1869 = vmatprep.subr.bf16.mxu0 0
    %1870 = vmatpush2.bf16.msra.mxu0 0
    %1871 = vmatprep.subr.bf16.mxu0 0
    %1872 = vmatpush2.bf16.msra.mxu0 0
    %1873 = vmatprep.subr.bf16.mxu0 0
    %1874 = vmatpush2.bf16.msra.mxu0 0
    %1875 = vmatprep.subr.bf16.mxu0 0
    %1876 = vmatpush2.bf16.msra.mxu0 0
    %1877 = vmatprep.mubr.bf16.mxu0 0
    %1878 = vmatmul.mubr.bf16.gmra.mxu0 %v1831
    %v1879 = vpop.f32.mrf.mxu0
    %v1880 = vadd.f32 0.0, %v1879
    %v1881 = vpop.f32.mrf.mxu0
    %v1882 = vadd.f32 0.0, %v1881
    %v1883 = vpop.f32.mrf.mxu0
    %v1884 = vadd.f32 0.0, %v1883
    %v1885 = vpop.f32.mrf.mxu0
    %v1886 = vadd.f32 0.0, %v1885
    %1887 = vdwg.mxu0
    %1888 = vmatprep.subr.bf16.mxu0 %v992
    %1889 = vmatpush1.bf16.msra.mxu0 %v991
    %1890 = vmatprep.subr.bf16.mxu0 %v988
    %1891 = vmatpush1.bf16.msra.mxu0 %v987
    %1892 = vmatprep.subr.bf16.mxu0 %v984
    %1893 = vmatpush1.bf16.msra.mxu0 %v983
    %1894 = vmatprep.subr.bf16.mxu0 %v980
    %1895 = vmatpush1.bf16.msra.mxu0 %v979
    %1896 = vmatprep.subr.bf16.mxu0 %v976
    %1897 = vmatpush1.bf16.msra.mxu0 %v975
    %1898 = vmatprep.subr.bf16.mxu0 %v972
    %1899 = vmatpush1.bf16.msra.mxu0 %v971
    %1900 = vmatprep.subr.bf16.mxu0 %v968
    %1901 = vmatpush1.bf16.msra.mxu0 %v967
    %1902 = vmatprep.subr.bf16.mxu0 %v964
    %1903 = vmatpush1.bf16.msra.mxu0 %v963
    %1904 = vmatprep.subr.bf16.mxu0 0
    %1905 = vmatpush2.bf16.msra.mxu0 0
    %1906 = vmatprep.subr.bf16.mxu0 0
    %1907 = vmatpush2.bf16.msra.mxu0 0
    %1908 = vmatprep.subr.bf16.mxu0 0
    %1909 = vmatpush2.bf16.msra.mxu0 0
    %1910 = vmatprep.subr.bf16.mxu0 0
    %1911 = vmatpush2.bf16.msra.mxu0 0
    %1912 = vmatprep.subr.bf16.mxu0 0
    %1913 = vmatpush2.bf16.msra.mxu0 0
    %1914 = vmatprep.subr.bf16.mxu0 0
    %1915 = vmatpush2.bf16.msra.mxu0 0
    %1916 = vmatprep.subr.bf16.mxu0 0
    %1917 = vmatpush2.bf16.msra.mxu0 0
    %1918 = vmatprep.subr.bf16.mxu0 0
    %1919 = vmatpush2.bf16.msra.mxu0 0
    %1920 = vmatprep.mubr.bf16.mxu0 0
    %1921 = vmatmul.mubr.bf16.gmra.mxu0 %v1831
    %v1922 = vpop.f32.mrf.mxu0
    %v1923 = vadd.f32 0.0, %v1922
    %v1924 = vpop.f32.mrf.mxu0
    %v1925 = vadd.f32 0.0, %v1924
    %v1926 = vpop.f32.mrf.mxu0
    %v1927 = vadd.f32 0.0, %v1926
    %v1928 = vpop.f32.mrf.mxu0
    %v1929 = vadd.f32 0.0, %v1928
    %1930 = vdwg.mxu0
    %v1931 = vadd.f32 %v1837, %v1880
    %v1932 = vadd.f32 %v1838, %v1882
    %v1933 = vadd.f32 %v1839, %v1923
    %v1934 = vadd.f32 %v1840, %v1925
    %v1935 = vadd.f32 %v1841, %v1884
    %v1936 = vadd.f32 %v1842, %v1886
    %v1937 = vadd.f32 %v1843, %v1927
    %v1938 = vadd.f32 %v1844, %v1929
    %v1939 = vadd.f32 %v1931, %v799
    %v1940 = vadd.f32 %v1932, %v803
    %v1941 = vadd.f32 %v1933, %v807
    %v1942 = vadd.f32 %v1934, %v811
    %v1943 = vadd.f32 %v1935, %v799
    %v1944 = vadd.f32 %v1936, %v803
    %v1945 = vadd.f32 %v1937, %v807
    %v1946 = vadd.f32 %v1938, %v811
    %v1947 = vxor.u32 %v1939, 2147483648
    %v1948 = vxor.u32 %v1943, 2147483648
    %v1949 = vmul.f32 %v1947, 1.442695
    %v1950 = vpow.pop %v1949
    %v1951 = vmul.f32 %v1948, 1.442695
    %v1952 = vpow.pop %v1951
    %v1953 = vadd.f32 %v1950, 1.0
    %v1954 = vadd.f32 %v1952, 1.0
    %v1955 = vrcp.pop %v1953
    %v1956 = vmul.f32 1.0, %v1955
    %v1957 = vrcp.pop %v1954
    %v1958 = vmul.f32 1.0, %v1957
    %v1959 = vxor.u32 %v1940, 2147483648
    %v1960 = vxor.u32 %v1944, 2147483648
    %v1961 = vmul.f32 %v1959, 1.442695
    %v1962 = vpow.pop %v1961
    %v1963 = vmul.f32 %v1960, 1.442695
    %v1964 = vpow.pop %v1963
    %v1965 = vadd.f32 %v1962, 1.0
    %v1966 = vadd.f32 %v1964, 1.0
    %v1967 = vrcp.pop %v1965
    %v1968 = vmul.f32 1.0, %v1967
    %v1969 = vrcp.pop %v1966
    %v1970 = vmul.f32 1.0, %v1969
    %v1971 = vtanh.pop %v1941
    %v1972 = vtanh.pop %v1945
    %v1973 = vmul.f32 %v1968, %v1813
    %v1974 = vmul.f32 %v1970, %v1814
    %v1975 = vmul.f32 %v1956, %v1971
    %v1976 = vmul.f32 %v1958, %v1972
    %v1977 = vadd.f32 %v1973, %v1975
    %v1978 = vadd.f32 %v1974, %v1976
    %v1979 = vxor.u32 %v1942, 2147483648
    %v1980 = vxor.u32 %v1946, 2147483648
    %v1981 = vmul.f32 %v1979, 1.442695
    %v1982 = vpow.pop %v1981
    %v1983 = vmul.f32 %v1980, 1.442695
    %v1984 = vpow.pop %v1983
    %v1985 = vadd.f32 %v1982, 1.0
    %v1986 = vadd.f32 %v1984, 1.0
    %v1987 = vrcp.pop %v1985
    %v1988 = vmul.f32 1.0, %v1987
    %v1989 = vrcp.pop %v1986
    %v1990 = vmul.f32 1.0, %v1989
    %v1991 = vtanh.pop %v1977
    %v1992 = vtanh.pop %v1978
    %v1993 = vmul.f32 %v1988, %v1991
    %v1994 = vmul.f32 %v1990, %v1992
    %v1995 = vpack.c.bf16 %v1994, %v1993
    %s1996 = scalar_lea.vmem [#allocation4], 192
    %v1997 = vld [vmem:[%s1996] sm:$0xff]
    %v1998 = vld [vmem:[%s1996 + $0x8] sm:$0xff]
    %v1999 = vld [vmem:[%s1996 + $0x10] sm:$0xff]
    %v2000 = vld [vmem:[%s1996 + $0x18] sm:$0xff]
    %v2001 = vunpack.c.l.bf16 %v1997
    %v2002 = vunpack.c.h.bf16 %v1997
    %v2003 = vunpack.c.l.bf16 %v1998
    %v2004 = vunpack.c.h.bf16 %v1998
    %v2005 = vunpack.c.l.bf16 %v1999
    %v2006 = vunpack.c.h.bf16 %v1999
    %v2007 = vunpack.c.l.bf16 %v2000
    %v2008 = vunpack.c.h.bf16 %v2000
    %2009 = vmatprep.subr.bf16.mxu0 %v990
    %2010 = vmatpush1.bf16.msra.mxu0 %v989
    %2011 = vmatprep.subr.bf16.mxu0 %v986
    %2012 = vmatpush1.bf16.msra.mxu0 %v985
    %2013 = vmatprep.subr.bf16.mxu0 %v982
    %2014 = vmatpush1.bf16.msra.mxu0 %v981
    %2015 = vmatprep.subr.bf16.mxu0 %v978
    %2016 = vmatpush1.bf16.msra.mxu0 %v977
    %2017 = vmatprep.subr.bf16.mxu0 %v974
    %2018 = vmatpush1.bf16.msra.mxu0 %v973
    %2019 = vmatprep.subr.bf16.mxu0 %v970
    %2020 = vmatpush1.bf16.msra.mxu0 %v969
    %2021 = vmatprep.subr.bf16.mxu0 %v966
    %2022 = vmatpush1.bf16.msra.mxu0 %v965
    %2023 = vmatprep.subr.bf16.mxu0 %v962
    %2024 = vmatpush1.bf16.msra.mxu0 %v961
    %2025 = vmatprep.subr.bf16.mxu0 0
    %2026 = vmatpush2.bf16.msra.mxu0 0
    %2027 = vmatprep.subr.bf16.mxu0 0
    %2028 = vmatpush2.bf16.msra.mxu0 0
    %2029 = vmatprep.subr.bf16.mxu0 0
    %2030 = vmatpush2.bf16.msra.mxu0 0
    %2031 = vmatprep.subr.bf16.mxu0 0
    %2032 = vmatpush2.bf16.msra.mxu0 0
    %2033 = vmatprep.subr.bf16.mxu0 0
    %2034 = vmatpush2.bf16.msra.mxu0 0
    %2035 = vmatprep.subr.bf16.mxu0 0
    %2036 = vmatpush2.bf16.msra.mxu0 0
    %2037 = vmatprep.subr.bf16.mxu0 0
    %2038 = vmatpush2.bf16.msra.mxu0 0
    %2039 = vmatprep.subr.bf16.mxu0 0
    %2040 = vmatpush2.bf16.msra.mxu0 0
    %2041 = vmatprep.mubr.bf16.mxu0 0
    %2042 = vmatmul.mubr.bf16.gmra.mxu0 %v1995
    %v2043 = vpop.f32.mrf.mxu0
    %v2044 = vadd.f32 0.0, %v2043
    %v2045 = vpop.f32.mrf.mxu0
    %v2046 = vadd.f32 0.0, %v2045
    %v2047 = vpop.f32.mrf.mxu0
    %v2048 = vadd.f32 0.0, %v2047
    %v2049 = vpop.f32.mrf.mxu0
    %v2050 = vadd.f32 0.0, %v2049
    %2051 = vdwg.mxu0
    %2052 = vmatprep.subr.bf16.mxu0 %v992
    %2053 = vmatpush1.bf16.msra.mxu0 %v991
    %2054 = vmatprep.subr.bf16.mxu0 %v988
    %2055 = vmatpush1.bf16.msra.mxu0 %v987
    %2056 = vmatprep.subr.bf16.mxu0 %v984
    %2057 = vmatpush1.bf16.msra.mxu0 %v983
    %2058 = vmatprep.subr.bf16.mxu0 %v980
    %2059 = vmatpush1.bf16.msra.mxu0 %v979
    %2060 = vmatprep.subr.bf16.mxu0 %v976
    %2061 = vmatpush1.bf16.msra.mxu0 %v975
    %2062 = vmatprep.subr.bf16.mxu0 %v972
    %2063 = vmatpush1.bf16.msra.mxu0 %v971
    %2064 = vmatprep.subr.bf16.mxu0 %v968
    %2065 = vmatpush1.bf16.msra.mxu0 %v967
    %2066 = vmatprep.subr.bf16.mxu0 %v964
    %2067 = vmatpush1.bf16.msra.mxu0 %v963
    %2068 = vmatprep.subr.bf16.mxu0 0
    %2069 = vmatpush2.bf16.msra.mxu0 0
    %2070 = vmatprep.subr.bf16.mxu0 0
    %2071 = vmatpush2.bf16.msra.mxu0 0
    %2072 = vmatprep.subr.bf16.mxu0 0
    %2073 = vmatpush2.bf16.msra.mxu0 0
    %2074 = vmatprep.subr.bf16.mxu0 0
    %2075 = vmatpush2.bf16.msra.mxu0 0
    %2076 = vmatprep.subr.bf16.mxu0 0
    %2077 = vmatpush2.bf16.msra.mxu0 0
    %2078 = vmatprep.subr.bf16.mxu0 0
    %2079 = vmatpush2.bf16.msra.mxu0 0
    %2080 = vmatprep.subr.bf16.mxu0 0
    %2081 = vmatpush2.bf16.msra.mxu0 0
    %2082 = vmatprep.subr.bf16.mxu0 0
    %2083 = vmatpush2.bf16.msra.mxu0 0
    %2084 = vmatprep.mubr.bf16.mxu0 0
    %2085 = vmatmul.mubr.bf16.gmra.mxu0 %v1995
    %v2086 = vpop.f32.mrf.mxu0
    %v2087 = vadd.f32 0.0, %v2086
    %v2088 = vpop.f32.mrf.mxu0
    %v2089 = vadd.f32 0.0, %v2088
    %v2090 = vpop.f32.mrf.mxu0
    %v2091 = vadd.f32 0.0, %v2090
    %v2092 = vpop.f32.mrf.mxu0
    %v2093 = vadd.f32 0.0, %v2092
    %2094 = vdwg.mxu0
    %v2095 = vadd.f32 %v2001, %v2044
    %v2096 = vadd.f32 %v2002, %v2046
    %v2097 = vadd.f32 %v2003, %v2087
    %v2098 = vadd.f32 %v2004, %v2089
    %v2099 = vadd.f32 %v2005, %v2048
    %v2100 = vadd.f32 %v2006, %v2050
    %v2101 = vadd.f32 %v2007, %v2091
    %v2102 = vadd.f32 %v2008, %v2093
    %v2103 = vadd.f32 %v2095, %v799
    %v2104 = vadd.f32 %v2096, %v803
    %v2105 = vadd.f32 %v2097, %v807
    %v2106 = vadd.f32 %v2098, %v811
    %v2107 = vadd.f32 %v2099, %v799
    %v2108 = vadd.f32 %v2100, %v803
    %v2109 = vadd.f32 %v2101, %v807
    %v2110 = vadd.f32 %v2102, %v811
    %v2111 = vxor.u32 %v2103, 2147483648
    %v2112 = vxor.u32 %v2107, 2147483648
    %v2113 = vmul.f32 %v2111, 1.442695
    %v2114 = vpow.pop %v2113
    %v2115 = vmul.f32 %v2112, 1.442695
    %v2116 = vpow.pop %v2115
    %v2117 = vadd.f32 %v2114, 1.0
    %v2118 = vadd.f32 %v2116, 1.0
    %v2119 = vrcp.pop %v2117
    %v2120 = vmul.f32 1.0, %v2119
    %v2121 = vrcp.pop %v2118
    %v2122 = vmul.f32 1.0, %v2121
    %v2123 = vxor.u32 %v2104, 2147483648
    %v2124 = vxor.u32 %v2108, 2147483648
    %v2125 = vmul.f32 %v2123, 1.442695
    %v2126 = vpow.pop %v2125
    %v2127 = vmul.f32 %v2124, 1.442695
    %v2128 = vpow.pop %v2127
    %v2129 = vadd.f32 %v2126, 1.0
    %v2130 = vadd.f32 %v2128, 1.0
    %v2131 = vrcp.pop %v2129
    %v2132 = vmul.f32 1.0, %v2131
    %v2133 = vrcp.pop %v2130
    %v2134 = vmul.f32 1.0, %v2133
    %v2135 = vtanh.pop %v2105
    %v2136 = vtanh.pop %v2109
    %v2137 = vmul.f32 %v2132, %v1977
    %v2138 = vmul.f32 %v2134, %v1978
    %v2139 = vmul.f32 %v2120, %v2135
    %v2140 = vmul.f32 %v2122, %v2136
    %v2141 = vadd.f32 %v2137, %v2139
    %v2142 = vadd.f32 %v2138, %v2140
    %v2143 = vxor.u32 %v2106, 2147483648
    %v2144 = vxor.u32 %v2110, 2147483648
    %v2145 = vmul.f32 %v2143, 1.442695
    %v2146 = vpow.pop %v2145
    %v2147 = vmul.f32 %v2144, 1.442695
    %v2148 = vpow.pop %v2147
    %v2149 = vadd.f32 %v2146, 1.0
    %v2150 = vadd.f32 %v2148, 1.0
    %v2151 = vrcp.pop %v2149
    %v2152 = vmul.f32 1.0, %v2151
    %v2153 = vrcp.pop %v2150
    %v2154 = vmul.f32 1.0, %v2153
    %v2155 = vtanh.pop %v2141
    %v2156 = vtanh.pop %v2142
    %v2157 = vmul.f32 %v2152, %v2155
    %v2158 = vmul.f32 %v2154, %v2156
    %v2159 = vpack.c.bf16 %v2158, %v2157
    %s2160 = scalar_lea.vmem [#allocation4], 224
    %v2161 = vld [vmem:[%s2160] sm:$0xff]
    %v2162 = vld [vmem:[%s2160 + $0x8] sm:$0xff]
    %v2163 = vld [vmem:[%s2160 + $0x10] sm:$0xff]
    %v2164 = vld [vmem:[%s2160 + $0x18] sm:$0xff]
    %v2165 = vunpack.c.l.bf16 %v2161
    %v2166 = vunpack.c.h.bf16 %v2161
    %v2167 = vunpack.c.l.bf16 %v2162
    %v2168 = vunpack.c.h.bf16 %v2162
    %v2169 = vunpack.c.l.bf16 %v2163
    %v2170 = vunpack.c.h.bf16 %v2163
    %v2171 = vunpack.c.l.bf16 %v2164
    %v2172 = vunpack.c.h.bf16 %v2164
    %2173 = vmatprep.subr.bf16.mxu0 %v990
    %2174 = vmatpush1.bf16.msra.mxu0 %v989
    %2175 = vmatprep.subr.bf16.mxu0 %v986
    %2176 = vmatpush1.bf16.msra.mxu0 %v985
    %2177 = vmatprep.subr.bf16.mxu0 %v982
    %2178 = vmatpush1.bf16.msra.mxu0 %v981
    %2179 = vmatprep.subr.bf16.mxu0 %v978
    %2180 = vmatpush1.bf16.msra.mxu0 %v977
    %2181 = vmatprep.subr.bf16.mxu0 %v974
    %2182 = vmatpush1.bf16.msra.mxu0 %v973
    %2183 = vmatprep.subr.bf16.mxu0 %v970
    %2184 = vmatpush1.bf16.msra.mxu0 %v969
    %2185 = vmatprep.subr.bf16.mxu0 %v966
    %2186 = vmatpush1.bf16.msra.mxu0 %v965
    %2187 = vmatprep.subr.bf16.mxu0 %v962
    %2188 = vmatpush1.bf16.msra.mxu0 %v961
    %2189 = vmatprep.subr.bf16.mxu0 0
    %2190 = vmatpush2.bf16.msra.mxu0 0
    %2191 = vmatprep.subr.bf16.mxu0 0
    %2192 = vmatpush2.bf16.msra.mxu0 0
    %2193 = vmatprep.subr.bf16.mxu0 0
    %2194 = vmatpush2.bf16.msra.mxu0 0
    %2195 = vmatprep.subr.bf16.mxu0 0
    %2196 = vmatpush2.bf16.msra.mxu0 0
    %2197 = vmatprep.subr.bf16.mxu0 0
    %2198 = vmatpush2.bf16.msra.mxu0 0
    %2199 = vmatprep.subr.bf16.mxu0 0
    %2200 = vmatpush2.bf16.msra.mxu0 0
    %2201 = vmatprep.subr.bf16.mxu0 0
    %2202 = vmatpush2.bf16.msra.mxu0 0
    %2203 = vmatprep.subr.bf16.mxu0 0
    %2204 = vmatpush2.bf16.msra.mxu0 0
    %2205 = vmatprep.mubr.bf16.mxu0 0
    %2206 = vmatmul.mubr.bf16.gmra.mxu0 %v2159
    %v2207 = vpop.f32.mrf.mxu0
    %v2208 = vadd.f32 0.0, %v2207
    %v2209 = vpop.f32.mrf.mxu0
    %v2210 = vadd.f32 0.0, %v2209
    %v2211 = vpop.f32.mrf.mxu0
    %v2212 = vadd.f32 0.0, %v2211
    %v2213 = vpop.f32.mrf.mxu0
    %v2214 = vadd.f32 0.0, %v2213
    %2215 = vdwg.mxu0
    %2216 = vmatprep.subr.bf16.mxu0 %v992
    %2217 = vmatpush1.bf16.msra.mxu0 %v991
    %2218 = vmatprep.subr.bf16.mxu0 %v988
    %2219 = vmatpush1.bf16.msra.mxu0 %v987
    %2220 = vmatprep.subr.bf16.mxu0 %v984
    %2221 = vmatpush1.bf16.msra.mxu0 %v983
    %2222 = vmatprep.subr.bf16.mxu0 %v980
    %2223 = vmatpush1.bf16.msra.mxu0 %v979
    %2224 = vmatprep.subr.bf16.mxu0 %v976
    %2225 = vmatpush1.bf16.msra.mxu0 %v975
    %2226 = vmatprep.subr.bf16.mxu0 %v972
    %2227 = vmatpush1.bf16.msra.mxu0 %v971
    %2228 = vmatprep.subr.bf16.mxu0 %v968
    %2229 = vmatpush1.bf16.msra.mxu0 %v967
    %2230 = vmatprep.subr.bf16.mxu0 %v964
    %2231 = vmatpush1.bf16.msra.mxu0 %v963
    %2232 = vmatprep.subr.bf16.mxu0 0
    %2233 = vmatpush2.bf16.msra.mxu0 0
    %2234 = vmatprep.subr.bf16.mxu0 0
    %2235 = vmatpush2.bf16.msra.mxu0 0
    %2236 = vmatprep.subr.bf16.mxu0 0
    %2237 = vmatpush2.bf16.msra.mxu0 0
    %2238 = vmatprep.subr.bf16.mxu0 0
    %2239 = vmatpush2.bf16.msra.mxu0 0
    %2240 = vmatprep.subr.bf16.mxu0 0
    %2241 = vmatpush2.bf16.msra.mxu0 0
    %2242 = vmatprep.subr.bf16.mxu0 0
    %2243 = vmatpush2.bf16.msra.mxu0 0
    %2244 = vmatprep.subr.bf16.mxu0 0
    %2245 = vmatpush2.bf16.msra.mxu0 0
    %2246 = vmatprep.subr.bf16.mxu0 0
    %2247 = vmatpush2.bf16.msra.mxu0 0
    %2248 = vmatprep.mubr.bf16.mxu0 0
    %2249 = vmatmul.mubr.bf16.gmra.mxu0 %v2159
    %v2250 = vpop.f32.mrf.mxu0
    %v2251 = vadd.f32 0.0, %v2250
    %v2252 = vpop.f32.mrf.mxu0
    %v2253 = vadd.f32 0.0, %v2252
    %v2254 = vpop.f32.mrf.mxu0
    %v2255 = vadd.f32 0.0, %v2254
    %v2256 = vpop.f32.mrf.mxu0
    %v2257 = vadd.f32 0.0, %v2256
    %2258 = vdwg.mxu0
    %v2259 = vadd.f32 %v2165, %v2208
    %v2260 = vadd.f32 %v2166, %v2210
    %v2261 = vadd.f32 %v2167, %v2251
    %v2262 = vadd.f32 %v2168, %v2253
    %v2263 = vadd.f32 %v2169, %v2212
    %v2264 = vadd.f32 %v2170, %v2214
    %v2265 = vadd.f32 %v2171, %v2255
    %v2266 = vadd.f32 %v2172, %v2257
    %v2267 = vadd.f32 %v2259, %v799
    %v2268 = vadd.f32 %v2260, %v803
    %v2269 = vadd.f32 %v2261, %v807
    %v2270 = vadd.f32 %v2262, %v811
    %v2271 = vadd.f32 %v2263, %v799
    %v2272 = vadd.f32 %v2264, %v803
    %v2273 = vadd.f32 %v2265, %v807
    %v2274 = vadd.f32 %v2266, %v811
    %v2275 = vxor.u32 %v2267, 2147483648
    %v2276 = vxor.u32 %v2271, 2147483648
    %v2277 = vmul.f32 %v2275, 1.442695
    %v2278 = vpow.pop %v2277
    %v2279 = vmul.f32 %v2276, 1.442695
    %v2280 = vpow.pop %v2279
    %v2281 = vadd.f32 %v2278, 1.0
    %v2282 = vadd.f32 %v2280, 1.0
    %v2283 = vrcp.pop %v2281
    %v2284 = vmul.f32 1.0, %v2283
    %v2285 = vrcp.pop %v2282
    %v2286 = vmul.f32 1.0, %v2285
    %v2287 = vxor.u32 %v2268, 2147483648
    %v2288 = vxor.u32 %v2272, 2147483648
    %v2289 = vmul.f32 %v2287, 1.442695
    %v2290 = vpow.pop %v2289
    %v2291 = vmul.f32 %v2288, 1.442695
    %v2292 = vpow.pop %v2291
    %v2293 = vadd.f32 %v2290, 1.0
    %v2294 = vadd.f32 %v2292, 1.0
    %v2295 = vrcp.pop %v2293
    %v2296 = vmul.f32 1.0, %v2295
    %v2297 = vrcp.pop %v2294
    %v2298 = vmul.f32 1.0, %v2297
    %v2299 = vtanh.pop %v2269
    %v2300 = vtanh.pop %v2273
    %v2301 = vmul.f32 %v2296, %v2141
    %v2302 = vmul.f32 %v2298, %v2142
    %v2303 = vmul.f32 %v2284, %v2299
    %v2304 = vmul.f32 %v2286, %v2300
    %v2305 = vadd.f32 %v2301, %v2303
    %v2306 = vadd.f32 %v2302, %v2304
    %v2307 = vxor.u32 %v2270, 2147483648
    %v2308 = vxor.u32 %v2274, 2147483648
    %v2309 = vmul.f32 %v2307, 1.442695
    %v2310 = vpow.pop %v2309
    %v2311 = vmul.f32 %v2308, 1.442695
    %v2312 = vpow.pop %v2311
    %v2313 = vadd.f32 %v2310, 1.0
    %v2314 = vadd.f32 %v2312, 1.0
    %v2315 = vrcp.pop %v2313
    %v2316 = vmul.f32 1.0, %v2315
    %v2317 = vrcp.pop %v2314
    %v2318 = vmul.f32 1.0, %v2317
    %v2319 = vtanh.pop %v2305
    %v2320 = vtanh.pop %v2306
    %v2321 = vmul.f32 %v2316, %v2319
    %v2322 = vmul.f32 %v2318, %v2320
    %2323 = vst [vmem:[#allocation2] sm:$0xff] %v2321
    %2324 = vst [vmem:[#allocation2 + $0x8] sm:$0xff] %v2322
    %2325 = vst [vmem:[#allocation3] sm:$0xff] %v2305
    %2326 = vst [vmem:[#allocation3 + $0x8] sm:$0xff] %v2306
    // Predicated region
    $region46: #{tpu_custom_call.1} parent=1 // pred_check
      %p2327 = pneg %p80
    $region47: #{tpu_custom_call.1} parent=1 // pred_check_branch
      %2329 = sbr.rel (%p2327) target = $region49
    $region48: #{tpu_custom_call.1} parent=1 // pred_region
      %v2330 = vpack.c.bf16 %v2322, %v2321
      %v2331 = vld [vmem:[#allocation11] sm:$0xf]
      %v2332 = vld [vmem:[#allocation11 + $0x4] sm:$0xf]
      %v2333 = vld [vmem:[#allocation11 + $0x8] sm:$0xf]
      %v2334 = vld [vmem:[#allocation11 + $0xc] sm:$0xf]
      %v2335 = vld [vmem:[#allocation11 + $0x10] sm:$0xf]
      %v2336 = vld [vmem:[#allocation11 + $0x14] sm:$0xf]
      %v2337 = vld [vmem:[#allocation11 + $0x18] sm:$0xf]
      %v2338 = vld [vmem:[#allocation11 + $0x1c] sm:$0xf]
      %v2339 = vld [vmem:[#allocation11 + $0x20] sm:$0xf]
      %v2340 = vld [vmem:[#allocation11 + $0x24] sm:$0xf]
      %v2341 = vld [vmem:[#allocation11 + $0x28] sm:$0xf]
      %v2342 = vld [vmem:[#allocation11 + $0x2c] sm:$0xf]
      %v2343 = vld [vmem:[#allocation11 + $0x30] sm:$0xf]
      %v2344 = vld [vmem:[#allocation11 + $0x34] sm:$0xf]
      %v2345 = vld [vmem:[#allocation11 + $0x38] sm:$0xf]
      %v2346 = vld [vmem:[#allocation11 + $0x3c] sm:$0xf]
      %v2347 = vld [vmem:[%s5] sm:$0x1]
      %v2349 = vlaneseq
      %v2350 = vshrl.u32 %v2349, 7
      %v2351 = vsub.s32 0, %v2350
      %v2352 = vrot.slane %v2347, %v2351
      %v2370 = vunpack.c.l.b16 %v2331
      %v2371 = vunpack.c.l.b16 %v2332
      %v2372 = vunpack.c.l.b16 %v2333
      %v2373 = vunpack.c.l.b16 %v2334
      %v2374 = vunpack.c.l.b16 %v2335
      %v2375 = vunpack.c.l.b16 %v2336
      %v2376 = vunpack.c.l.b16 %v2337
      %v2377 = vunpack.c.l.b16 %v2338
      %v2378 = vunpack.c.l.b16 %v2339
      %v2379 = vunpack.c.l.b16 %v2340
      %v2380 = vunpack.c.l.b16 %v2341
      %v2381 = vunpack.c.l.b16 %v2342
      %v2382 = vunpack.c.l.b16 %v2343
      %v2383 = vunpack.c.l.b16 %v2344
      %v2384 = vunpack.c.l.b16 %v2345
      %v2385 = vunpack.c.l.b16 %v2346
      %v2386 = vpack.c.b16 %v2371, %v2370
      %v2387 = vpack.c.b16 %v2373, %v2372
      %v2388 = vpack.c.b16 %v2375, %v2374
      %v2389 = vpack.c.b16 %v2377, %v2376
      %v2390 = vpack.c.b16 %v2379, %v2378
      %v2391 = vpack.c.b16 %v2381, %v2380
      %v2392 = vpack.c.b16 %v2383, %v2382
      %v2393 = vpack.c.b16 %v2385, %v2384
      %2402 = vmatprep.subr.bf16.mxu0 0
      %2403 = vmatpush1.bf16.msra.mxu0 %v2393
      %2404 = vmatprep.subr.bf16.mxu0 0
      %2405 = vmatpush1.bf16.msra.mxu0 %v2392
      %2406 = vmatprep.subr.bf16.mxu0 0
      %2407 = vmatpush1.bf16.msra.mxu0 %v2391
      %2408 = vmatprep.subr.bf16.mxu0 0
      %2409 = vmatpush1.bf16.msra.mxu0 %v2390
      %2410 = vmatprep.subr.bf16.mxu0 0
      %2411 = vmatpush1.bf16.msra.mxu0 %v2389
      %2412 = vmatprep.subr.bf16.mxu0 0
      %2413 = vmatpush1.bf16.msra.mxu0 %v2388
      %2414 = vmatprep.subr.bf16.mxu0 0
      %2415 = vmatpush1.bf16.msra.mxu0 %v2387
      %2416 = vmatprep.subr.bf16.mxu0 0
      %2417 = vmatpush1.bf16.msra.mxu0 %v2386
      %2418 = vmatprep.subr.bf16.mxu0 0
      %2419 = vmatpush2.bf16.msra.mxu0 0
      %2420 = vmatprep.subr.bf16.mxu0 0
      %2421 = vmatpush2.bf16.msra.mxu0 0
      %2422 = vmatprep.subr.bf16.mxu0 0
      %2423 = vmatpush2.bf16.msra.mxu0 0
      %2424 = vmatprep.subr.bf16.mxu0 0
      %2425 = vmatpush2.bf16.msra.mxu0 0
      %2426 = vmatprep.subr.bf16.mxu0 0
      %2427 = vmatpush2.bf16.msra.mxu0 0
      %2428 = vmatprep.subr.bf16.mxu0 0
      %2429 = vmatpush2.bf16.msra.mxu0 0
      %2430 = vmatprep.subr.bf16.mxu0 0
      %2431 = vmatpush2.bf16.msra.mxu0 0
      %2432 = vmatprep.subr.bf16.mxu0 0
      %2433 = vmatpush2.bf16.msra.mxu0 0
      %2434 = vmatprep.mubr.bf16.mxu0 0
      %2435 = vmatmul.mubr.bf16.gmra.mxu0 %v2330
      %v2436 = vpop.f32.mrf.mxu0
      %v2437 = vadd.f32 %v2352, %v2436
      %v2438 = vpop.f32.mrf.mxu0
      %v2439 = vpop.f32.mrf.mxu0
      %v2440 = vadd.f32 %v2352, %v2439
      %v2441 = vpop.f32.mrf.mxu0
      %2442 = vdwg.mxu0
      %2443 = vmax.xlane.f32.xlu0 %v2437
      %v2444 = vpop.xlane.xlu0 %2443
      %2445 = vmax.xlane.f32.xlu0 %v2440
      %v2446 = vpop.xlane.xlu0 %2445
      %v2447 = vsub.f32 %v2437, %v2444
      %v2448 = vsub.f32 %v2440, %v2446
      %v2449 = vmul.f32 %v2447, 1.442695
      %v2450 = vpow.pop %v2449
      %v2451 = vmul.f32 %v2448, 1.442695
      %v2452 = vpow.pop %v2451
      %2453 = vadd.xlane.f32.xlu0 %v2450
      %v2454 = vpop.xlane.xlu0 %2453
      %2455 = vadd.xlane.f32.xlu0 %v2452
      %v2456 = vpop.xlane.xlu0 %2455
      %v2457 = vlog2.pop %v2454
      %v2458 = vmul.f32 %v2457, 0.6931472
      %v2459 = vlog2.pop %v2456
      %v2460 = vmul.f32 %v2459, 0.6931472
      %v2461 = vsub.f32 %v2447, %v2458
      %v2462 = vsub.f32 %v2448, %v2460
      %2463 = vst [vmem:[#allocation13] sm:$0xff] %v2461
      %2464 = vst [vmem:[#allocation13 + $0x8] sm:$0xff] %v2462
    $region49: #{tpu_custom_call.1} parent=1 // pred_fallthru
      _
    // Predicated region
    $region50: #{tpu_custom_call.1} parent=1 // pred_check
      _
    $region51: #{tpu_custom_call.1} parent=1 // pred_check_branch
      %2466 = sbr.rel (0) target = $region53
    $region52: #{tpu_custom_call.1} parent=1 // pred_region
      %s2468 = ssub.s32 256, 256
      %2469 = vsyncadd [#allocation7], %s2468
      %s2470 = sshll.u32 [#allocation13], 4
      %s2471 = int_to_ptr.vmem [resolvable:$true] %s2470
      %2476 = dma.vmem_to_hbm [thread:$0]  %s2471, 256, %s6, [#allocation7], 128, 128, 8
    $region53: #{tpu_custom_call.1} parent=1 // pred_fallthru
      _
    // Predicated region
    $region54: #{tpu_custom_call.1} parent=1 // pred_check
      _
    $region55: #{tpu_custom_call.1} parent=1 // pred_check_branch
      %2478 = sbr.rel (0) target = $region57
    $region56: #{tpu_custom_call.1} parent=1 // pred_region
      %2479 = dma.done [#allocation7], 256
    $region57: #{tpu_custom_call.1} parent=1 // pred_fallthru
      _
    %2480 = vsyncpa [#allocation6], 1
    %2481 = vsyncpa [#allocation9], 1
    %2482 = vsyncpa [#allocation12], 1
    %2483 = vsyncpa [#allocation7], 1

// kernel: tpu_custom_call.1
$region0: #{tpu_custom_call.1}
  #allocation0 [shape = 'u32[]', space=smem, size = 0x4, offset = 0x4, fixed_abs, tag = 'smem constant byte address 0x4 - core index']
  #allocation1 [shape = 'u32[144,128]{1,0:T(1,128)}', space=vmem, size = 0x12000, scoped, tag = 'internal scratch']
  #allocation2 [shape = 'f32[16,128]{1,0:T(8,128)}', space=vmem, size = 0x2000, scoped, tag = 'scratch operand']
  #allocation3 [shape = 'f32[16,128]{1,0:T(8,128)}', space=vmem, size = 0x2000, scoped, tag = 'scratch operand']
  #allocation4 [shape = 'bf16[8,16,512]{2,1,0:T(8,128)(2,1)}', space=vmem, size = 0x20000, scoped, tag = 'scratch operand']
  %s0 = inlined_call_operand.hbm [shape: bf16[8,16,128], index: 0, kind: input, shape index: {}]
  %s1 = inlined_call_operand.hbm [shape: bf16[128,512], index: 1, kind: input, shape index: {}]
  %s2 = inlined_call_operand.hbm [shape: bf16[128,512], index: 2, kind: input, shape index: {}]
  %s3 = inlined_call_operand.vmem [shape: f32[1,512], index: 3, kind: input, shape index: {}]
  %s4 = inlined_call_operand.hbm [shape: bf16[128,128], index: 4, kind: input, shape index: {}]
  %s5 = inlined_call_operand.vmem [shape: f32[1,128], index: 5, kind: input, shape index: {}]
  %s6 = inlined_call_operand.hbm [shape: f32[16,128], index: 6, kind: output, shape index: {}]
  %s7 = sld [smem:[#allocation0]]
  $region58: #{tpu_custom_call.1} parent=0
    _
  %s9 = ssub.s32 1, %s7
  %s10 = scalar_select 0, %s9, %s7
  $region1: #{tpu_custom_call.1} parent=0
    #allocation5 [shape = 'u8[32768]{0}', space=vmem, size = 0x8000, scoped, tag = 'input window, operand 0, single buffered']
    #allocation6 [shape = 's32[1]{0}', space=sflag, size = 0x4, scoped, tag = 'scoped memory for tpu_custom_call.1']
    #allocation7 [shape = 's32[1]{0}', space=sflag, size = 0x4, scoped, tag = 'scoped memory for tpu_custom_call.1']
    #allocation8 [shape = 'u8[131072]{0}', space=vmem, size = 0x20000, scoped, tag = 'input window, operand 1, single buffered']
    #allocation9 [shape = 's32[1]{0}', space=sflag, size = 0x4, scoped, tag = 'scoped memory for tpu_custom_call.1']
    #allocation10 [shape = 'u8[131072]{0}', space=vmem, size = 0x20000, scoped, tag = 'input window, operand 2, single buffered']
    #allocation11 [shape = 'u8[32768]{0}', space=vmem, size = 0x8000, scoped, tag = 'input window, operand 4, single buffered']
    #allocation12 [shape = 's32[1]{0}', space=sflag, size = 0x4, scoped, tag = 'scoped memory for tpu_custom_call.1']
    #allocation13 [shape = 'u8[8192]{0}', space=vmem, size = 0x2000, scoped, tag = 'output window, operand 0, single buffered']
    %11 = vsyncpa [#allocation6], 0
    %12 = vsyncpa [#allocation9], 0
    %13 = vsyncpa [#allocation12], 0
    %14 = vsyncpa [#allocation7], 0
    // Predicated region
    $region2: #{tpu_custom_call.1} parent=1 // pred_check
      _
    $region3: #{tpu_custom_call.1} parent=1 // pred_check_branch
      %16 = sbr.rel (0) target = $region5
    $region4: #{tpu_custom_call.1} parent=1 // pred_region
      %s18 = ssub.s32 1024, 1024
      %19 = vsyncadd [#allocation6], %s18
      %s20 = sshll.u32 [#allocation5], 4
      %s21 = int_to_ptr.vmem [resolvable:$true] %s20
      %26 = dma.hbm_to_vmem [thread:$0]  %s0, 1024, %s21, [#allocation6], 64, 64, 4
    $region5: #{tpu_custom_call.1} parent=1 // pred_fallthru
      _
    // Predicated region
    $region6: #{tpu_custom_call.1} parent=1 // pred_check
      _
    $region7: #{tpu_custom_call.1} parent=1 // pred_check_branch
      %28 = sbr.rel (0) target = $region9
    $region8: #{tpu_custom_call.1} parent=1 // pred_region
      %s30 = ssub.s32 4096, 4096
      %31 = vsyncadd [#allocation9], %s30
      %s32 = sshll.u32 [#allocation8], 4
      %s33 = int_to_ptr.vmem [resolvable:$true] %s32
      %38 = dma.hbm_to_vmem [thread:$0]  %s1, 4096, %s33, [#allocation9], 256, 256, 16
    $region9: #{tpu_custom_call.1} parent=1 // pred_fallthru
      _
    // Predicated region
    $region10: #{tpu_custom_call.1} parent=1 // pred_check
      _
    $region11: #{tpu_custom_call.1} parent=1 // pred_check_branch
      %40 = sbr.rel (0) target = $region13
    $region12: #{tpu_custom_call.1} parent=1 // pred_region
      %s42 = ssub.s32 4096, 4096
      %43 = vsyncadd [#allocation9], %s42
      %s44 = sshll.u32 [#allocation10], 4
      %s45 = int_to_ptr.vmem [resolvable:$true] %s44
      %50 = dma.hbm_to_vmem [thread:$0]  %s2, 4096, %s45, [#allocation9], 256, 256, 16
    $region13: #{tpu_custom_call.1} parent=1 // pred_fallthru
      _
    // Predicated region
    $region14: #{tpu_custom_call.1} parent=1 // pred_check
      _
    $region15: #{tpu_custom_call.1} parent=1 // pred_check_branch
      %52 = sbr.rel (0) target = $region17
    $region16: #{tpu_custom_call.1} parent=1 // pred_region
      _
    $region17: #{tpu_custom_call.1} parent=1 // pred_fallthru
      _
    // Predicated region
    $region18: #{tpu_custom_call.1} parent=1 // pred_check
      _
    $region19: #{tpu_custom_call.1} parent=1 // pred_check_branch
      %54 = sbr.rel (0) target = $region21
    $region20: #{tpu_custom_call.1} parent=1 // pred_region
      %s56 = ssub.s32 1024, 1024
      %57 = vsyncadd [#allocation12], %s56
      %s58 = sshll.u32 [#allocation11], 4
      %s59 = int_to_ptr.vmem [resolvable:$true] %s58
      %64 = dma.hbm_to_vmem [thread:$0]  %s4, 1024, %s59, [#allocation12], 64, 64, 4
    $region21: #{tpu_custom_call.1} parent=1 // pred_fallthru
      _
    // Predicated region
    $region22: #{tpu_custom_call.1} parent=1 // pred_check
      _
    $region23: #{tpu_custom_call.1} parent=1 // pred_check_branch
      %66 = sbr.rel (0) target = $region25
    $region24: #{tpu_custom_call.1} parent=1 // pred_region
      _
    $region25: #{tpu_custom_call.1} parent=1 // pred_fallthru
      _
    // Predicated region
    $region26: #{tpu_custom_call.1} parent=1 // pred_check
      _
    $region27: #{tpu_custom_call.1} parent=1 // pred_check_branch
      %68 = sbr.rel (0) target = $region29
    $region28: #{tpu_custom_call.1} parent=1 // pred_region
      %69 = dma.done [#allocation6], 1024
    $region29: #{tpu_custom_call.1} parent=1 // pred_fallthru
      _
    // Predicated region
    $region30: #{tpu_custom_call.1} parent=1 // pred_check
      _
    $region31: #{tpu_custom_call.1} parent=1 // pred_check_branch
      %71 = sbr.rel (0) target = $region33
    $region32: #{tpu_custom_call.1} parent=1 // pred_region
      %72 = dma.done [#allocation9], 4096
    $region33: #{tpu_custom_call.1} parent=1 // pred_fallthru
      _
    // Predicated region
    $region34: #{tpu_custom_call.1} parent=1 // pred_check
      _
    $region35: #{tpu_custom_call.1} parent=1 // pred_check_branch
      %74 = sbr.rel (0) target = $region37
    $region36: #{tpu_custom_call.1} parent=1 // pred_region
      %75 = dma.done [#allocation9], 4096
    $region37: #{tpu_custom_call.1} parent=1 // pred_fallthru
      _
    // Predicated region
    $region38: #{tpu_custom_call.1} parent=1 // pred_check
      _
    $region39: #{tpu_custom_call.1} parent=1 // pred_check_branch
      %77 = sbr.rel (0) target = $region41
    $region40: #{tpu_custom_call.1} parent=1 // pred_region
      %78 = dma.done [#allocation12], 1024
    $region41: #{tpu_custom_call.1} parent=1 // pred_fallthru
      _
    %p80 = scmp.eq.s32.totalorder 0, 0
    // Predicated region
    $region42: #{tpu_custom_call.1} parent=1 // pred_check
      %p81 = pneg %p80
    $region43: #{tpu_custom_call.1} parent=1 // pred_check_branch
      %83 = sbr.rel (%p81) target = $region45
    $region44: #{tpu_custom_call.1} parent=1 // pred_region
      %84 = vst [vmem:[#allocation2] sm:$0xff] 0.0
      %85 = vst [vmem:[#allocation2 + $0x8] sm:$0xff] 0.0
      %86 = vst [vmem:[#allocation3] sm:$0xff] 0.0
      %87 = vst [vmem:[#allocation3 + $0x8] sm:$0xff] 0.0
    $region45: #{tpu_custom_call.1} parent=1 // pred_fallthru
      _
    %v88 = vld [vmem:[#allocation5] sm:$0xf]
    %v89 = vld [vmem:[#allocation5 + $0x4] sm:$0xf]
    %v90 = vld [vmem:[#allocation5 + $0x8] sm:$0xf]
    %v91 = vld [vmem:[#allocation5 + $0xc] sm:$0xf]
    %v92 = vld [vmem:[#allocation5 + $0x10] sm:$0xf]
    %v93 = vld [vmem:[#allocation5 + $0x14] sm:$0xf]
    %v94 = vld [vmem:[#allocation5 + $0x18] sm:$0xf]
    %v95 = vld [vmem:[#allocation5 + $0x1c] sm:$0xf]
    %v96 = vld [vmem:[#allocation5 + $0x20] sm:$0xf]
    %v97 = vld [vmem:[#allocation5 + $0x24] sm:$0xf]
    %v98 = vld [vmem:[#allocation5 + $0x28] sm:$0xf]
    %v99 = vld [vmem:[#allocation5 + $0x2c] sm:$0xf]
    %v100 = vld [vmem:[#allocation5 + $0x30] sm:$0xf]
    %v101 = vld [vmem:[#allocation5 + $0x34] sm:$0xf]
    %v102 = vld [vmem:[#allocation5 + $0x38] sm:$0xf]
    %v103 = vld [vmem:[#allocation5 + $0x3c] sm:$0xf]
    %v104 = vld [vmem:[#allocation8] sm:$0xff]
    %v105 = vld [vmem:[#allocation8 + $0x8] sm:$0xff]
    %v106 = vld [vmem:[#allocation8 + $0x10] sm:$0xff]
    %v107 = vld [vmem:[#allocation8 + $0x18] sm:$0xff]
    %v108 = vld [vmem:[#allocation8 + $0x20] sm:$0xff]
    %v109 = vld [vmem:[#allocation8 + $0x28] sm:$0xff]
    %v110 = vld [vmem:[#allocation8 + $0x30] sm:$0xff]
    %v111 = vld [vmem:[#allocation8 + $0x38] sm:$0xff]
    %v112 = vld [vmem:[#allocation8 + $0x40] sm:$0xff]
    %v113 = vld [vmem:[#allocation8 + $0x48] sm:$0xff]
    %v114 = vld [vmem:[#allocation8 + $0x50] sm:$0xff]
    %v115 = vld [vmem:[#allocation8 + $0x58] sm:$0xff]
    %v116 = vld [vmem:[#allocation8 + $0x60] sm:$0xff]
    %v117 = vld [vmem:[#allocation8 + $0x68] sm:$0xff]
    %v118 = vld [vmem:[#allocation8 + $0x70] sm:$0xff]
    %v119 = vld [vmem:[#allocation8 + $0x78] sm:$0xff]
    %v120 = vld [vmem:[#allocation8 + $0x80] sm:$0xff]
    %v121 = vld [vmem:[#allocation8 + $0x88] sm:$0xff]
    %v122 = vld [vmem:[#allocation8 + $0x90] sm:$0xff]
    %v123 = vld [vmem:[#allocation8 + $0x98] sm:$0xff]
    %v124 = vld [vmem:[#allocation8 + $0xa0] sm:$0xff]
    %v125 = vld [vmem:[#allocation8 + $0xa8] sm:$0xff]
    %v126 = vld [vmem:[#allocation8 + $0xb0] sm:$0xff]
    %v127 = vld [vmem:[#allocation8 + $0xb8] sm:$0xff]
    %v128 = vld [vmem:[#allocation8 + $0xc0] sm:$0xff]
    %v129 = vld [vmem:[#allocation8 + $0xc8] sm:$0xff]
    %v130 = vld [vmem:[#allocation8 + $0xd0] sm:$0xff]
    %v131 = vld [vmem:[#allocation8 + $0xd8] sm:$0xff]
    %v132 = vld [vmem:[#allocation8 + $0xe0] sm:$0xff]
    %v133 = vld [vmem:[#allocation8 + $0xe8] sm:$0xff]
    %v134 = vld [vmem:[#allocation8 + $0xf0] sm:$0xff]
    %v135 = vld [vmem:[#allocation8 + $0xf8] sm:$0xff]
    %v152 = vunpack.c.l.b16 %v88
    %v153 = vunpack.c.l.b16 %v89
    %v154 = vunpack.c.l.b16 %v90
    %v155 = vunpack.c.l.b16 %v91
    %v156 = vunpack.c.l.b16 %v92
    %v157 = vunpack.c.l.b16 %v93
    %v158 = vunpack.c.l.b16 %v94
    %v159 = vunpack.c.l.b16 %v95
    %v160 = vunpack.c.l.b16 %v96
    %v161 = vunpack.c.l.b16 %v97
    %v162 = vunpack.c.l.b16 %v98
    %v163 = vunpack.c.l.b16 %v99
    %v164 = vunpack.c.l.b16 %v100
    %v165 = vunpack.c.l.b16 %v101
    %v166 = vunpack.c.l.b16 %v102
    %v167 = vunpack.c.l.b16 %v103
    %v168 = vpack.c.b16 %v153, %v152
    %v169 = vpack.c.b16 %v155, %v154
    %v170 = vpack.c.b16 %v157, %v156
    %v171 = vpack.c.b16 %v159, %v158
    %v172 = vpack.c.b16 %v161, %v160
    %v173 = vpack.c.b16 %v163, %v162
    %v174 = vpack.c.b16 %v165, %v164
    %v175 = vpack.c.b16 %v167, %v166
    %v216 = vunpack.c.l.b16 %v104
    %v217 = vunpack.c.h.b16 %v104
    %v218 = vunpack.c.l.b16 %v105
    %v219 = vunpack.c.h.b16 %v105
    %v220 = vunpack.c.l.b16 %v106
    %v221 = vunpack.c.h.b16 %v106
    %v222 = vunpack.c.l.b16 %v107
    %v223 = vunpack.c.h.b16 %v107
    %v224 = vunpack.c.l.b16 %v108
    %v225 = vunpack.c.h.b16 %v108
    %v226 = vunpack.c.l.b16 %v109
    %v227 = vunpack.c.h.b16 %v109
    %v228 = vunpack.c.l.b16 %v110
    %v229 = vunpack.c.h.b16 %v110
    %v230 = vunpack.c.l.b16 %v111
    %v231 = vunpack.c.h.b16 %v111
    %v232 = vunpack.c.l.b16 %v112
    %v233 = vunpack.c.h.b16 %v112
    %v234 = vunpack.c.l.b16 %v113
    %v235 = vunpack.c.h.b16 %v113
    %v236 = vunpack.c.l.b16 %v114
    %v237 = vunpack.c.h.b16 %v114
    %v238 = vunpack.c.l.b16 %v115
    %v239 = vunpack.c.h.b16 %v115
    %v240 = vunpack.c.l.b16 %v116
    %v241 = vunpack.c.h.b16 %v116
    %v242 = vunpack.c.l.b16 %v117
    %v243 = vunpack.c.h.b16 %v117
    %v244 = vunpack.c.l.b16 %v118
    %v245 = vunpack.c.h.b16 %v118
    %v246 = vunpack.c.l.b16 %v119
    %v247 = vunpack.c.h.b16 %v119
    %v248 = vunpack.c.l.b16 %v120
    %v249 = vunpack.c.h.b16 %v120
    %v250 = vunpack.c.l.b16 %v121
    %v251 = vunpack.c.h.b16 %v121
    %v252 = vunpack.c.l.b16 %v122
    %v253 = vunpack.c.h.b16 %v122
    %v254 = vunpack.c.l.b16 %v123
    %v255 = vunpack.c.h.b16 %v123
    %v256 = vunpack.c.l.b16 %v124
    %v257 = vunpack.c.h.b16 %v124
    %v258 = vunpack.c.l.b16 %v125
    %v259 = vunpack.c.h.b16 %v125
    %v260 = vunpack.c.l.b16 %v126
    %v261 = vunpack.c.h.b16 %v126
    %v262 = vunpack.c.l.b16 %v127
    %v263 = vunpack.c.h.b16 %v127
    %v264 = vunpack.c.l.b16 %v128
    %v265 = vunpack.c.h.b16 %v128
    %v266 = vunpack.c.l.b16 %v129
    %v267 = vunpack.c.h.b16 %v129
    %v268 = vunpack.c.l.b16 %v130
    %v269 = vunpack.c.h.b16 %v130
    %v270 = vunpack.c.l.b16 %v131
    %v271 = vunpack.c.h.b16 %v131
    %v272 = vunpack.c.l.b16 %v132
    %v273 = vunpack.c.h.b16 %v132
    %v274 = vunpack.c.l.b16 %v133
    %v275 = vunpack.c.h.b16 %v133
    %v276 = vunpack.c.l.b16 %v134
    %v277 = vunpack.c.h.b16 %v134
    %v278 = vunpack.c.l.b16 %v135
    %v279 = vunpack.c.h.b16 %v135
    %v280 = vpack.c.b16 %v220, %v216
    %v281 = vpack.c.b16 %v221, %v217
    %v282 = vpack.c.b16 %v222, %v218
    %v283 = vpack.c.b16 %v223, %v219
    %v284 = vpack.c.b16 %v228, %v224
    %v285 = vpack.c.b16 %v229, %v225
    %v286 = vpack.c.b16 %v230, %v226
    %v287 = vpack.c.b16 %v231, %v227
    %v288 = vpack.c.b16 %v236, %v232
    %v289 = vpack.c.b16 %v237, %v233
    %v290 = vpack.c.b16 %v238, %v234
    %v291 = vpack.c.b16 %v239, %v235
    %v292 = vpack.c.b16 %v244, %v240
    %v293 = vpack.c.b16 %v245, %v241
    %v294 = vpack.c.b16 %v246, %v242
    %v295 = vpack.c.b16 %v247, %v243
    %v296 = vpack.c.b16 %v252, %v248
    %v297 = vpack.c.b16 %v253, %v249
    %v298 = vpack.c.b16 %v254, %v250
    %v299 = vpack.c.b16 %v255, %v251
    %v300 = vpack.c.b16 %v260, %v256
    %v301 = vpack.c.b16 %v261, %v257
    %v302 = vpack.c.b16 %v262, %v258
    %v303 = vpack.c.b16 %v263, %v259
    %v304 = vpack.c.b16 %v268, %v264
    %v305 = vpack.c.b16 %v269, %v265
    %v306 = vpack.c.b16 %v270, %v266
    %v307 = vpack.c.b16 %v271, %v267
    %v308 = vpack.c.b16 %v276, %v272
    %v309 = vpack.c.b16 %v277, %v273
    %v310 = vpack.c.b16 %v278, %v274
    %v311 = vpack.c.b16 %v279, %v275
    %344 = vmatprep.subr.bf16.mxu0 %v309
    %345 = vmatpush1.bf16.msra.mxu0 %v308
    %346 = vmatprep.subr.bf16.mxu0 %v305
    %347 = vmatpush1.bf16.msra.mxu0 %v304
    %348 = vmatprep.subr.bf16.mxu0 %v301
    %349 = vmatpush1.bf16.msra.mxu0 %v300
    %350 = vmatprep.subr.bf16.mxu0 %v297
    %351 = vmatpush1.bf16.msra.mxu0 %v296
    %352 = vmatprep.subr.bf16.mxu0 %v293
    %353 = vmatpush1.bf16.msra.mxu0 %v292
    %354 = vmatprep.subr.bf16.mxu0 %v289
    %355 = vmatpush1.bf16.msra.mxu0 %v288
    %356 = vmatprep.subr.bf16.mxu0 %v285
    %357 = vmatpush1.bf16.msra.mxu0 %v284
    %358 = vmatprep.subr.bf16.mxu0 %v281
    %359 = vmatpush1.bf16.msra.mxu0 %v280
    %360 = vmatprep.subr.bf16.mxu0 0
    %361 = vmatpush2.bf16.msra.mxu0 0
    %362 = vmatprep.subr.bf16.mxu0 0
    %363 = vmatpush2.bf16.msra.mxu0 0
    %364 = vmatprep.subr.bf16.mxu0 0
    %365 = vmatpush2.bf16.msra.mxu0 0
    %366 = vmatprep.subr.bf16.mxu0 0
    %367 = vmatpush2.bf16.msra.mxu0 0
    %368 = vmatprep.subr.bf16.mxu0 0
    %369 = vmatpush2.bf16.msra.mxu0 0
    %370 = vmatprep.subr.bf16.mxu0 0
    %371 = vmatpush2.bf16.msra.mxu0 0
    %372 = vmatprep.subr.bf16.mxu0 0
    %373 = vmatpush2.bf16.msra.mxu0 0
    %374 = vmatprep.subr.bf16.mxu0 0
    %375 = vmatpush2.bf16.msra.mxu0 0
    %376 = vmatprep.mubr.bf16.mxu0 0
    %377 = vmatmul.mubr.bf16.gmra.mxu0 %v168
    %v378 = vpop.f32.mrf.mxu0
    %v379 = vadd.f32 0.0, %v378
    %v380 = vpop.f32.mrf.mxu0
    %v381 = vadd.f32 0.0, %v380
    %v382 = vpop.f32.mrf.mxu0
    %v383 = vadd.f32 0.0, %v382
    %v384 = vpop.f32.mrf.mxu0
    %v385 = vadd.f32 0.0, %v384
    %386 = vmatprep.mubr.bf16.mxu0 0
    %387 = vmatmul.mubr.bf16.gmra.mxu0 %v169
    %v388 = vpop.f32.mrf.mxu0
    %v389 = vadd.f32 0.0, %v388
    %v390 = vpop.f32.mrf.mxu0
    %v391 = vadd.f32 0.0, %v390
    %v392 = vpop.f32.mrf.mxu0
    %v393 = vadd.f32 0.0, %v392
    %v394 = vpop.f32.mrf.mxu0
    %v395 = vadd.f32 0.0, %v394
    %396 = vmatprep.mubr.bf16.mxu0 0
    %397 = vmatmul.mubr.bf16.gmra.mxu0 %v170
    %v398 = vpop.f32.mrf.mxu0
    %v399 = vadd.f32 0.0, %v398
    %v400 = vpop.f32.mrf.mxu0
    %v401 = vadd.f32 0.0, %v400
    %v402 = vpop.f32.mrf.mxu0
    %v403 = vadd.f32 0.0, %v402
    %v404 = vpop.f32.mrf.mxu0
    %v405 = vadd.f32 0.0, %v404
    %406 = vmatprep.mubr.bf16.mxu0 0
    %407 = vmatmul.mubr.bf16.gmra.mxu0 %v171
    %v408 = vpop.f32.mrf.mxu0
    %v409 = vadd.f32 0.0, %v408
    %v410 = vpop.f32.mrf.mxu0
    %v411 = vadd.f32 0.0, %v410
    %v412 = vpop.f32.mrf.mxu0
    %v413 = vadd.f32 0.0, %v412
    %v414 = vpop.f32.mrf.mxu0
    %v415 = vadd.f32 0.0, %v414
    %416 = vmatprep.mubr.bf16.mxu0 0
    %417 = vmatmul.mubr.bf16.gmra.mxu0 %v172
    %v418 = vpop.f32.mrf.mxu0
    %v419 = vadd.f32 0.0, %v418
    %v420 = vpop.f32.mrf.mxu0
    %v421 = vadd.f32 0.0, %v420
    %v422 = vpop.f32.mrf.mxu0
    %v423 = vadd.f32 0.0, %v422
    %v424 = vpop.f32.mrf.mxu0
    %v425 = vadd.f32 0.0, %v424
    %426 = vmatprep.mubr.bf16.mxu0 0
    %427 = vmatmul.mubr.bf16.gmra.mxu0 %v173
    %v428 = vpop.f32.mrf.mxu0
    %v429 = vadd.f32 0.0, %v428
    %v430 = vpop.f32.mrf.mxu0
    %v431 = vadd.f32 0.0, %v430
    %v432 = vpop.f32.mrf.mxu0
    %v433 = vadd.f32 0.0, %v432
    %v434 = vpop.f32.mrf.mxu0
    %v435 = vadd.f32 0.0, %v434
    %436 = vmatprep.mubr.bf16.mxu0 0
    %437 = vmatmul.mubr.bf16.gmra.mxu0 %v174
    %v438 = vpop.f32.mrf.mxu0
    %v439 = vadd.f32 0.0, %v438
    %v440 = vpop.f32.mrf.mxu0
    %v441 = vadd.f32 0.0, %v440
    %v442 = vpop.f32.mrf.mxu0
    %v443 = vadd.f32 0.0, %v442
    %v444 = vpop.f32.mrf.mxu0
    %v445 = vadd.f32 0.0, %v444
    %446 = vmatprep.mubr.bf16.mxu0 0
    %447 = vmatmul.mubr.bf16.gmra.mxu0 %v175
    %v448 = vpop.f32.mrf.mxu0
    %v449 = vadd.f32 0.0, %v448
    %v450 = vpop.f32.mrf.mxu0
    %v451 = vadd.f32 0.0, %v450
    %v452 = vpop.f32.mrf.mxu0
    %v453 = vadd.f32 0.0, %v452
    %v454 = vpop.f32.mrf.mxu0
    %v455 = vadd.f32 0.0, %v454
    %456 = vdwg.mxu0
    %457 = vmatprep.subr.bf16.mxu0 %v311
    %458 = vmatpush1.bf16.msra.mxu0 %v310
    %459 = vmatprep.subr.bf16.mxu0 %v307
    %460 = vmatpush1.bf16.msra.mxu0 %v306
    %461 = vmatprep.subr.bf16.mxu0 %v303
    %462 = vmatpush1.bf16.msra.mxu0 %v302
    %463 = vmatprep.subr.bf16.mxu0 %v299
    %464 = vmatpush1.bf16.msra.mxu0 %v298
    %465 = vmatprep.subr.bf16.mxu0 %v295
    %466 = vmatpush1.bf16.msra.mxu0 %v294
    %467 = vmatprep.subr.bf16.mxu0 %v291
    %468 = vmatpush1.bf16.msra.mxu0 %v290
    %469 = vmatprep.subr.bf16.mxu0 %v287
    %470 = vmatpush1.bf16.msra.mxu0 %v286
    %471 = vmatprep.subr.bf16.mxu0 %v283
    %472 = vmatpush1.bf16.msra.mxu0 %v282
    %473 = vmatprep.subr.bf16.mxu0 0
    %474 = vmatpush2.bf16.msra.mxu0 0
    %475 = vmatprep.subr.bf16.mxu0 0
    %476 = vmatpush2.bf16.msra.mxu0 0
    %477 = vmatprep.subr.bf16.mxu0 0
    %478 = vmatpush2.bf16.msra.mxu0 0
    %479 = vmatprep.subr.bf16.mxu0 0
    %480 = vmatpush2.bf16.msra.mxu0 0
    %481 = vmatprep.subr.bf16.mxu0 0
    %482 = vmatpush2.bf16.msra.mxu0 0
    %483 = vmatprep.subr.bf16.mxu0 0
    %484 = vmatpush2.bf16.msra.mxu0 0
    %485 = vmatprep.subr.bf16.mxu0 0
    %486 = vmatpush2.bf16.msra.mxu0 0
    %487 = vmatprep.subr.bf16.mxu0 0
    %488 = vmatpush2.bf16.msra.mxu0 0
    %489 = vmatprep.mubr.bf16.mxu0 0
    %490 = vmatmul.mubr.bf16.gmra.mxu0 %v168
    %v491 = vpop.f32.mrf.mxu0
    %v492 = vadd.f32 0.0, %v491
    %v493 = vpop.f32.mrf.mxu0
    %v494 = vadd.f32 0.0, %v493
    %v495 = vpop.f32.mrf.mxu0
    %v496 = vadd.f32 0.0, %v495
    %v497 = vpop.f32.mrf.mxu0
    %v498 = vadd.f32 0.0, %v497
    %499 = vmatprep.mubr.bf16.mxu0 0
    %500 = vmatmul.mubr.bf16.gmra.mxu0 %v169
    %v501 = vpop.f32.mrf.mxu0
    %v502 = vadd.f32 0.0, %v501
    %v503 = vpop.f32.mrf.mxu0
    %v504 = vadd.f32 0.0, %v503
    %v505 = vpop.f32.mrf.mxu0
    %v506 = vadd.f32 0.0, %v505
    %v507 = vpop.f32.mrf.mxu0
    %v508 = vadd.f32 0.0, %v507
    %509 = vmatprep.mubr.bf16.mxu0 0
    %510 = vmatmul.mubr.bf16.gmra.mxu0 %v170
    %v511 = vpop.f32.mrf.mxu0
    %v512 = vadd.f32 0.0, %v511
    %v513 = vpop.f32.mrf.mxu0
    %v514 = vadd.f32 0.0, %v513
    %v515 = vpop.f32.mrf.mxu0
    %v516 = vadd.f32 0.0, %v515
    %v517 = vpop.f32.mrf.mxu0
    %v518 = vadd.f32 0.0, %v517
    %519 = vmatprep.mubr.bf16.mxu0 0
    %520 = vmatmul.mubr.bf16.gmra.mxu0 %v171
    %v521 = vpop.f32.mrf.mxu0
    %v522 = vadd.f32 0.0, %v521
    %v523 = vpop.f32.mrf.mxu0
    %v524 = vadd.f32 0.0, %v523
    %v525 = vpop.f32.mrf.mxu0
    %v526 = vadd.f32 0.0, %v525
    %v527 = vpop.f32.mrf.mxu0
    %v528 = vadd.f32 0.0, %v527
    %529 = vmatprep.mubr.bf16.mxu0 0
    %530 = vmatmul.mubr.bf16.gmra.mxu0 %v172
    %v531 = vpop.f32.mrf.mxu0
    %v532 = vadd.f32 0.0, %v531
    %v533 = vpop.f32.mrf.mxu0
    %v534 = vadd.f32 0.0, %v533
    %v535 = vpop.f32.mrf.mxu0
    %v536 = vadd.f32 0.0, %v535
    %v537 = vpop.f32.mrf.mxu0
    %v538 = vadd.f32 0.0, %v537
    %539 = vmatprep.mubr.bf16.mxu0 0
    %540 = vmatmul.mubr.bf16.gmra.mxu0 %v173
    %v541 = vpop.f32.mrf.mxu0
    %v542 = vadd.f32 0.0, %v541
    %v543 = vpop.f32.mrf.mxu0
    %v544 = vadd.f32 0.0, %v543
    %v545 = vpop.f32.mrf.mxu0
    %v546 = vadd.f32 0.0, %v545
    %v547 = vpop.f32.mrf.mxu0
    %v548 = vadd.f32 0.0, %v547
    %549 = vmatprep.mubr.bf16.mxu0 0
    %550 = vmatmul.mubr.bf16.gmra.mxu0 %v174
    %v551 = vpop.f32.mrf.mxu0
    %v552 = vadd.f32 0.0, %v551
    %v553 = vpop.f32.mrf.mxu0
    %v554 = vadd.f32 0.0, %v553
    %v555 = vpop.f32.mrf.mxu0
    %v556 = vadd.f32 0.0, %v555
    %v557 = vpop.f32.mrf.mxu0
    %v558 = vadd.f32 0.0, %v557
    %559 = vmatprep.mubr.bf16.mxu0 0
    %560 = vmatmul.mubr.bf16.gmra.mxu0 %v175
    %v561 = vpop.f32.mrf.mxu0
    %v562 = vadd.f32 0.0, %v561
    %v563 = vpop.f32.mrf.mxu0
    %v564 = vadd.f32 0.0, %v563
    %v565 = vpop.f32.mrf.mxu0
    %v566 = vadd.f32 0.0, %v565
    %v567 = vpop.f32.mrf.mxu0
    %v568 = vadd.f32 0.0, %v567
    %569 = vdwg.mxu0
    %v570 = vpack.c.bf16 %v383, %v379
    %v571 = vpack.c.bf16 %v385, %v381
    %v572 = vpack.c.bf16 %v496, %v492
    %v573 = vpack.c.bf16 %v498, %v494
    %v574 = vpack.c.bf16 %v393, %v389
    %v575 = vpack.c.bf16 %v395, %v391
    %v576 = vpack.c.bf16 %v506, %v502
    %v577 = vpack.c.bf16 %v508, %v504
    %v578 = vpack.c.bf16 %v403, %v399
    %v579 = vpack.c.bf16 %v405, %v401
    %v580 = vpack.c.bf16 %v516, %v512
    %v581 = vpack.c.bf16 %v518, %v514
    %v582 = vpack.c.bf16 %v413, %v409
    %v583 = vpack.c.bf16 %v415, %v411
    %v584 = vpack.c.bf16 %v526, %v522
    %v585 = vpack.c.bf16 %v528, %v524
    %v586 = vpack.c.bf16 %v423, %v419
    %v587 = vpack.c.bf16 %v425, %v421
    %v588 = vpack.c.bf16 %v536, %v532
    %v589 = vpack.c.bf16 %v538, %v534
    %v590 = vpack.c.bf16 %v433, %v429
    %v591 = vpack.c.bf16 %v435, %v431
    %v592 = vpack.c.bf16 %v546, %v542
    %v593 = vpack.c.bf16 %v548, %v544
    %v594 = vpack.c.bf16 %v443, %v439
    %v595 = vpack.c.bf16 %v445, %v441
    %v596 = vpack.c.bf16 %v556, %v552
    %v597 = vpack.c.bf16 %v558, %v554
    %v598 = vpack.c.bf16 %v453, %v449
    %v599 = vpack.c.bf16 %v455, %v451
    %v600 = vpack.c.bf16 %v566, %v562
    %v601 = vpack.c.bf16 %v568, %v564
    %v634 = vunpack.c.l.b16 %v570
    %v635 = vunpack.c.l.b16 %v571
    %v636 = vunpack.c.l.b16 %v572
    %v637 = vunpack.c.l.b16 %v573
    %v638 = vunpack.c.h.b16 %v570
    %v639 = vunpack.c.h.b16 %v571
    %v640 = vunpack.c.h.b16 %v572
    %v641 = vunpack.c.h.b16 %v573
    %v642 = vunpack.c.l.b16 %v574
    %v643 = vunpack.c.l.b16 %v575
    %v644 = vunpack.c.l.b16 %v576
    %v645 = vunpack.c.l.b16 %v577
    %v646 = vunpack.c.h.b16 %v574
    %v647 = vunpack.c.h.b16 %v575
    %v648 = vunpack.c.h.b16 %v576
    %v649 = vunpack.c.h.b16 %v577
    %v650 = vunpack.c.l.b16 %v578
    %v651 = vunpack.c.l.b16 %v579
    %v652 = vunpack.c.l.b16 %v580
    %v653 = vunpack.c.l.b16 %v581
    %v654 = vunpack.c.h.b16 %v578
    %v655 = vunpack.c.h.b16 %v579
    %v656 = vunpack.c.h.b16 %v580
    %v657 = vunpack.c.h.b16 %v581
    %v658 = vunpack.c.l.b16 %v582
    %v659 = vunpack.c.l.b16 %v583
    %v660 = vunpack.c.l.b16 %v584
    %v661 = vunpack.c.l.b16 %v585
    %v662 = vunpack.c.h.b16 %v582
    %v663 = vunpack.c.h.b16 %v583
    %v664 = vunpack.c.h.b16 %v584
    %v665 = vunpack.c.h.b16 %v585
    %v666 = vunpack.c.l.b16 %v586
    %v667 = vunpack.c.l.b16 %v587
    %v668 = vunpack.c.l.b16 %v588
    %v669 = vunpack.c.l.b16 %v589
    %v670 = vunpack.c.h.b16 %v586
    %v671 = vunpack.c.h.b16 %v587
    %v672 = vunpack.c.h.b16 %v588
    %v673 = vunpack.c.h.b16 %v589
    %v674 = vunpack.c.l.b16 %v590
    %v675 = vunpack.c.l.b16 %v591
    %v676 = vunpack.c.l.b16 %v592
    %v677 = vunpack.c.l.b16 %v593
    %v678 = vunpack.c.h.b16 %v590
    %v679 = vunpack.c.h.b16 %v591
    %v680 = vunpack.c.h.b16 %v592
    %v681 = vunpack.c.h.b16 %v593
    %v682 = vunpack.c.l.b16 %v594
    %v683 = vunpack.c.l.b16 %v595
    %v684 = vunpack.c.l.b16 %v596
    %v685 = vunpack.c.l.b16 %v597
    %v686 = vunpack.c.h.b16 %v594
    %v687 = vunpack.c.h.b16 %v595
    %v688 = vunpack.c.h.b16 %v596
    %v689 = vunpack.c.h.b16 %v597
    %v690 = vunpack.c.l.b16 %v598
    %v691 = vunpack.c.l.b16 %v599
    %v692 = vunpack.c.l.b16 %v600
    %v693 = vunpack.c.l.b16 %v601
    %v694 = vunpack.c.h.b16 %v598
    %v695 = vunpack.c.h.b16 %v599
    %v696 = vunpack.c.h.b16 %v600
    %v697 = vunpack.c.h.b16 %v601
    %v698 = vpack.c.b16 %v635, %v634
    %v699 = vpack.c.b16 %v637, %v636
    %v700 = vpack.c.b16 %v639, %v638
    %v701 = vpack.c.b16 %v641, %v640
    %v702 = vpack.c.b16 %v643, %v642
    %v703 = vpack.c.b16 %v645, %v644
    %v704 = vpack.c.b16 %v647, %v646
    %v705 = vpack.c.b16 %v649, %v648
    %v706 = vpack.c.b16 %v651, %v650
    %v707 = vpack.c.b16 %v653, %v652
    %v708 = vpack.c.b16 %v655, %v654
    %v709 = vpack.c.b16 %v657, %v656
    %v710 = vpack.c.b16 %v659, %v658
    %v711 = vpack.c.b16 %v661, %v660
    %v712 = vpack.c.b16 %v663, %v662
    %v713 = vpack.c.b16 %v665, %v664
    %v714 = vpack.c.b16 %v667, %v666
    %v715 = vpack.c.b16 %v669, %v668
    %v716 = vpack.c.b16 %v671, %v670
    %v717 = vpack.c.b16 %v673, %v672
    %v718 = vpack.c.b16 %v675, %v674
    %v719 = vpack.c.b16 %v677, %v676
    %v720 = vpack.c.b16 %v679, %v678
    %v721 = vpack.c.b16 %v681, %v680
    %v722 = vpack.c.b16 %v683, %v682
    %v723 = vpack.c.b16 %v685, %v684
    %v724 = vpack.c.b16 %v687, %v686
    %v725 = vpack.c.b16 %v689, %v688
    %v726 = vpack.c.b16 %v691, %v690
    %v727 = vpack.c.b16 %v693, %v692
    %v728 = vpack.c.b16 %v695, %v694
    %v729 = vpack.c.b16 %v697, %v696
    %762 = vst [vmem:[#allocation4] sm:$0xff] %v698
    %763 = vst [vmem:[#allocation4 + $0x8] sm:$0xff] %v699
    %764 = vst [vmem:[#allocation4 + $0x10] sm:$0xff] %v700
    %765 = vst [vmem:[#allocation4 + $0x18] sm:$0xff] %v701
    %766 = vst [vmem:[#allocation4 + $0x20] sm:$0xff] %v702
    %767 = vst [vmem:[#allocation4 + $0x28] sm:$0xff] %v703
    %768 = vst [vmem:[#allocation4 + $0x30] sm:$0xff] %v704
    %769 = vst [vmem:[#allocation4 + $0x38] sm:$0xff] %v705
    %770 = vst [vmem:[#allocation4 + $0x40] sm:$0xff] %v706
    %771 = vst [vmem:[#allocation4 + $0x48] sm:$0xff] %v707
    %772 = vst [vmem:[#allocation4 + $0x50] sm:$0xff] %v708
    %773 = vst [vmem:[#allocation4 + $0x58] sm:$0xff] %v709
    %774 = vst [vmem:[#allocation4 + $0x60] sm:$0xff] %v710
    %775 = vst [vmem:[#allocation4 + $0x68] sm:$0xff] %v711
    %776 = vst [vmem:[#allocation4 + $0x70] sm:$0xff] %v712
    %777 = vst [vmem:[#allocation4 + $0x78] sm:$0xff] %v713
    %778 = vst [vmem:[#allocation4 + $0x80] sm:$0xff] %v714
    %779 = vst [vmem:[#allocation4 + $0x88] sm:$0xff] %v715
    %780 = vst [vmem:[#allocation4 + $0x90] sm:$0xff] %v716
    %781 = vst [vmem:[#allocation4 + $0x98] sm:$0xff] %v717
    %782 = vst [vmem:[#allocation4 + $0xa0] sm:$0xff] %v718
    %783 = vst [vmem:[#allocation4 + $0xa8] sm:$0xff] %v719
    %784 = vst [vmem:[#allocation4 + $0xb0] sm:$0xff] %v720
    %785 = vst [vmem:[#allocation4 + $0xb8] sm:$0xff] %v721
    %786 = vst [vmem:[#allocation4 + $0xc0] sm:$0xff] %v722
    %787 = vst [vmem:[#allocation4 + $0xc8] sm:$0xff] %v723
    %788 = vst [vmem:[#allocation4 + $0xd0] sm:$0xff] %v724
    %789 = vst [vmem:[#allocation4 + $0xd8] sm:$0xff] %v725
    %790 = vst [vmem:[#allocation4 + $0xe0] sm:$0xff] %v726
    %791 = vst [vmem:[#allocation4 + $0xe8] sm:$0xff] %v727
    %792 = vst [vmem:[#allocation4 + $0xf0] sm:$0xff] %v728
    %793 = vst [vmem:[#allocation4 + $0xf8] sm:$0xff] %v729
    %v794 = vld [vmem:[%s3] sm:$0xf]
    %v796 = vlaneseq
    %v797 = vshrl.u32 %v796, 7
    %v798 = vsub.s32 0, %v797
    %v799 = vrot.slane %v794, %v798
    %v800 = vlaneseq
    %v801 = vshrl.u32 %v800, 7
    %v802 = vsub.s32 1, %v801
    %v803 = vrot.slane %v794, %v802
    %v804 = vlaneseq
    %v805 = vshrl.u32 %v804, 7
    %v806 = vsub.s32 2, %v805
    %v807 = vrot.slane %v794, %v806
    %v808 = vlaneseq
    %v809 = vshrl.u32 %v808, 7
    %v810 = vsub.s32 3, %v809
    %v811 = vrot.slane %v794, %v810
    %v816 = vld [vmem:[#allocation2] sm:$0xff]
    %v817 = vld [vmem:[#allocation2 + $0x8] sm:$0xff]
    %v818 = vld [vmem:[#allocation3] sm:$0xff]
    %v819 = vld [vmem:[#allocation3 + $0x8] sm:$0xff]
    %v820 = vpack.c.bf16 %v817, %v816
    %v821 = vld [vmem:[#allocation4] sm:$0xff]
    %v822 = vld [vmem:[#allocation4 + $0x8] sm:$0xff]
    %v823 = vld [vmem:[#allocation4 + $0x10] sm:$0xff]
    %v824 = vld [vmem:[#allocation4 + $0x18] sm:$0xff]
    %v825 = vunpack.c.l.bf16 %v821
    %v826 = vunpack.c.h.bf16 %v821
    %v827 = vunpack.c.l.bf16 %v822
    %v828 = vunpack.c.h.bf16 %v822
    %v829 = vunpack.c.l.bf16 %v823
    %v830 = vunpack.c.h.bf16 %v823
    %v831 = vunpack.c.l.bf16 %v824
    %v832 = vunpack.c.h.bf16 %v824
    %v833 = vld [vmem:[#allocation10] sm:$0xff]
    %v834 = vld [vmem:[#allocation10 + $0x8] sm:$0xff]
    %v835 = vld [vmem:[#allocation10 + $0x10] sm:$0xff]
    %v836 = vld [vmem:[#allocation10 + $0x18] sm:$0xff]
    %v837 = vld [vmem:[#allocation10 + $0x20] sm:$0xff]
    %v838 = vld [vmem:[#allocation10 + $0x28] sm:$0xff]
    %v839 = vld [vmem:[#allocation10 + $0x30] sm:$0xff]
    %v840 = vld [vmem:[#allocation10 + $0x38] sm:$0xff]
    %v841 = vld [vmem:[#allocation10 + $0x40] sm:$0xff]
    %v842 = vld [vmem:[#allocation10 + $0x48] sm:$0xff]
    %v843 = vld [vmem:[#allocation10 + $0x50] sm:$0xff]
    %v844 = vld [vmem:[#allocation10 + $0x58] sm:$0xff]
    %v845 = vld [vmem:[#allocation10 + $0x60] sm:$0xff]
    %v846 = vld [vmem:[#allocation10 + $0x68] sm:$0xff]
    %v847 = vld [vmem:[#allocation10 + $0x70] sm:$0xff]
    %v848 = vld [vmem:[#allocation10 + $0x78] sm:$0xff]
    %v849 = vld [vmem:[#allocation10 + $0x80] sm:$0xff]
    %v850 = vld [vmem:[#allocation10 + $0x88] sm:$0xff]
    %v851 = vld [vmem:[#allocation10 + $0x90] sm:$0xff]
    %v852 = vld [vmem:[#allocation10 + $0x98] sm:$0xff]
    %v853 = vld [vmem:[#allocation10 + $0xa0] sm:$0xff]
    %v854 = vld [vmem:[#allocation10 + $0xa8] sm:$0xff]
    %v855 = vld [vmem:[#allocation10 + $0xb0] sm:$0xff]
    %v856 = vld [vmem:[#allocation10 + $0xb8] sm:$0xff]
    %v857 = vld [vmem:[#allocation10 + $0xc0] sm:$0xff]
    %v858 = vld [vmem:[#allocation10 + $0xc8] sm:$0xff]
    %v859 = vld [vmem:[#allocation10 + $0xd0] sm:$0xff]
    %v860 = vld [vmem:[#allocation10 + $0xd8] sm:$0xff]
    %v861 = vld [vmem:[#allocation10 + $0xe0] sm:$0xff]
    %v862 = vld [vmem:[#allocation10 + $0xe8] sm:$0xff]
    %v863 = vld [vmem:[#allocation10 + $0xf0] sm:$0xff]
    %v864 = vld [vmem:[#allocation10 + $0xf8] sm:$0xff]
    %v897 = vunpack.c.l.b16 %v833
    %v898 = vunpack.c.h.b16 %v833
    %v899 = vunpack.c.l.b16 %v834
    %v900 = vunpack.c.h.b16 %v834
    %v901 = vunpack.c.l.b16 %v835
    %v902 = vunpack.c.h.b16 %v835
    %v903 = vunpack.c.l.b16 %v836
    %v904 = vunpack.c.h.b16 %v836
    %v905 = vunpack.c.l.b16 %v837
    %v906 = vunpack.c.h.b16 %v837
    %v907 = vunpack.c.l.b16 %v838
    %v908 = vunpack.c.h.b16 %v838
    %v909 = vunpack.c.l.b16 %v839
    %v910 = vunpack.c.h.b16 %v839
    %v911 = vunpack.c.l.b16 %v840
    %v912 = vunpack.c.h.b16 %v840
    %v913 = vunpack.c.l.b16 %v841
    %v914 = vunpack.c.h.b16 %v841
    %v915 = vunpack.c.l.b16 %v842
    %v916 = vunpack.c.h.b16 %v842
    %v917 = vunpack.c.l.b16 %v843
    %v918 = vunpack.c.h.b16 %v843
    %v919 = vunpack.c.l.b16 %v844
    %v920 = vunpack.c.h.b16 %v844
    %v921 = vunpack.c.l.b16 %v845
    %v922 = vunpack.c.h.b16 %v845
    %v923 = vunpack.c.l.b16 %v846
    %v924 = vunpack.c.h.b16 %v846
    %v925 = vunpack.c.l.b16 %v847
    %v926 = vunpack.c.h.b16 %v847
    %v927 = vunpack.c.l.b16 %v848
    %v928 = vunpack.c.h.b16 %v848
    %v929 = vunpack.c.l.b16 %v849
    %v930 = vunpack.c.h.b16 %v849
    %v931 = vunpack.c.l.b16 %v850
    %v932 = vunpack.c.h.b16 %v850
    %v933 = vunpack.c.l.b16 %v851
    %v934 = vunpack.c.h.b16 %v851
    %v935 = vunpack.c.l.b16 %v852
    %v936 = vunpack.c.h.b16 %v852
    %v937 = vunpack.c.l.b16 %v853
    %v938 = vunpack.c.h.b16 %v853
    %v939 = vunpack.c.l.b16 %v854
    %v940 = vunpack.c.h.b16 %v854
    %v941 = vunpack.c.l.b16 %v855
    %v942 = vunpack.c.h.b16 %v855
    %v943 = vunpack.c.l.b16 %v856
    %v944 = vunpack.c.h.b16 %v856
    %v945 = vunpack.c.l.b16 %v857
    %v946 = vunpack.c.h.b16 %v857
    %v947 = vunpack.c.l.b16 %v858
    %v948 = vunpack.c.h.b16 %v858
    %v949 = vunpack.c.l.b16 %v859
    %v950 = vunpack.c.h.b16 %v859
    %v951 = vunpack.c.l.b16 %v860
    %v952 = vunpack.c.h.b16 %v860
    %v953 = vunpack.c.l.b16 %v861
    %v954 = vunpack.c.h.b16 %v861
    %v955 = vunpack.c.l.b16 %v862
    %v956 = vunpack.c.h.b16 %v862
    %v957 = vunpack.c.l.b16 %v863
    %v958 = vunpack.c.h.b16 %v863
    %v959 = vunpack.c.l.b16 %v864
    %v960 = vunpack.c.h.b16 %v864
    %v961 = vpack.c.b16 %v901, %v897
    %v962 = vpack.c.b16 %v902, %v898
    %v963 = vpack.c.b16 %v903, %v899
    %v964 = vpack.c.b16 %v904, %v900
    %v965 = vpack.c.b16 %v909, %v905
    %v966 = vpack.c.b16 %v910, %v906
    %v967 = vpack.c.b16 %v911, %v907
    %v968 = vpack.c.b16 %v912, %v908
    %v969 = vpack.c.b16 %v917, %v913
    %v970 = vpack.c.b16 %v918, %v914
    %v971 = vpack.c.b16 %v919, %v915
    %v972 = vpack.c.b16 %v920, %v916
    %v973 = vpack.c.b16 %v925, %v921
    %v974 = vpack.c.b16 %v926, %v922
    %v975 = vpack.c.b16 %v927, %v923
    %v976 = vpack.c.b16 %v928, %v924
    %v977 = vpack.c.b16 %v933, %v929
    %v978 = vpack.c.b16 %v934, %v930
    %v979 = vpack.c.b16 %v935, %v931
    %v980 = vpack.c.b16 %v936, %v932
    %v981 = vpack.c.b16 %v941, %v937
    %v982 = vpack.c.b16 %v942, %v938
    %v983 = vpack.c.b16 %v943, %v939
    %v984 = vpack.c.b16 %v944, %v940
    %v985 = vpack.c.b16 %v949, %v945
    %v986 = vpack.c.b16 %v950, %v946
    %v987 = vpack.c.b16 %v951, %v947
    %v988 = vpack.c.b16 %v952, %v948
    %v989 = vpack.c.b16 %v957, %v953
    %v990 = vpack.c.b16 %v958, %v954
    %v991 = vpack.c.b16 %v959, %v955
    %v992 = vpack.c.b16 %v960, %v956
    %1025 = vmatprep.subr.bf16.mxu0 %v990
    %1026 = vmatpush1.bf16.msra.mxu0 %v989
    %1027 = vmatprep.subr.bf16.mxu0 %v986
    %1028 = vmatpush1.bf16.msra.mxu0 %v985
    %1029 = vmatprep.subr.bf16.mxu0 %v982
    %1030 = vmatpush1.bf16.msra.mxu0 %v981
    %1031 = vmatprep.subr.bf16.mxu0 %v978
    %1032 = vmatpush1.bf16.msra.mxu0 %v977
    %1033 = vmatprep.subr.bf16.mxu0 %v974
    %1034 = vmatpush1.bf16.msra.mxu0 %v973
    %1035 = vmatprep.subr.bf16.mxu0 %v970
    %1036 = vmatpush1.bf16.msra.mxu0 %v969
    %1037 = vmatprep.subr.bf16.mxu0 %v966
    %1038 = vmatpush1.bf16.msra.mxu0 %v965
    %1039 = vmatprep.subr.bf16.mxu0 %v962
    %1040 = vmatpush1.bf16.msra.mxu0 %v961
    %1041 = vmatprep.subr.bf16.mxu0 0
    %1042 = vmatpush2.bf16.msra.mxu0 0
    %1043 = vmatprep.subr.bf16.mxu0 0
    %1044 = vmatpush2.bf16.msra.mxu0 0
    %1045 = vmatprep.subr.bf16.mxu0 0
    %1046 = vmatpush2.bf16.msra.mxu0 0
    %1047 = vmatprep.subr.bf16.mxu0 0
    %1048 = vmatpush2.bf16.msra.mxu0 0
    %1049 = vmatprep.subr.bf16.mxu0 0
    %1050 = vmatpush2.bf16.msra.mxu0 0
    %1051 = vmatprep.subr.bf16.mxu0 0
    %1052 = vmatpush2.bf16.msra.mxu0 0
    %1053 = vmatprep.subr.bf16.mxu0 0
    %1054 = vmatpush2.bf16.msra.mxu0 0
    %1055 = vmatprep.subr.bf16.mxu0 0
    %1056 = vmatpush2.bf16.msra.mxu0 0
    %1057 = vmatprep.mubr.bf16.mxu0 0
    %1058 = vmatmul.mubr.bf16.gmra.mxu0 %v820
    %v1059 = vpop.f32.mrf.mxu0
    %v1060 = vadd.f32 0.0, %v1059
    %v1061 = vpop.f32.mrf.mxu0
    %v1062 = vadd.f32 0.0, %v1061
    %v1063 = vpop.f32.mrf.mxu0
    %v1064 = vadd.f32 0.0, %v1063
    %v1065 = vpop.f32.mrf.mxu0
    %v1066 = vadd.f32 0.0, %v1065
    %1067 = vdwg.mxu0
    %1068 = vmatprep.subr.bf16.mxu0 %v992
    %1069 = vmatpush1.bf16.msra.mxu0 %v991
    %1070 = vmatprep.subr.bf16.mxu0 %v988
    %1071 = vmatpush1.bf16.msra.mxu0 %v987
    %1072 = vmatprep.subr.bf16.mxu0 %v984
    %1073 = vmatpush1.bf16.msra.mxu0 %v983
    %1074 = vmatprep.subr.bf16.mxu0 %v980
    %1075 = vmatpush1.bf16.msra.mxu0 %v979
    %1076 = vmatprep.subr.bf16.mxu0 %v976
    %1077 = vmatpush1.bf16.msra.mxu0 %v975
    %1078 = vmatprep.subr.bf16.mxu0 %v972
    %1079 = vmatpush1.bf16.msra.mxu0 %v971
    %1080 = vmatprep.subr.bf16.mxu0 %v968
    %1081 = vmatpush1.bf16.msra.mxu0 %v967
    %1082 = vmatprep.subr.bf16.mxu0 %v964
    %1083 = vmatpush1.bf16.msra.mxu0 %v963
    %1084 = vmatprep.subr.bf16.mxu0 0
    %1085 = vmatpush2.bf16.msra.mxu0 0
    %1086 = vmatprep.subr.bf16.mxu0 0
    %1087 = vmatpush2.bf16.msra.mxu0 0
    %1088 = vmatprep.subr.bf16.mxu0 0
    %1089 = vmatpush2.bf16.msra.mxu0 0
    %1090 = vmatprep.subr.bf16.mxu0 0
    %1091 = vmatpush2.bf16.msra.mxu0 0
    %1092 = vmatprep.subr.bf16.mxu0 0
    %1093 = vmatpush2.bf16.msra.mxu0 0
    %1094 = vmatprep.subr.bf16.mxu0 0
    %1095 = vmatpush2.bf16.msra.mxu0 0
    %1096 = vmatprep.subr.bf16.mxu0 0
    %1097 = vmatpush2.bf16.msra.mxu0 0
    %1098 = vmatprep.subr.bf16.mxu0 0
    %1099 = vmatpush2.bf16.msra.mxu0 0
    %1100 = vmatprep.mubr.bf16.mxu0 0
    %1101 = vmatmul.mubr.bf16.gmra.mxu0 %v820
    %v1102 = vpop.f32.mrf.mxu0
    %v1103 = vadd.f32 0.0, %v1102
    %v1104 = vpop.f32.mrf.mxu0
    %v1105 = vadd.f32 0.0, %v1104
    %v1106 = vpop.f32.mrf.mxu0
    %v1107 = vadd.f32 0.0, %v1106
    %v1108 = vpop.f32.mrf.mxu0
    %v1109 = vadd.f32 0.0, %v1108
    %1110 = vdwg.mxu0
    %v1111 = vadd.f32 %v825, %v1060
    %v1112 = vadd.f32 %v826, %v1062
    %v1113 = vadd.f32 %v827, %v1103
    %v1114 = vadd.f32 %v828, %v1105
    %v1115 = vadd.f32 %v829, %v1064
    %v1116 = vadd.f32 %v830, %v1066
    %v1117 = vadd.f32 %v831, %v1107
    %v1118 = vadd.f32 %v832, %v1109
    %v1119 = vadd.f32 %v1111, %v799
    %v1120 = vadd.f32 %v1112, %v803
    %v1121 = vadd.f32 %v1113, %v807
    %v1122 = vadd.f32 %v1114, %v811
    %v1123 = vadd.f32 %v1115, %v799
    %v1124 = vadd.f32 %v1116, %v803
    %v1125 = vadd.f32 %v1117, %v807
    %v1126 = vadd.f32 %v1118, %v811
    %v1127 = vxor.u32 %v1119, 2147483648
    %v1128 = vxor.u32 %v1123, 2147483648
    %v1129 = vmul.f32 %v1127, 1.442695
    %v1130 = vpow.pop %v1129
    %v1131 = vmul.f32 %v1128, 1.442695
    %v1132 = vpow.pop %v1131
    %v1133 = vadd.f32 %v1130, 1.0
    %v1134 = vadd.f32 %v1132, 1.0
    %v1135 = vrcp.pop %v1133
    %v1136 = vmul.f32 1.0, %v1135
    %v1137 = vrcp.pop %v1134
    %v1138 = vmul.f32 1.0, %v1137
    %v1139 = vxor.u32 %v1120, 2147483648
    %v1140 = vxor.u32 %v1124, 2147483648
    %v1141 = vmul.f32 %v1139, 1.442695
    %v1142 = vpow.pop %v1141
    %v1143 = vmul.f32 %v1140, 1.442695
    %v1144 = vpow.pop %v1143
    %v1145 = vadd.f32 %v1142, 1.0
    %v1146 = vadd.f32 %v1144, 1.0
    %v1147 = vrcp.pop %v1145
    %v1148 = vmul.f32 1.0, %v1147
    %v1149 = vrcp.pop %v1146
    %v1150 = vmul.f32 1.0, %v1149
    %v1151 = vtanh.pop %v1121
    %v1152 = vtanh.pop %v1125
    %v1153 = vmul.f32 %v1148, %v818
    %v1154 = vmul.f32 %v1150, %v819
    %v1155 = vmul.f32 %v1136, %v1151
    %v1156 = vmul.f32 %v1138, %v1152
    %v1157 = vadd.f32 %v1153, %v1155
    %v1158 = vadd.f32 %v1154, %v1156
    %v1159 = vxor.u32 %v1122, 2147483648
    %v1160 = vxor.u32 %v1126, 2147483648
    %v1161 = vmul.f32 %v1159, 1.442695
    %v1162 = vpow.pop %v1161
    %v1163 = vmul.f32 %v1160, 1.442695
    %v1164 = vpow.pop %v1163
    %v1165 = vadd.f32 %v1162, 1.0
    %v1166 = vadd.f32 %v1164, 1.0
    %v1167 = vrcp.pop %v1165
    %v1168 = vmul.f32 1.0, %v1167
    %v1169 = vrcp.pop %v1166
    %v1170 = vmul.f32 1.0, %v1169
    %v1171 = vtanh.pop %v1157
    %v1172 = vtanh.pop %v1158
    %v1173 = vmul.f32 %v1168, %v1171
    %v1174 = vmul.f32 %v1170, %v1172
    %v1175 = vpack.c.bf16 %v1174, %v1173
    %s1176 = scalar_lea.vmem [#allocation4], 32
    %v1177 = vld [vmem:[%s1176] sm:$0xff]
    %v1178 = vld [vmem:[%s1176 + $0x8] sm:$0xff]
    %v1179 = vld [vmem:[%s1176 + $0x10] sm:$0xff]
    %v1180 = vld [vmem:[%s1176 + $0x18] sm:$0xff]
    %v1181 = vunpack.c.l.bf16 %v1177
    %v1182 = vunpack.c.h.bf16 %v1177
    %v1183 = vunpack.c.l.bf16 %v1178
    %v1184 = vunpack.c.h.bf16 %v1178
    %v1185 = vunpack.c.l.bf16 %v1179
    %v1186 = vunpack.c.h.bf16 %v1179
    %v1187 = vunpack.c.l.bf16 %v1180
    %v1188 = vunpack.c.h.bf16 %v1180
    %1189 = vmatprep.subr.bf16.mxu0 %v990
    %1190 = vmatpush1.bf16.msra.mxu0 %v989
    %1191 = vmatprep.subr.bf16.mxu0 %v986
    %1192 = vmatpush1.bf16.msra.mxu0 %v985
    %1193 = vmatprep.subr.bf16.mxu0 %v982
    %1194 = vmatpush1.bf16.msra.mxu0 %v981
    %1195 = vmatprep.subr.bf16.mxu0 %v978
    %1196 = vmatpush1.bf16.msra.mxu0 %v977
    %1197 = vmatprep.subr.bf16.mxu0 %v974
    %1198 = vmatpush1.bf16.msra.mxu0 %v973
    %1199 = vmatprep.subr.bf16.mxu0 %v970
    %1200 = vmatpush1.bf16.msra.mxu0 %v969
    %1201 = vmatprep.subr.bf16.mxu0 %v966
    %1202 = vmatpush1.bf16.msra.mxu0 %v965
    %1203 = vmatprep.subr.bf16.mxu0 %v962
    %1204 = vmatpush1.bf16.msra.mxu0 %v961
    %1205 = vmatprep.subr.bf16.mxu0 0
    %1206 = vmatpush2.bf16.msra.mxu0 0
    %1207 = vmatprep.subr.bf16.mxu0 0
    %1208 = vmatpush2.bf16.msra.mxu0 0
    %1209 = vmatprep.subr.bf16.mxu0 0
    %1210 = vmatpush2.bf16.msra.mxu0 0
    %1211 = vmatprep.subr.bf16.mxu0 0
    %1212 = vmatpush2.bf16.msra.mxu0 0
    %1213 = vmatprep.subr.bf16.mxu0 0
    %1214 = vmatpush2.bf16.msra.mxu0 0
    %1215 = vmatprep.subr.bf16.mxu0 0
    %1216 = vmatpush2.bf16.msra.mxu0 0
    %1217 = vmatprep.subr.bf16.mxu0 0
    %1218 = vmatpush2.bf16.msra.mxu0 0
    %1219 = vmatprep.subr.bf16.mxu0 0
    %1220 = vmatpush2.bf16.msra.mxu0 0
    %1221 = vmatprep.mubr.bf16.mxu0 0
    %1222 = vmatmul.mubr.bf16.gmra.mxu0 %v1175
    %v1223 = vpop.f32.mrf.mxu0
    %v1224 = vadd.f32 0.0, %v1223
    %v1225 = vpop.f32.mrf.mxu0
    %v1226 = vadd.f32 0.0, %v1225
    %v1227 = vpop.f32.mrf.mxu0
    %v1228 = vadd.f32 0.0, %v1227
    %v1229 = vpop.f32.mrf.mxu0
    %v1230 = vadd.f32 0.0, %v1229
    %1231 = vdwg.mxu0
    %1232 = vmatprep.subr.bf16.mxu0 %v992
    %1233 = vmatpush1.bf16.msra.mxu0 %v991
    %1234 = vmatprep.subr.bf16.mxu0 %v988
    %1235 = vmatpush1.bf16.msra.mxu0 %v987
    %1236 = vmatprep.subr.bf16.mxu0 %v984
    %1237 = vmatpush1.bf16.msra.mxu0 %v983
    %1238 = vmatprep.subr.bf16.mxu0 %v980
    %1239 = vmatpush1.bf16.msra.mxu0 %v979
    %1240 = vmatprep.subr.bf16.mxu0 %v976
    %1241 = vmatpush1.bf16.msra.mxu0 %v975
    %1242 = vmatprep.subr.bf16.mxu0 %v972
    %1243 = vmatpush1.bf16.msra.mxu0 %v971
    %1244 = vmatprep.subr.bf16.mxu0 %v968
    %1245 = vmatpush1.bf16.msra.mxu0 %v967
    %1246 = vmatprep.subr.bf16.mxu0 %v964
    %1247 = vmatpush1.bf16.msra.mxu0 %v963
    %1248 = vmatprep.subr.bf16.mxu0 0
    %1249 = vmatpush2.bf16.msra.mxu0 0
    %1250 = vmatprep.subr.bf16.mxu0 0
    %1251 = vmatpush2.bf16.msra.mxu0 0
    %1252 = vmatprep.subr.bf16.mxu0 0
    %1253 = vmatpush2.bf16.msra.mxu0 0
    %1254 = vmatprep.subr.bf16.mxu0 0
    %1255 = vmatpush2.bf16.msra.mxu0 0
    %1256 = vmatprep.subr.bf16.mxu0 0
    %1257 = vmatpush2.bf16.msra.mxu0 0
    %1258 = vmatprep.subr.bf16.mxu0 0
    %1259 = vmatpush2.bf16.msra.mxu0 0
    %1260 = vmatprep.subr.bf16.mxu0 0
    %1261 = vmatpush2.bf16.msra.mxu0 0
    %1262 = vmatprep.subr.bf16.mxu0 0
    %1263 = vmatpush2.bf16.msra.mxu0 0
    %1264 = vmatprep.mubr.bf16.mxu0 0
    %1265 = vmatmul.mubr.bf16.gmra.mxu0 %v1175
    %v1266 = vpop.f32.mrf.mxu0
    %v1267 = vadd.f32 0.0, %v1266
    %v1268 = vpop.f32.mrf.mxu0
    %v1269 = vadd.f32 0.0, %v1268
    %v1270 = vpop.f32.mrf.mxu0
    %v1271 = vadd.f32 0.0, %v1270
    %v1272 = vpop.f32.mrf.mxu0
    %v1273 = vadd.f32 0.0, %v1272
    %1274 = vdwg.mxu0
    %v1275 = vadd.f32 %v1181, %v1224
    %v1276 = vadd.f32 %v1182, %v1226
    %v1277 = vadd.f32 %v1183, %v1267
    %v1278 = vadd.f32 %v1184, %v1269
    %v1279 = vadd.f32 %v1185, %v1228
    %v1280 = vadd.f32 %v1186, %v1230
    %v1281 = vadd.f32 %v1187, %v1271
    %v1282 = vadd.f32 %v1188, %v1273
    %v1283 = vadd.f32 %v1275, %v799
    %v1284 = vadd.f32 %v1276, %v803
    %v1285 = vadd.f32 %v1277, %v807
    %v1286 = vadd.f32 %v1278, %v811
    %v1287 = vadd.f32 %v1279, %v799
    %v1288 = vadd.f32 %v1280, %v803
    %v1289 = vadd.f32 %v1281, %v807
    %v1290 = vadd.f32 %v1282, %v811
    %v1291 = vxor.u32 %v1283, 2147483648
    %v1292 = vxor.u32 %v1287, 2147483648
    %v1293 = vmul.f32 %v1291, 1.442695
    %v1294 = vpow.pop %v1293
    %v1295 = vmul.f32 %v1292, 1.442695
    %v1296 = vpow.pop %v1295
    %v1297 = vadd.f32 %v1294, 1.0
    %v1298 = vadd.f32 %v1296, 1.0
    %v1299 = vrcp.pop %v1297
    %v1300 = vmul.f32 1.0, %v1299
    %v1301 = vrcp.pop %v1298
    %v1302 = vmul.f32 1.0, %v1301
    %v1303 = vxor.u32 %v1284, 2147483648
    %v1304 = vxor.u32 %v1288, 2147483648
    %v1305 = vmul.f32 %v1303, 1.442695
    %v1306 = vpow.pop %v1305
    %v1307 = vmul.f32 %v1304, 1.442695
    %v1308 = vpow.pop %v1307
    %v1309 = vadd.f32 %v1306, 1.0
    %v1310 = vadd.f32 %v1308, 1.0
    %v1311 = vrcp.pop %v1309
    %v1312 = vmul.f32 1.0, %v1311
    %v1313 = vrcp.pop %v1310
    %v1314 = vmul.f32 1.0, %v1313
    %v1315 = vtanh.pop %v1285
    %v1316 = vtanh.pop %v1289
    %v1317 = vmul.f32 %v1312, %v1157
    %v1318 = vmul.f32 %v1314, %v1158
    %v1319 = vmul.f32 %v1300, %v1315
    %v1320 = vmul.f32 %v1302, %v1316
    %v1321 = vadd.f32 %v1317, %v1319
    %v1322 = vadd.f32 %v1318, %v1320
    %v1323 = vxor.u32 %v1286, 2147483648
    %v1324 = vxor.u32 %v1290, 2147483648
    %v1325 = vmul.f32 %v1323, 1.442695
    %v1326 = vpow.pop %v1325
    %v1327 = vmul.f32 %v1324, 1.442695
    %v1328 = vpow.pop %v1327
    %v1329 = vadd.f32 %v1326, 1.0
    %v1330 = vadd.f32 %v1328, 1.0
    %v1331 = vrcp.pop %v1329
    %v1332 = vmul.f32 1.0, %v1331
    %v1333 = vrcp.pop %v1330
    %v1334 = vmul.f32 1.0, %v1333
    %v1335 = vtanh.pop %v1321
    %v1336 = vtanh.pop %v1322
    %v1337 = vmul.f32 %v1332, %v1335
    %v1338 = vmul.f32 %v1334, %v1336
    %v1339 = vpack.c.bf16 %v1338, %v1337
    %s1340 = scalar_lea.vmem [#allocation4], 64
    %v1341 = vld [vmem:[%s1340] sm:$0xff]
    %v1342 = vld [vmem:[%s1340 + $0x8] sm:$0xff]
    %v1343 = vld [vmem:[%s1340 + $0x10] sm:$0xff]
    %v1344 = vld [vmem:[%s1340 + $0x18] sm:$0xff]
    %v1345 = vunpack.c.l.bf16 %v1341
    %v1346 = vunpack.c.h.bf16 %v1341
    %v1347 = vunpack.c.l.bf16 %v1342
    %v1348 = vunpack.c.h.bf16 %v1342
    %v1349 = vunpack.c.l.bf16 %v1343
    %v1350 = vunpack.c.h.bf16 %v1343
    %v1351 = vunpack.c.l.bf16 %v1344
    %v1352 = vunpack.c.h.bf16 %v1344
    %1353 = vmatprep.subr.bf16.mxu0 %v990
    %1354 = vmatpush1.bf16.msra.mxu0 %v989
    %1355 = vmatprep.subr.bf16.mxu0 %v986
    %1356 = vmatpush1.bf16.msra.mxu0 %v985
    %1357 = vmatprep.subr.bf16.mxu0 %v982
    %1358 = vmatpush1.bf16.msra.mxu0 %v981
    %1359 = vmatprep.subr.bf16.mxu0 %v978
    %1360 = vmatpush1.bf16.msra.mxu0 %v977
    %1361 = vmatprep.subr.bf16.mxu0 %v974
    %1362 = vmatpush1.bf16.msra.mxu0 %v973
    %1363 = vmatprep.subr.bf16.mxu0 %v970
    %1364 = vmatpush1.bf16.msra.mxu0 %v969
    %1365 = vmatprep.subr.bf16.mxu0 %v966
    %1366 = vmatpush1.bf16.msra.mxu0 %v965
    %1367 = vmatprep.subr.bf16.mxu0 %v962
    %1368 = vmatpush1.bf16.msra.mxu0 %v961
    %1369 = vmatprep.subr.bf16.mxu0 0
    %1370 = vmatpush2.bf16.msra.mxu0 0
    %1371 = vmatprep.subr.bf16.mxu0 0
    %1372 = vmatpush2.bf16.msra.mxu0 0
    %1373 = vmatprep.subr.bf16.mxu0 0
    %1374 = vmatpush2.bf16.msra.mxu0 0
    %1375 = vmatprep.subr.bf16.mxu0 0
    %1376 = vmatpush2.bf16.msra.mxu0 0
    %1377 = vmatprep.subr.bf16.mxu0 0
    %1378 = vmatpush2.bf16.msra.mxu0 0
    %1379 = vmatprep.subr.bf16.mxu0 0
    %1380 = vmatpush2.bf16.msra.mxu0 0
    %1381 = vmatprep.subr.bf16.mxu0 0
    %1382 = vmatpush2.bf16.msra.mxu0 0
    %1383 = vmatprep.subr.bf16.mxu0 0
    %1384 = vmatpush2.bf16.msra.mxu0 0
    %1385 = vmatprep.mubr.bf16.mxu0 0
    %1386 = vmatmul.mubr.bf16.gmra.mxu0 %v1339
    %v1387 = vpop.f32.mrf.mxu0
    %v1388 = vadd.f32 0.0, %v1387
    %v1389 = vpop.f32.mrf.mxu0
    %v1390 = vadd.f32 0.0, %v1389
    %v1391 = vpop.f32.mrf.mxu0
    %v1392 = vadd.f32 0.0, %v1391
    %v1393 = vpop.f32.mrf.mxu0
    %v1394 = vadd.f32 0.0, %v1393
    %1395 = vdwg.mxu0
    %1396 = vmatprep.subr.bf16.mxu0 %v992
    %1397 = vmatpush1.bf16.msra.mxu0 %v991
    %1398 = vmatprep.subr.bf16.mxu0 %v988
    %1399 = vmatpush1.bf16.msra.mxu0 %v987
    %1400 = vmatprep.subr.bf16.mxu0 %v984
    %1401 = vmatpush1.bf16.msra.mxu0 %v983
    %1402 = vmatprep.subr.bf16.mxu0 %v980
    %1403 = vmatpush1.bf16.msra.mxu0 %v979
    %1404 = vmatprep.subr.bf16.mxu0 %v976
    %1405 = vmatpush1.bf16.msra.mxu0 %v975
    %1406 = vmatprep.subr.bf16.mxu0 %v972
    %1407 = vmatpush1.bf16.msra.mxu0 %v971
    %1408 = vmatprep.subr.bf16.mxu0 %v968
    %1409 = vmatpush1.bf16.msra.mxu0 %v967
    %1410 = vmatprep.subr.bf16.mxu0 %v964
    %1411 = vmatpush1.bf16.msra.mxu0 %v963
    %1412 = vmatprep.subr.bf16.mxu0 0
    %1413 = vmatpush2.bf16.msra.mxu0 0
    %1414 = vmatprep.subr.bf16.mxu0 0
    %1415 = vmatpush2.bf16.msra.mxu0 0
    %1416 = vmatprep.subr.bf16.mxu0 0
    %1417 = vmatpush2.bf16.msra.mxu0 0
    %1418 = vmatprep.subr.bf16.mxu0 0
    %1419 = vmatpush2.bf16.msra.mxu0 0
    %1420 = vmatprep.subr.bf16.mxu0 0
    %1421 = vmatpush2.bf16.msra.mxu0 0
    %1422 = vmatprep.subr.bf16.mxu0 0
    %1423 = vmatpush2.bf16.msra.mxu0 0
    %1424 = vmatprep.subr.bf16.mxu0 0
    %1425 = vmatpush2.bf16.msra.mxu0 0
    %1426 = vmatprep.subr.bf16.mxu0 0
    %1427 = vmatpush2.bf16.msra.mxu0 0
    %1428 = vmatprep.mubr.bf16.mxu0 0
    %1429 = vmatmul.mubr.bf16.gmra.mxu0 %v1339
    %v1430 = vpop.f32.mrf.mxu0
    %v1431 = vadd.f32 0.0, %v1430
    %v1432 = vpop.f32.mrf.mxu0
    %v1433 = vadd.f32 0.0, %v1432
    %v1434 = vpop.f32.mrf.mxu0
    %v1435 = vadd.f32 0.0, %v1434
    %v1436 = vpop.f32.mrf.mxu0
    %v1437 = vadd.f32 0.0, %v1436
    %1438 = vdwg.mxu0
    %v1439 = vadd.f32 %v1345, %v1388
    %v1440 = vadd.f32 %v1346, %v1390
    %v1441 = vadd.f32 %v1347, %v1431
    %v1442 = vadd.f32 %v1348, %v1433
    %v1443 = vadd.f32 %v1349, %v1392
    %v1444 = vadd.f32 %v1350, %v1394
    %v1445 = vadd.f32 %v1351, %v1435
    %v1446 = vadd.f32 %v1352, %v1437
    %v1447 = vadd.f32 %v1439, %v799
    %v1448 = vadd.f32 %v1440, %v803
    %v1449 = vadd.f32 %v1441, %v807
    %v1450 = vadd.f32 %v1442, %v811
    %v1451 = vadd.f32 %v1443, %v799
    %v1452 = vadd.f32 %v1444, %v803
    %v1453 = vadd.f32 %v1445, %v807
    %v1454 = vadd.f32 %v1446, %v811
    %v1455 = vxor.u32 %v1447, 2147483648
    %v1456 = vxor.u32 %v1451, 2147483648
    %v1457 = vmul.f32 %v1455, 1.442695
    %v1458 = vpow.pop %v1457
    %v1459 = vmul.f32 %v1456, 1.442695
    %v1460 = vpow.pop %v1459
    %v1461 = vadd.f32 %v1458, 1.0
    %v1462 = vadd.f32 %v1460, 1.0
    %v1463 = vrcp.pop %v1461
    %v1464 = vmul.f32 1.0, %v1463
    %v1465 = vrcp.pop %v1462
    %v1466 = vmul.f32 1.0, %v1465
    %v1467 = vxor.u32 %v1448, 2147483648
    %v1468 = vxor.u32 %v1452, 2147483648
    %v1469 = vmul.f32 %v1467, 1.442695
    %v1470 = vpow.pop %v1469
    %v1471 = vmul.f32 %v1468, 1.442695
    %v1472 = vpow.pop %v1471
    %v1473 = vadd.f32 %v1470, 1.0
    %v1474 = vadd.f32 %v1472, 1.0
    %v1475 = vrcp.pop %v1473
    %v1476 = vmul.f32 1.0, %v1475
    %v1477 = vrcp.pop %v1474
    %v1478 = vmul.f32 1.0, %v1477
    %v1479 = vtanh.pop %v1449
    %v1480 = vtanh.pop %v1453
    %v1481 = vmul.f32 %v1476, %v1321
    %v1482 = vmul.f32 %v1478, %v1322
    %v1483 = vmul.f32 %v1464, %v1479
    %v1484 = vmul.f32 %v1466, %v1480
    %v1485 = vadd.f32 %v1481, %v1483
    %v1486 = vadd.f32 %v1482, %v1484
    %v1487 = vxor.u32 %v1450, 2147483648
    %v1488 = vxor.u32 %v1454, 2147483648
    %v1489 = vmul.f32 %v1487, 1.442695
    %v1490 = vpow.pop %v1489
    %v1491 = vmul.f32 %v1488, 1.442695
    %v1492 = vpow.pop %v1491
    %v1493 = vadd.f32 %v1490, 1.0
    %v1494 = vadd.f32 %v1492, 1.0
    %v1495 = vrcp.pop %v1493
    %v1496 = vmul.f32 1.0, %v1495
    %v1497 = vrcp.pop %v1494
    %v1498 = vmul.f32 1.0, %v1497
    %v1499 = vtanh.pop %v1485
    %v1500 = vtanh.pop %v1486
    %v1501 = vmul.f32 %v1496, %v1499
    %v1502 = vmul.f32 %v1498, %v1500
    %v1503 = vpack.c.bf16 %v1502, %v1501
    %s1504 = scalar_lea.vmem [#allocation4], 96
    %v1505 = vld [vmem:[%s1504] sm:$0xff]
    %v1506 = vld [vmem:[%s1504 + $0x8] sm:$0xff]
    %v1507 = vld [vmem:[%s1504 + $0x10] sm:$0xff]
    %v1508 = vld [vmem:[%s1504 + $0x18] sm:$0xff]
    %v1509 = vunpack.c.l.bf16 %v1505
    %v1510 = vunpack.c.h.bf16 %v1505
    %v1511 = vunpack.c.l.bf16 %v1506
    %v1512 = vunpack.c.h.bf16 %v1506
    %v1513 = vunpack.c.l.bf16 %v1507
    %v1514 = vunpack.c.h.bf16 %v1507
    %v1515 = vunpack.c.l.bf16 %v1508
    %v1516 = vunpack.c.h.bf16 %v1508
    %1517 = vmatprep.subr.bf16.mxu0 %v990
    %1518 = vmatpush1.bf16.msra.mxu0 %v989
    %1519 = vmatprep.subr.bf16.mxu0 %v986
    %1520 = vmatpush1.bf16.msra.mxu0 %v985
    %1521 = vmatprep.subr.bf16.mxu0 %v982
    %1522 = vmatpush1.bf16.msra.mxu0 %v981
    %1523 = vmatprep.subr.bf16.mxu0 %v978
    %1524 = vmatpush1.bf16.msra.mxu0 %v977
    %1525 = vmatprep.subr.bf16.mxu0 %v974
    %1526 = vmatpush1.bf16.msra.mxu0 %v973
    %1527 = vmatprep.subr.bf16.mxu0 %v970
    %1528 = vmatpush1.bf16.msra.mxu0 %v969
    %1529 = vmatprep.subr.bf16.mxu0 %v966
    %1530 = vmatpush1.bf16.msra.mxu0 %v965
    %1531 = vmatprep.subr.bf16.mxu0 %v962
    %1532 = vmatpush1.bf16.msra.mxu0 %v961
    %1533 = vmatprep.subr.bf16.mxu0 0
    %1534 = vmatpush2.bf16.msra.mxu0 0
    %1535 = vmatprep.subr.bf16.mxu0 0
    %1536 = vmatpush2.bf16.msra.mxu0 0
    %1537 = vmatprep.subr.bf16.mxu0 0
    %1538 = vmatpush2.bf16.msra.mxu0 0
    %1539 = vmatprep.subr.bf16.mxu0 0
    %1540 = vmatpush2.bf16.msra.mxu0 0
    %1541 = vmatprep.subr.bf16.mxu0 0
    %1542 = vmatpush2.bf16.msra.mxu0 0
    %1543 = vmatprep.subr.bf16.mxu0 0
    %1544 = vmatpush2.bf16.msra.mxu0 0
    %1545 = vmatprep.subr.bf16.mxu0 0
    %1546 = vmatpush2.bf16.msra.mxu0 0
    %1547 = vmatprep.subr.bf16.mxu0 0
    %1548 = vmatpush2.bf16.msra.mxu0 0
    %1549 = vmatprep.mubr.bf16.mxu0 0
    %1550 = vmatmul.mubr.bf16.gmra.mxu0 %v1503
    %v1551 = vpop.f32.mrf.mxu0
    %v1552 = vadd.f32 0.0, %v1551
    %v1553 = vpop.f32.mrf.mxu0
    %v1554 = vadd.f32 0.0, %v1553
    %v1555 = vpop.f32.mrf.mxu0
    %v1556 = vadd.f32 0.0, %v1555
    %v1557 = vpop.f32.mrf.mxu0
    %v1558 = vadd.f32 0.0, %v1557
    %1559 = vdwg.mxu0
    %1560 = vmatprep.subr.bf16.mxu0 %v992
    %1561 = vmatpush1.bf16.msra.mxu0 %v991
    %1562 = vmatprep.subr.bf16.mxu0 %v988
    %1563 = vmatpush1.bf16.msra.mxu0 %v987
    %1564 = vmatprep.subr.bf16.mxu0 %v984
    %1565 = vmatpush1.bf16.msra.mxu0 %v983
    %1566 = vmatprep.subr.bf16.mxu0 %v980
    %1567 = vmatpush1.bf16.msra.mxu0 %v979
    %1568 = vmatprep.subr.bf16.mxu0 %v976
    %1569 = vmatpush1.bf16.msra.mxu0 %v975
    %1570 = vmatprep.subr.bf16.mxu0 %v972
    %1571 = vmatpush1.bf16.msra.mxu0 %v971
    %1572 = vmatprep.subr.bf16.mxu0 %v968
    %1573 = vmatpush1.bf16.msra.mxu0 %v967
    %1574 = vmatprep.subr.bf16.mxu0 %v964
    %1575 = vmatpush1.bf16.msra.mxu0 %v963
    %1576 = vmatprep.subr.bf16.mxu0 0
    %1577 = vmatpush2.bf16.msra.mxu0 0
    %1578 = vmatprep.subr.bf16.mxu0 0
    %1579 = vmatpush2.bf16.msra.mxu0 0
    %1580 = vmatprep.subr.bf16.mxu0 0
    %1581 = vmatpush2.bf16.msra.mxu0 0
    %1582 = vmatprep.subr.bf16.mxu0 0
    %1583 = vmatpush2.bf16.msra.mxu0 0
    %1584 = vmatprep.subr.bf16.mxu0 0
    %1585 = vmatpush2.bf16.msra.mxu0 0
    %1586 = vmatprep.subr.bf16.mxu0 0
    %1587 = vmatpush2.bf16.msra.mxu0 0
    %1588 = vmatprep.subr.bf16.mxu0 0
    %1589 = vmatpush2.bf16.msra.mxu0 0
    %1590 = vmatprep.subr.bf16.mxu0 0
    %1591 = vmatpush2.bf16.msra.mxu0 0
    %1592 = vmatprep.mubr.bf16.mxu0 0
    %1593 = vmatmul.mubr.bf16.gmra.mxu0 %v1503
    %v1594 = vpop.f32.mrf.mxu0
    %v1595 = vadd.f32 0.0, %v1594
    %v1596 = vpop.f32.mrf.mxu0
    %v1597 = vadd.f32 0.0, %v1596
    %v1598 = vpop.f32.mrf.mxu0
    %v1599 = vadd.f32 0.0, %v1598
    %v1600 = vpop.f32.mrf.mxu0
    %v1601 = vadd.f32 0.0, %v1600
    %1602 = vdwg.mxu0
    %v1603 = vadd.f32 %v1509, %v1552
    %v1604 = vadd.f32 %v1510, %v1554
    %v1605 = vadd.f32 %v1511, %v1595
    %v1606 = vadd.f32 %v1512, %v1597
    %v1607 = vadd.f32 %v1513, %v1556
    %v1608 = vadd.f32 %v1514, %v1558
    %v1609 = vadd.f32 %v1515, %v1599
    %v1610 = vadd.f32 %v1516, %v1601
    %v1611 = vadd.f32 %v1603, %v799
    %v1612 = vadd.f32 %v1604, %v803
    %v1613 = vadd.f32 %v1605, %v807
    %v1614 = vadd.f32 %v1606, %v811
    %v1615 = vadd.f32 %v1607, %v799
    %v1616 = vadd.f32 %v1608, %v803
    %v1617 = vadd.f32 %v1609, %v807
    %v1618 = vadd.f32 %v1610, %v811
    %v1619 = vxor.u32 %v1611, 2147483648
    %v1620 = vxor.u32 %v1615, 2147483648
    %v1621 = vmul.f32 %v1619, 1.442695
    %v1622 = vpow.pop %v1621
    %v1623 = vmul.f32 %v1620, 1.442695
    %v1624 = vpow.pop %v1623
    %v1625 = vadd.f32 %v1622, 1.0
    %v1626 = vadd.f32 %v1624, 1.0
    %v1627 = vrcp.pop %v1625
    %v1628 = vmul.f32 1.0, %v1627
    %v1629 = vrcp.pop %v1626
    %v1630 = vmul.f32 1.0, %v1629
    %v1631 = vxor.u32 %v1612, 2147483648
    %v1632 = vxor.u32 %v1616, 2147483648
    %v1633 = vmul.f32 %v1631, 1.442695
    %v1634 = vpow.pop %v1633
    %v1635 = vmul.f32 %v1632, 1.442695
    %v1636 = vpow.pop %v1635
    %v1637 = vadd.f32 %v1634, 1.0
    %v1638 = vadd.f32 %v1636, 1.0
    %v1639 = vrcp.pop %v1637
    %v1640 = vmul.f32 1.0, %v1639
    %v1641 = vrcp.pop %v1638
    %v1642 = vmul.f32 1.0, %v1641
    %v1643 = vtanh.pop %v1613
    %v1644 = vtanh.pop %v1617
    %v1645 = vmul.f32 %v1640, %v1485
    %v1646 = vmul.f32 %v1642, %v1486
    %v1647 = vmul.f32 %v1628, %v1643
    %v1648 = vmul.f32 %v1630, %v1644
    %v1649 = vadd.f32 %v1645, %v1647
    %v1650 = vadd.f32 %v1646, %v1648
    %v1651 = vxor.u32 %v1614, 2147483648
    %v1652 = vxor.u32 %v1618, 2147483648
    %v1653 = vmul.f32 %v1651, 1.442695
    %v1654 = vpow.pop %v1653
    %v1655 = vmul.f32 %v1652, 1.442695
    %v1656 = vpow.pop %v1655
    %v1657 = vadd.f32 %v1654, 1.0
    %v1658 = vadd.f32 %v1656, 1.0
    %v1659 = vrcp.pop %v1657
    %v1660 = vmul.f32 1.0, %v1659
    %v1661 = vrcp.pop %v1658
    %v1662 = vmul.f32 1.0, %v1661
    %v1663 = vtanh.pop %v1649
    %v1664 = vtanh.pop %v1650
    %v1665 = vmul.f32 %v1660, %v1663
    %v1666 = vmul.f32 %v1662, %v1664
    %v1667 = vpack.c.bf16 %v1666, %v1665
    %s1668 = scalar_lea.vmem [#allocation4], 128
    %v1669 = vld [vmem:[%s1668] sm:$0xff]
    %v1670 = vld [vmem:[%s1668 + $0x8] sm:$0xff]
    %v1671 = vld [vmem:[%s1668 + $0x10] sm:$0xff]
    %v1672 = vld [vmem:[%s1668 + $0x18] sm:$0xff]
    %v1673 = vunpack.c.l.bf16 %v1669
    %v1674 = vunpack.c.h.bf16 %v1669
    %v1675 = vunpack.c.l.bf16 %v1670
    %v1676 = vunpack.c.h.bf16 %v1670
    %v1677 = vunpack.c.l.bf16 %v1671
    %v1678 = vunpack.c.h.bf16 %v1671
    %v1679 = vunpack.c.l.bf16 %v1672
    %v1680 = vunpack.c.h.bf16 %v1672
    %1681 = vmatprep.subr.bf16.mxu0 %v990
    %1682 = vmatpush1.bf16.msra.mxu0 %v989
    %1683 = vmatprep.subr.bf16.mxu0 %v986
    %1684 = vmatpush1.bf16.msra.mxu0 %v985
    %1685 = vmatprep.subr.bf16.mxu0 %v982
    %1686 = vmatpush1.bf16.msra.mxu0 %v981
    %1687 = vmatprep.subr.bf16.mxu0 %v978
    %1688 = vmatpush1.bf16.msra.mxu0 %v977
    %1689 = vmatprep.subr.bf16.mxu0 %v974
    %1690 = vmatpush1.bf16.msra.mxu0 %v973
    %1691 = vmatprep.subr.bf16.mxu0 %v970
    %1692 = vmatpush1.bf16.msra.mxu0 %v969
    %1693 = vmatprep.subr.bf16.mxu0 %v966
    %1694 = vmatpush1.bf16.msra.mxu0 %v965
    %1695 = vmatprep.subr.bf16.mxu0 %v962
    %1696 = vmatpush1.bf16.msra.mxu0 %v961
    %1697 = vmatprep.subr.bf16.mxu0 0
    %1698 = vmatpush2.bf16.msra.mxu0 0
    %1699 = vmatprep.subr.bf16.mxu0 0
    %1700 = vmatpush2.bf16.msra.mxu0 0
    %1701 = vmatprep.subr.bf16.mxu0 0
    %1702 = vmatpush2.bf16.msra.mxu0 0
    %1703 = vmatprep.subr.bf16.mxu0 0
    %1704 = vmatpush2.bf16.msra.mxu0 0
    %1705 = vmatprep.subr.bf16.mxu0 0
    %1706 = vmatpush2.bf16.msra.mxu0 0
    %1707 = vmatprep.subr.bf16.mxu0 0
    %1708 = vmatpush2.bf16.msra.mxu0 0
    %1709 = vmatprep.subr.bf16.mxu0 0
    %1710 = vmatpush2.bf16.msra.mxu0 0
    %1711 = vmatprep.subr.bf16.mxu0 0
    %1712 = vmatpush2.bf16.msra.mxu0 0
    %1713 = vmatprep.mubr.bf16.mxu0 0
    %1714 = vmatmul.mubr.bf16.gmra.mxu0 %v1667
    %v1715 = vpop.f32.mrf.mxu0
    %v1716 = vadd.f32 0.0, %v1715
    %v1717 = vpop.f32.mrf.mxu0
    %v1718 = vadd.f32 0.0, %v1717
    %v1719 = vpop.f32.mrf.mxu0
    %v1720 = vadd.f32 0.0, %v1719
    %v1721 = vpop.f32.mrf.mxu0
    %v1722 = vadd.f32 0.0, %v1721
    %1723 = vdwg.mxu0
    %1724 = vmatprep.subr.bf16.mxu0 %v992
    %1725 = vmatpush1.bf16.msra.mxu0 %v991
    %1726 = vmatprep.subr.bf16.mxu0 %v988
    %1727 = vmatpush1.bf16.msra.mxu0 %v987
    %1728 = vmatprep.subr.bf16.mxu0 %v984
    %1729 = vmatpush1.bf16.msra.mxu0 %v983
    %1730 = vmatprep.subr.bf16.mxu0 %v980
    %1731 = vmatpush1.bf16.msra.mxu0 %v979
    %1732 = vmatprep.subr.bf16.mxu0 %v976
    %1733 = vmatpush1.bf16.msra.mxu0 %v975
    %1734 = vmatprep.subr.bf16.mxu0 %v972
    %1735 = vmatpush1.bf16.msra.mxu0 %v971
    %1736 = vmatprep.subr.bf16.mxu0 %v968
    %1737 = vmatpush1.bf16.msra.mxu0 %v967
    %1738 = vmatprep.subr.bf16.mxu0 %v964
    %1739 = vmatpush1.bf16.msra.mxu0 %v963
    %1740 = vmatprep.subr.bf16.mxu0 0
    %1741 = vmatpush2.bf16.msra.mxu0 0
    %1742 = vmatprep.subr.bf16.mxu0 0
    %1743 = vmatpush2.bf16.msra.mxu0 0
    %1744 = vmatprep.subr.bf16.mxu0 0
    %1745 = vmatpush2.bf16.msra.mxu0 0
    %1746 = vmatprep.subr.bf16.mxu0 0
    %1747 = vmatpush2.bf16.msra.mxu0 0
    %1748 = vmatprep.subr.bf16.mxu0 0
    %1749 = vmatpush2.bf16.msra.mxu0 0
    %1750 = vmatprep.subr.bf16.mxu0 0
    %1751 = vmatpush2.bf16.msra.mxu0 0
    %1752 = vmatprep.subr.bf16.mxu0 0
    %1753 = vmatpush2.bf16.msra.mxu0 0
    %1754 = vmatprep.subr.bf16.mxu0 0
    %1755 = vmatpush2.bf16.msra.mxu0 0
    %1756 = vmatprep.mubr.bf16.mxu0 0
    %1757 = vmatmul.mubr.bf16.gmra.mxu0 %v1667
    %v1758 = vpop.f32.mrf.mxu0
    %v1759 = vadd.f32 0.0, %v1758
    %v1760 = vpop.f32.mrf.mxu0
    %v1761 = vadd.f32 0.0, %v1760
    %v1762 = vpop.f32.mrf.mxu0
    %v1763 = vadd.f32 0.0, %v1762
    %v1764 = vpop.f32.mrf.mxu0
    %v1765 = vadd.f32 0.0, %v1764
    %1766 = vdwg.mxu0
    %v1767 = vadd.f32 %v1673, %v1716
    %v1768 = vadd.f32 %v1674, %v1718
    %v1769 = vadd.f32 %v1675, %v1759
    %v1770 = vadd.f32 %v1676, %v1761
    %v1771 = vadd.f32 %v1677, %v1720
    %v1772 = vadd.f32 %v1678, %v1722
    %v1773 = vadd.f32 %v1679, %v1763
    %v1774 = vadd.f32 %v1680, %v1765
    %v1775 = vadd.f32 %v1767, %v799
    %v1776 = vadd.f32 %v1768, %v803
    %v1777 = vadd.f32 %v1769, %v807
    %v1778 = vadd.f32 %v1770, %v811
    %v1779 = vadd.f32 %v1771, %v799
    %v1780 = vadd.f32 %v1772, %v803
    %v1781 = vadd.f32 %v1773, %v807
    %v1782 = vadd.f32 %v1774, %v811
    %v1783 = vxor.u32 %v1775, 2147483648
    %v1784 = vxor.u32 %v1779, 2147483648
    %v1785 = vmul.f32 %v1783, 1.442695
    %v1786 = vpow.pop %v1785
    %v1787 = vmul.f32 %v1784, 1.442695
    %v1788 = vpow.pop %v1787
    %v1789 = vadd.f32 %v1786, 1.0
    %v1790 = vadd.f32 %v1788, 1.0
    %v1791 = vrcp.pop %v1789
    %v1792 = vmul.f32 1.0, %v1791
    %v1793 = vrcp.pop %v1790
    %v1794 = vmul.f32 1.0, %v1793
    %v1795 = vxor.u32 %v1776, 2147483648
    %v1796 = vxor.u32 %v1780, 2147483648
    %v1797 = vmul.f32 %v1795, 1.442695
    %v1798 = vpow.pop %v1797
    %v1799 = vmul.f32 %v1796, 1.442695
    %v1800 = vpow.pop %v1799
    %v1801 = vadd.f32 %v1798, 1.0
    %v1802 = vadd.f32 %v1800, 1.0
    %v1803 = vrcp.pop %v1801
    %v1804 = vmul.f32 1.0, %v1803
    %v1805 = vrcp.pop %v1802
    %v1806 = vmul.f32 1.0, %v1805
    %v1807 = vtanh.pop %v1777
    %v1808 = vtanh.pop %v1781
    %v1809 = vmul.f32 %v1804, %v1649
    %v1810 = vmul.f32 %v1806, %v1650
    %v1811 = vmul.f32 %v1792, %v1807
    %v1812 = vmul.f32 %v1794, %v1808
    %v1813 = vadd.f32 %v1809, %v1811
    %v1814 = vadd.f32 %v1810, %v1812
    %v1815 = vxor.u32 %v1778, 2147483648
    %v1816 = vxor.u32 %v1782, 2147483648
    %v1817 = vmul.f32 %v1815, 1.442695
    %v1818 = vpow.pop %v1817
    %v1819 = vmul.f32 %v1816, 1.442695
    %v1820 = vpow.pop %v1819
    %v1821 = vadd.f32 %v1818, 1.0
    %v1822 = vadd.f32 %v1820, 1.0
    %v1823 = vrcp.pop %v1821
    %v1824 = vmul.f32 1.0, %v1823
    %v1825 = vrcp.pop %v1822
    %v1826 = vmul.f32 1.0, %v1825
    %v1827 = vtanh.pop %v1813
    %v1828 = vtanh.pop %v1814
    %v1829 = vmul.f32 %v1824, %v1827
    %v1830 = vmul.f32 %v1826, %v1828
    %v1831 = vpack.c.bf16 %v1830, %v1829
    %s1832 = scalar_lea.vmem [#allocation4], 160
    %v1833 = vld [vmem:[%s1832] sm:$0xff]
    %v1834 = vld [vmem:[%s1832 + $0x8] sm:$0xff]
    %v1835 = vld [vmem:[%s1832 + $0x10] sm:$0xff]
    %v1836 = vld [vmem:[%s1832 + $0x18] sm:$0xff]
    %v1837 = vunpack.c.l.bf16 %v1833
    %v1838 = vunpack.c.h.bf16 %v1833
    %v1839 = vunpack.c.l.bf16 %v1834
    %v1840 = vunpack.c.h.bf16 %v1834
    %v1841 = vunpack.c.l.bf16 %v1835
    %v1842 = vunpack.c.h.bf16 %v1835
    %v1843 = vunpack.c.l.bf16 %v1836
    %v1844 = vunpack.c.h.bf16 %v1836
    %1845 = vmatprep.subr.bf16.mxu0 %v990
    %1846 = vmatpush1.bf16.msra.mxu0 %v989
    %1847 = vmatprep.subr.bf16.mxu0 %v986
    %1848 = vmatpush1.bf16.msra.mxu0 %v985
    %1849 = vmatprep.subr.bf16.mxu0 %v982
    %1850 = vmatpush1.bf16.msra.mxu0 %v981
    %1851 = vmatprep.subr.bf16.mxu0 %v978
    %1852 = vmatpush1.bf16.msra.mxu0 %v977
    %1853 = vmatprep.subr.bf16.mxu0 %v974
    %1854 = vmatpush1.bf16.msra.mxu0 %v973
    %1855 = vmatprep.subr.bf16.mxu0 %v970
    %1856 = vmatpush1.bf16.msra.mxu0 %v969
    %1857 = vmatprep.subr.bf16.mxu0 %v966
    %1858 = vmatpush1.bf16.msra.mxu0 %v965
    %1859 = vmatprep.subr.bf16.mxu0 %v962
    %1860 = vmatpush1.bf16.msra.mxu0 %v961
    %1861 = vmatprep.subr.bf16.mxu0 0
    %1862 = vmatpush2.bf16.msra.mxu0 0
    %1863 = vmatprep.subr.bf16.mxu0 0
    %1864 = vmatpush2.bf16.msra.mxu0 0
    %1865 = vmatprep.subr.bf16.mxu0 0
    %1866 = vmatpush2.bf16.msra.mxu0 0
    %1867 = vmatprep.subr.bf16.mxu0 0
    %1868 = vmatpush2.bf16.msra.mxu0 0
    %1869 = vmatprep.subr.bf16.mxu0 0
    %1870 = vmatpush2.bf16.msra.mxu0 0
    %1871 = vmatprep.subr.bf16.mxu0 0
    %1872 = vmatpush2.bf16.msra.mxu0 0
    %1873 = vmatprep.subr.bf16.mxu0 0
    %1874 = vmatpush2.bf16.msra.mxu0 0
    %1875 = vmatprep.subr.bf16.mxu0 0
    %1876 = vmatpush2.bf16.msra.mxu0 0
    %1877 = vmatprep.mubr.bf16.mxu0 0
    %1878 = vmatmul.mubr.bf16.gmra.mxu0 %v1831
    %v1879 = vpop.f32.mrf.mxu0
    %v1880 = vadd.f32 0.0, %v1879
    %v1881 = vpop.f32.mrf.mxu0
    %v1882 = vadd.f32 0.0, %v1881
    %v1883 = vpop.f32.mrf.mxu0
    %v1884 = vadd.f32 0.0, %v1883
    %v1885 = vpop.f32.mrf.mxu0
    %v1886 = vadd.f32 0.0, %v1885
    %1887 = vdwg.mxu0
    %1888 = vmatprep.subr.bf16.mxu0 %v992
    %1889 = vmatpush1.bf16.msra.mxu0 %v991
    %1890 = vmatprep.subr.bf16.mxu0 %v988
    %1891 = vmatpush1.bf16.msra.mxu0 %v987
    %1892 = vmatprep.subr.bf16.mxu0 %v984
    %1893 = vmatpush1.bf16.msra.mxu0 %v983
    %1894 = vmatprep.subr.bf16.mxu0 %v980
    %1895 = vmatpush1.bf16.msra.mxu0 %v979
    %1896 = vmatprep.subr.bf16.mxu0 %v976
    %1897 = vmatpush1.bf16.msra.mxu0 %v975
    %1898 = vmatprep.subr.bf16.mxu0 %v972
    %1899 = vmatpush1.bf16.msra.mxu0 %v971
    %1900 = vmatprep.subr.bf16.mxu0 %v968
    %1901 = vmatpush1.bf16.msra.mxu0 %v967
    %1902 = vmatprep.subr.bf16.mxu0 %v964
    %1903 = vmatpush1.bf16.msra.mxu0 %v963
    %1904 = vmatprep.subr.bf16.mxu0 0
    %1905 = vmatpush2.bf16.msra.mxu0 0
    %1906 = vmatprep.subr.bf16.mxu0 0
    %1907 = vmatpush2.bf16.msra.mxu0 0
    %1908 = vmatprep.subr.bf16.mxu0 0
    %1909 = vmatpush2.bf16.msra.mxu0 0
    %1910 = vmatprep.subr.bf16.mxu0 0
    %1911 = vmatpush2.bf16.msra.mxu0 0
    %1912 = vmatprep.subr.bf16.mxu0 0
    %1913 = vmatpush2.bf16.msra.mxu0 0
    %1914 = vmatprep.subr.bf16.mxu0 0
    %1915 = vmatpush2.bf16.msra.mxu0 0
    %1916 = vmatprep.subr.bf16.mxu0 0
    %1917 = vmatpush2.bf16.msra.mxu0 0
    %1918 = vmatprep.subr.bf16.mxu0 0
    %1919 = vmatpush2.bf16.msra.mxu0 0
    %1920 = vmatprep.mubr.bf16.mxu0 0
    %1921 = vmatmul.mubr.bf16.gmra.mxu0 %v1831
    %v1922 = vpop.f32.mrf.mxu0
    %v1923 = vadd.f32 0.0, %v1922
    %v1924 = vpop.f32.mrf.mxu0
    %v1925 = vadd.f32 0.0, %v1924
    %v1926 = vpop.f32.mrf.mxu0
    %v1927 = vadd.f32 0.0, %v1926
    %v1928 = vpop.f32.mrf.mxu0
    %v1929 = vadd.f32 0.0, %v1928
    %1930 = vdwg.mxu0
    %v1931 = vadd.f32 %v1837, %v1880
    %v1932 = vadd.f32 %v1838, %v1882
    %v1933 = vadd.f32 %v1839, %v1923
    %v1934 = vadd.f32 %v1840, %v1925
    %v1935 = vadd.f32 %v1841, %v1884
    %v1936 = vadd.f32 %v1842, %v1886
    %v1937 = vadd.f32 %v1843, %v1927
    %v1938 = vadd.f32 %v1844, %v1929
    %v1939 = vadd.f32 %v1931, %v799
    %v1940 = vadd.f32 %v1932, %v803
    %v1941 = vadd.f32 %v1933, %v807
    %v1942 = vadd.f32 %v1934, %v811
    %v1943 = vadd.f32 %v1935, %v799
    %v1944 = vadd.f32 %v1936, %v803
    %v1945 = vadd.f32 %v1937, %v807
    %v1946 = vadd.f32 %v1938, %v811
    %v1947 = vxor.u32 %v1939, 2147483648
    %v1948 = vxor.u32 %v1943, 2147483648
    %v1949 = vmul.f32 %v1947, 1.442695
    %v1950 = vpow.pop %v1949
    %v1951 = vmul.f32 %v1948, 1.442695
    %v1952 = vpow.pop %v1951
    %v1953 = vadd.f32 %v1950, 1.0
    %v1954 = vadd.f32 %v1952, 1.0
    %v1955 = vrcp.pop %v1953
    %v1956 = vmul.f32 1.0, %v1955
    %v1957 = vrcp.pop %v1954
    %v1958 = vmul.f32 1.0, %v1957
    %v1959 = vxor.u32 %v1940, 2147483648
    %v1960 = vxor.u32 %v1944, 2147483648
    %v1961 = vmul.f32 %v1959, 1.442695
    %v1962 = vpow.pop %v1961
    %v1963 = vmul.f32 %v1960, 1.442695
    %v1964 = vpow.pop %v1963
    %v1965 = vadd.f32 %v1962, 1.0
    %v1966 = vadd.f32 %v1964, 1.0
    %v1967 = vrcp.pop %v1965
    %v1968 = vmul.f32 1.0, %v1967
    %v1969 = vrcp.pop %v1966
    %v1970 = vmul.f32 1.0, %v1969
    %v1971 = vtanh.pop %v1941
    %v1972 = vtanh.pop %v1945
    %v1973 = vmul.f32 %v1968, %v1813
    %v1974 = vmul.f32 %v1970, %v1814
    %v1975 = vmul.f32 %v1956, %v1971
    %v1976 = vmul.f32 %v1958, %v1972
    %v1977 = vadd.f32 %v1973, %v1975
    %v1978 = vadd.f32 %v1974, %v1976
    %v1979 = vxor.u32 %v1942, 2147483648
    %v1980 = vxor.u32 %v1946, 2147483648
    %v1981 = vmul.f32 %v1979, 1.442695
    %v1982 = vpow.pop %v1981
    %v1983 = vmul.f32 %v1980, 1.442695
    %v1984 = vpow.pop %v1983
    %v1985 = vadd.f32 %v1982, 1.0
    %v1986 = vadd.f32 %v1984, 1.0
    %v1987 = vrcp.pop %v1985
    %v1988 = vmul.f32 1.0, %v1987
    %v1989 = vrcp.pop %v1986
    %v1990 = vmul.f32 1.0, %v1989
    %v1991 = vtanh.pop %v1977
    %v1992 = vtanh.pop %v1978
    %v1993 = vmul.f32 %v1988, %v1991
    %v1994 = vmul.f32 %v1990, %v1992
    %v1995 = vpack.c.bf16 %v1994, %v1993
    %s1996 = scalar_lea.vmem [#allocation4], 192
    %v1997 = vld [vmem:[%s1996] sm:$0xff]
    %v1998 = vld [vmem:[%s1996 + $0x8] sm:$0xff]
    %v1999 = vld [vmem:[%s1996 + $0x10] sm:$0xff]
    %v2000 = vld [vmem:[%s1996 + $0x18] sm:$0xff]
    %v2001 = vunpack.c.l.bf16 %v1997
    %v2002 = vunpack.c.h.bf16 %v1997
    %v2003 = vunpack.c.l.bf16 %v1998
    %v2004 = vunpack.c.h.bf16 %v1998
    %v2005 = vunpack.c.l.bf16 %v1999
    %v2006 = vunpack.c.h.bf16 %v1999
    %v2007 = vunpack.c.l.bf16 %v2000
    %v2008 = vunpack.c.h.bf16 %v2000
    %2009 = vmatprep.subr.bf16.mxu0 %v990
    %2010 = vmatpush1.bf16.msra.mxu0 %v989
    %2011 = vmatprep.subr.bf16.mxu0 %v986
    %2012 = vmatpush1.bf16.msra.mxu0 %v985
    %2013 = vmatprep.subr.bf16.mxu0 %v982
    %2014 = vmatpush1.bf16.msra.mxu0 %v981
    %2015 = vmatprep.subr.bf16.mxu0 %v978
    %2016 = vmatpush1.bf16.msra.mxu0 %v977
    %2017 = vmatprep.subr.bf16.mxu0 %v974
    %2018 = vmatpush1.bf16.msra.mxu0 %v973
    %2019 = vmatprep.subr.bf16.mxu0 %v970
    %2020 = vmatpush1.bf16.msra.mxu0 %v969
    %2021 = vmatprep.subr.bf16.mxu0 %v966
    %2022 = vmatpush1.bf16.msra.mxu0 %v965
    %2023 = vmatprep.subr.bf16.mxu0 %v962
    %2024 = vmatpush1.bf16.msra.mxu0 %v961
    %2025 = vmatprep.subr.bf16.mxu0 0
    %2026 = vmatpush2.bf16.msra.mxu0 0
    %2027 = vmatprep.subr.bf16.mxu0 0
    %2028 = vmatpush2.bf16.msra.mxu0 0
    %2029 = vmatprep.subr.bf16.mxu0 0
    %2030 = vmatpush2.bf16.msra.mxu0 0
    %2031 = vmatprep.subr.bf16.mxu0 0
    %2032 = vmatpush2.bf16.msra.mxu0 0
    %2033 = vmatprep.subr.bf16.mxu0 0
    %2034 = vmatpush2.bf16.msra.mxu0 0
    %2035 = vmatprep.subr.bf16.mxu0 0
    %2036 = vmatpush2.bf16.msra.mxu0 0
    %2037 = vmatprep.subr.bf16.mxu0 0
    %2038 = vmatpush2.bf16.msra.mxu0 0
    %2039 = vmatprep.subr.bf16.mxu0 0
    %2040 = vmatpush2.bf16.msra.mxu0 0
    %2041 = vmatprep.mubr.bf16.mxu0 0
    %2042 = vmatmul.mubr.bf16.gmra.mxu0 %v1995
    %v2043 = vpop.f32.mrf.mxu0
    %v2044 = vadd.f32 0.0, %v2043
    %v2045 = vpop.f32.mrf.mxu0
    %v2046 = vadd.f32 0.0, %v2045
    %v2047 = vpop.f32.mrf.mxu0
    %v2048 = vadd.f32 0.0, %v2047
    %v2049 = vpop.f32.mrf.mxu0
    %v2050 = vadd.f32 0.0, %v2049
    %2051 = vdwg.mxu0
    %2052 = vmatprep.subr.bf16.mxu0 %v992
    %2053 = vmatpush1.bf16.msra.mxu0 %v991
    %2054 = vmatprep.subr.bf16.mxu0 %v988
    %2055 = vmatpush1.bf16.msra.mxu0 %v987
    %2056 = vmatprep.subr.bf16.mxu0 %v984
    %2057 = vmatpush1.bf16.msra.mxu0 %v983
    %2058 = vmatprep.subr.bf16.mxu0 %v980
    %2059 = vmatpush1.bf16.msra.mxu0 %v979
    %2060 = vmatprep.subr.bf16.mxu0 %v976
    %2061 = vmatpush1.bf16.msra.mxu0 %v975
    %2062 = vmatprep.subr.bf16.mxu0 %v972
    %2063 = vmatpush1.bf16.msra.mxu0 %v971
    %2064 = vmatprep.subr.bf16.mxu0 %v968
    %2065 = vmatpush1.bf16.msra.mxu0 %v967
    %2066 = vmatprep.subr.bf16.mxu0 %v964
    %2067 = vmatpush1.bf16.msra.mxu0 %v963
    %2068 = vmatprep.subr.bf16.mxu0 0
    %2069 = vmatpush2.bf16.msra.mxu0 0
    %2070 = vmatprep.subr.bf16.mxu0 0
    %2071 = vmatpush2.bf16.msra.mxu0 0
    %2072 = vmatprep.subr.bf16.mxu0 0
    %2073 = vmatpush2.bf16.msra.mxu0 0
    %2074 = vmatprep.subr.bf16.mxu0 0
    %2075 = vmatpush2.bf16.msra.mxu0 0
    %2076 = vmatprep.subr.bf16.mxu0 0
    %2077 = vmatpush2.bf16.msra.mxu0 0
    %2078 = vmatprep.subr.bf16.mxu0 0
    %2079 = vmatpush2.bf16.msra.mxu0 0
    %2080 = vmatprep.subr.bf16.mxu0 0
    %2081 = vmatpush2.bf16.msra.mxu0 0
    %2082 = vmatprep.subr.bf16.mxu0 0
    %2083 = vmatpush2.bf16.msra.mxu0 0
    %2084 = vmatprep.mubr.bf16.mxu0 0
    %2085 = vmatmul.mubr.bf16.gmra.mxu0 %v1995
    %v2086 = vpop.f32.mrf.mxu0
    %v2087 = vadd.f32 0.0, %v2086
    %v2088 = vpop.f32.mrf.mxu0
    %v2089 = vadd.f32 0.0, %v2088
    %v2090 = vpop.f32.mrf.mxu0
    %v2091 = vadd.f32 0.0, %v2090
    %v2092 = vpop.f32.mrf.mxu0
    %v2093 = vadd.f32 0.0, %v2092
    %2094 = vdwg.mxu0
    %v2095 = vadd.f32 %v2001, %v2044
    %v2096 = vadd.f32 %v2002, %v2046
    %v2097 = vadd.f32 %v2003, %v2087
    %v2098 = vadd.f32 %v2004, %v2089
    %v2099 = vadd.f32 %v2005, %v2048
    %v2100 = vadd.f32 %v2006, %v2050
    %v2101 = vadd.f32 %v2007, %v2091
    %v2102 = vadd.f32 %v2008, %v2093
    %v2103 = vadd.f32 %v2095, %v799
    %v2104 = vadd.f32 %v2096, %v803
    %v2105 = vadd.f32 %v2097, %v807
    %v2106 = vadd.f32 %v2098, %v811
    %v2107 = vadd.f32 %v2099, %v799
    %v2108 = vadd.f32 %v2100, %v803
    %v2109 = vadd.f32 %v2101, %v807
    %v2110 = vadd.f32 %v2102, %v811
    %v2111 = vxor.u32 %v2103, 2147483648
    %v2112 = vxor.u32 %v2107, 2147483648
    %v2113 = vmul.f32 %v2111, 1.442695
    %v2114 = vpow.pop %v2113
    %v2115 = vmul.f32 %v2112, 1.442695
    %v2116 = vpow.pop %v2115
    %v2117 = vadd.f32 %v2114, 1.0
    %v2118 = vadd.f32 %v2116, 1.0
    %v2119 = vrcp.pop %v2117
    %v2120 = vmul.f32 1.0, %v2119
    %v2121 = vrcp.pop %v2118
    %v2122 = vmul.f32 1.0, %v2121
    %v2123 = vxor.u32 %v2104, 2147483648
    %v2124 = vxor.u32 %v2108, 2147483648
    %v2125 = vmul.f32 %v2123, 1.442695
    %v2126 = vpow.pop %v2125
    %v2127 = vmul.f32 %v2124, 1.442695
    %v2128 = vpow.pop %v2127
    %v2129 = vadd.f32 %v2126, 1.0
    %v2130 = vadd.f32 %v2128, 1.0
    %v2131 = vrcp.pop %v2129
    %v2132 = vmul.f32 1.0, %v2131
    %v2133 = vrcp.pop %v2130
    %v2134 = vmul.f32 1.0, %v2133
    %v2135 = vtanh.pop %v2105
    %v2136 = vtanh.pop %v2109
    %v2137 = vmul.f32 %v2132, %v1977
    %v2138 = vmul.f32 %v2134, %v1978
    %v2139 = vmul.f32 %v2120, %v2135
    %v2140 = vmul.f32 %v2122, %v2136
    %v2141 = vadd.f32 %v2137, %v2139
    %v2142 = vadd.f32 %v2138, %v2140
    %v2143 = vxor.u32 %v2106, 2147483648
    %v2144 = vxor.u32 %v2110, 2147483648
    %v2145 = vmul.f32 %v2143, 1.442695
    %v2146 = vpow.pop %v2145
    %v2147 = vmul.f32 %v2144, 1.442695
    %v2148 = vpow.pop %v2147
    %v2149 = vadd.f32 %v2146, 1.0
    %v2150 = vadd.f32 %v2148, 1.0
    %v2151 = vrcp.pop %v2149
    %v2152 = vmul.f32 1.0, %v2151
    %v2153 = vrcp.pop %v2150
    %v2154 = vmul.f32 1.0, %v2153
    %v2155 = vtanh.pop %v2141
    %v2156 = vtanh.pop %v2142
    %v2157 = vmul.f32 %v2152, %v2155
    %v2158 = vmul.f32 %v2154, %v2156
    %v2159 = vpack.c.bf16 %v2158, %v2157
    %s2160 = scalar_lea.vmem [#allocation4], 224
    %v2161 = vld [vmem:[%s2160] sm:$0xff]
    %v2162 = vld [vmem:[%s2160 + $0x8] sm:$0xff]
    %v2163 = vld [vmem:[%s2160 + $0x10] sm:$0xff]
    %v2164 = vld [vmem:[%s2160 + $0x18] sm:$0xff]
    %v2165 = vunpack.c.l.bf16 %v2161
    %v2166 = vunpack.c.h.bf16 %v2161
    %v2167 = vunpack.c.l.bf16 %v2162
    %v2168 = vunpack.c.h.bf16 %v2162
    %v2169 = vunpack.c.l.bf16 %v2163
    %v2170 = vunpack.c.h.bf16 %v2163
    %v2171 = vunpack.c.l.bf16 %v2164
    %v2172 = vunpack.c.h.bf16 %v2164
    %2173 = vmatprep.subr.bf16.mxu0 %v990
    %2174 = vmatpush1.bf16.msra.mxu0 %v989
    %2175 = vmatprep.subr.bf16.mxu0 %v986
    %2176 = vmatpush1.bf16.msra.mxu0 %v985
    %2177 = vmatprep.subr.bf16.mxu0 %v982
    %2178 = vmatpush1.bf16.msra.mxu0 %v981
    %2179 = vmatprep.subr.bf16.mxu0 %v978
    %2180 = vmatpush1.bf16.msra.mxu0 %v977
    %2181 = vmatprep.subr.bf16.mxu0 %v974
    %2182 = vmatpush1.bf16.msra.mxu0 %v973
    %2183 = vmatprep.subr.bf16.mxu0 %v970
    %2184 = vmatpush1.bf16.msra.mxu0 %v969
    %2185 = vmatprep.subr.bf16.mxu0 %v966
    %2186 = vmatpush1.bf16.msra.mxu0 %v965
    %2187 = vmatprep.subr.bf16.mxu0 %v962
    %2188 = vmatpush1.bf16.msra.mxu0 %v961
    %2189 = vmatprep.subr.bf16.mxu0 0
    %2190 = vmatpush2.bf16.msra.mxu0 0
    %2191 = vmatprep.subr.bf16.mxu0 0
    %2192 = vmatpush2.bf16.msra.mxu0 0
    %2193 = vmatprep.subr.bf16.mxu0 0
    %2194 = vmatpush2.bf16.msra.mxu0 0
    %2195 = vmatprep.subr.bf16.mxu0 0
    %2196 = vmatpush2.bf16.msra.mxu0 0
    %2197 = vmatprep.subr.bf16.mxu0 0
    %2198 = vmatpush2.bf16.msra.mxu0 0
    %2199 = vmatprep.subr.bf16.mxu0 0
    %2200 = vmatpush2.bf16.msra.mxu0 0
    %2201 = vmatprep.subr.bf16.mxu0 0
    %2202 = vmatpush2.bf16.msra.mxu0 0
    %2203 = vmatprep.subr.bf16.mxu0 0
    %2204 = vmatpush2.bf16.msra.mxu0 0
    %2205 = vmatprep.mubr.bf16.mxu0 0
    %2206 = vmatmul.mubr.bf16.gmra.mxu0 %v2159
    %v2207 = vpop.f32.mrf.mxu0
    %v2208 = vadd.f32 0.0, %v2207
    %v2209 = vpop.f32.mrf.mxu0
    %v2210 = vadd.f32 0.0, %v2209
    %v2211 = vpop.f32.mrf.mxu0
    %v2212 = vadd.f32 0.0, %v2211
    %v2213 = vpop.f32.mrf.mxu0
    %v2214 = vadd.f32 0.0, %v2213
    %2215 = vdwg.mxu0
    %2216 = vmatprep.subr.bf16.mxu0 %v992
    %2217 = vmatpush1.bf16.msra.mxu0 %v991
    %2218 = vmatprep.subr.bf16.mxu0 %v988
    %2219 = vmatpush1.bf16.msra.mxu0 %v987
    %2220 = vmatprep.subr.bf16.mxu0 %v984
    %2221 = vmatpush1.bf16.msra.mxu0 %v983
    %2222 = vmatprep.subr.bf16.mxu0 %v980
    %2223 = vmatpush1.bf16.msra.mxu0 %v979
    %2224 = vmatprep.subr.bf16.mxu0 %v976
    %2225 = vmatpush1.bf16.msra.mxu0 %v975
    %2226 = vmatprep.subr.bf16.mxu0 %v972
    %2227 = vmatpush1.bf16.msra.mxu0 %v971
    %2228 = vmatprep.subr.bf16.mxu0 %v968
    %2229 = vmatpush1.bf16.msra.mxu0 %v967
    %2230 = vmatprep.subr.bf16.mxu0 %v964
    %2231 = vmatpush1.bf16.msra.mxu0 %v963
    %2232 = vmatprep.subr.bf16.mxu0 0
    %2233 = vmatpush2.bf16.msra.mxu0 0
    %2234 = vmatprep.subr.bf16.mxu0 0
    %2235 = vmatpush2.bf16.msra.mxu0 0
    %2236 = vmatprep.subr.bf16.mxu0 0
    %2237 = vmatpush2.bf16.msra.mxu0 0
    %2238 = vmatprep.subr.bf16.mxu0 0
    %2239 = vmatpush2.bf16.msra.mxu0 0
    %2240 = vmatprep.subr.bf16.mxu0 0
    %2241 = vmatpush2.bf16.msra.mxu0 0
    %2242 = vmatprep.subr.bf16.mxu0 0
    %2243 = vmatpush2.bf16.msra.mxu0 0
    %2244 = vmatprep.subr.bf16.mxu0 0
    %2245 = vmatpush2.bf16.msra.mxu0 0
    %2246 = vmatprep.subr.bf16.mxu0 0
    %2247 = vmatpush2.bf16.msra.mxu0 0
    %2248 = vmatprep.mubr.bf16.mxu0 0
    %2249 = vmatmul.mubr.bf16.gmra.mxu0 %v2159
    %v2250 = vpop.f32.mrf.mxu0
    %v2251 = vadd.f32 0.0, %v2250
    %v2252 = vpop.f32.mrf.mxu0
    %v2253 = vadd.f32 0.0, %v2252
    %v2254 = vpop.f32.mrf.mxu0
    %v2255 = vadd.f32 0.0, %v2254
    %v2256 = vpop.f32.mrf.mxu0
    %v2257 = vadd.f32 0.0, %v2256
    %2258 = vdwg.mxu0
    %v2259 = vadd.f32 %v2165, %v2208
    %v2260 = vadd.f32 %v2166, %v2210
    %v2261 = vadd.f32 %v2167, %v2251
    %v2262 = vadd.f32 %v2168, %v2253
    %v2263 = vadd.f32 %v2169, %v2212
    %v2264 = vadd.f32 %v2170, %v2214
    %v2265 = vadd.f32 %v2171, %v2255
    %v2266 = vadd.f32 %v2172, %v2257
    %v2267 = vadd.f32 %v2259, %v799
    %v2268 = vadd.f32 %v2260, %v803
    %v2269 = vadd.f32 %v2261, %v807
    %v2270 = vadd.f32 %v2262, %v811
    %v2271 = vadd.f32 %v2263, %v799
    %v2272 = vadd.f32 %v2264, %v803
    %v2273 = vadd.f32 %v2265, %v807
    %v2274 = vadd.f32 %v2266, %v811
    %v2275 = vxor.u32 %v2267, 2147483648
    %v2276 = vxor.u32 %v2271, 2147483648
    %v2277 = vmul.f32 %v2275, 1.442695
    %v2278 = vpow.pop %v2277
    %v2279 = vmul.f32 %v2276, 1.442695
    %v2280 = vpow.pop %v2279
    %v2281 = vadd.f32 %v2278, 1.0
    %v2282 = vadd.f32 %v2280, 1.0
    %v2283 = vrcp.pop %v2281
    %v2284 = vmul.f32 1.0, %v2283
    %v2285 = vrcp.pop %v2282
    %v2286 = vmul.f32 1.0, %v2285
    %v2287 = vxor.u32 %v2268, 2147483648
    %v2288 = vxor.u32 %v2272, 2147483648
    %v2289 = vmul.f32 %v2287, 1.442695
    %v2290 = vpow.pop %v2289
    %v2291 = vmul.f32 %v2288, 1.442695
    %v2292 = vpow.pop %v2291
    %v2293 = vadd.f32 %v2290, 1.0
    %v2294 = vadd.f32 %v2292, 1.0
    %v2295 = vrcp.pop %v2293
    %v2296 = vmul.f32 1.0, %v2295
    %v2297 = vrcp.pop %v2294
    %v2298 = vmul.f32 1.0, %v2297
    %v2299 = vtanh.pop %v2269
    %v2300 = vtanh.pop %v2273
    %v2301 = vmul.f32 %v2296, %v2141
    %v2302 = vmul.f32 %v2298, %v2142
    %v2303 = vmul.f32 %v2284, %v2299
    %v2304 = vmul.f32 %v2286, %v2300
    %v2305 = vadd.f32 %v2301, %v2303
    %v2306 = vadd.f32 %v2302, %v2304
    %v2307 = vxor.u32 %v2270, 2147483648
    %v2308 = vxor.u32 %v2274, 2147483648
    %v2309 = vmul.f32 %v2307, 1.442695
    %v2310 = vpow.pop %v2309
    %v2311 = vmul.f32 %v2308, 1.442695
    %v2312 = vpow.pop %v2311
    %v2313 = vadd.f32 %v2310, 1.0
    %v2314 = vadd.f32 %v2312, 1.0
    %v2315 = vrcp.pop %v2313
    %v2316 = vmul.f32 1.0, %v2315
    %v2317 = vrcp.pop %v2314
    %v2318 = vmul.f32 1.0, %v2317
    %v2319 = vtanh.pop %v2305
    %v2320 = vtanh.pop %v2306
    %v2321 = vmul.f32 %v2316, %v2319
    %v2322 = vmul.f32 %v2318, %v2320
    %2323 = vst [vmem:[#allocation2] sm:$0xff] %v2321
    %2324 = vst [vmem:[#allocation2 + $0x8] sm:$0xff] %v2322
    %2325 = vst [vmem:[#allocation3] sm:$0xff] %v2305
    %2326 = vst [vmem:[#allocation3 + $0x8] sm:$0xff] %v2306
    // Predicated region
    $region46: #{tpu_custom_call.1} parent=1 // pred_check
      %p2327 = pneg %p80
    $region47: #{tpu_custom_call.1} parent=1 // pred_check_branch
      %2329 = sbr.rel (%p2327) target = $region49
    $region48: #{tpu_custom_call.1} parent=1 // pred_region
      %v2330 = vpack.c.bf16 %v2322, %v2321
      %v2331 = vld [vmem:[#allocation11] sm:$0xf]
      %v2332 = vld [vmem:[#allocation11 + $0x4] sm:$0xf]
      %v2333 = vld [vmem:[#allocation11 + $0x8] sm:$0xf]
      %v2334 = vld [vmem:[#allocation11 + $0xc] sm:$0xf]
      %v2335 = vld [vmem:[#allocation11 + $0x10] sm:$0xf]
      %v2336 = vld [vmem:[#allocation11 + $0x14] sm:$0xf]
      %v2337 = vld [vmem:[#allocation11 + $0x18] sm:$0xf]
      %v2338 = vld [vmem:[#allocation11 + $0x1c] sm:$0xf]
      %v2339 = vld [vmem:[#allocation11 + $0x20] sm:$0xf]
      %v2340 = vld [vmem:[#allocation11 + $0x24] sm:$0xf]
      %v2341 = vld [vmem:[#allocation11 + $0x28] sm:$0xf]
      %v2342 = vld [vmem:[#allocation11 + $0x2c] sm:$0xf]
      %v2343 = vld [vmem:[#allocation11 + $0x30] sm:$0xf]
      %v2344 = vld [vmem:[#allocation11 + $0x34] sm:$0xf]
      %v2345 = vld [vmem:[#allocation11 + $0x38] sm:$0xf]
      %v2346 = vld [vmem:[#allocation11 + $0x3c] sm:$0xf]
      %v2347 = vld [vmem:[%s5] sm:$0x1]
      %v2349 = vlaneseq
      %v2350 = vshrl.u32 %v2349, 7
      %v2351 = vsub.s32 0, %v2350
      %v2352 = vrot.slane %v2347, %v2351
      %v2370 = vunpack.c.l.b16 %v2331
      %v2371 = vunpack.c.l.b16 %v2332
      %v2372 = vunpack.c.l.b16 %v2333
      %v2373 = vunpack.c.l.b16 %v2334
      %v2374 = vunpack.c.l.b16 %v2335
      %v2375 = vunpack.c.l.b16 %v2336
      %v2376 = vunpack.c.l.b16 %v2337
      %v2377 = vunpack.c.l.b16 %v2338
      %v2378 = vunpack.c.l.b16 %v2339
      %v2379 = vunpack.c.l.b16 %v2340
      %v2380 = vunpack.c.l.b16 %v2341
      %v2381 = vunpack.c.l.b16 %v2342
      %v2382 = vunpack.c.l.b16 %v2343
      %v2383 = vunpack.c.l.b16 %v2344
      %v2384 = vunpack.c.l.b16 %v2345
      %v2385 = vunpack.c.l.b16 %v2346
      %v2386 = vpack.c.b16 %v2371, %v2370
      %v2387 = vpack.c.b16 %v2373, %v2372
      %v2388 = vpack.c.b16 %v2375, %v2374
      %v2389 = vpack.c.b16 %v2377, %v2376
      %v2390 = vpack.c.b16 %v2379, %v2378
      %v2391 = vpack.c.b16 %v2381, %v2380
      %v2392 = vpack.c.b16 %v2383, %v2382
      %v2393 = vpack.c.b16 %v2385, %v2384
      %2402 = vmatprep.subr.bf16.mxu0 0
      %2403 = vmatpush1.bf16.msra.mxu0 %v2393
      %2404 = vmatprep.subr.bf16.mxu0 0
      %2405 = vmatpush1.bf16.msra.mxu0 %v2392
      %2406 = vmatprep.subr.bf16.mxu0 0
      %2407 = vmatpush1.bf16.msra.mxu0 %v2391
      %2408 = vmatprep.subr.bf16.mxu0 0
      %2409 = vmatpush1.bf16.msra.mxu0 %v2390
      %2410 = vmatprep.subr.bf16.mxu0 0
      %2411 = vmatpush1.bf16.msra.mxu0 %v2389
      %2412 = vmatprep.subr.bf16.mxu0 0
      %2413 = vmatpush1.bf16.msra.mxu0 %v2388
      %2414 = vmatprep.subr.bf16.mxu0 0
      %2415 = vmatpush1.bf16.msra.mxu0 %v2387
      %2416 = vmatprep.subr.bf16.mxu0 0
      %2417 = vmatpush1.bf16.msra.mxu0 %v2386
      %2418 = vmatprep.subr.bf16.mxu0 0
      %2419 = vmatpush2.bf16.msra.mxu0 0
      %2420 = vmatprep.subr.bf16.mxu0 0
      %2421 = vmatpush2.bf16.msra.mxu0 0
      %2422 = vmatprep.subr.bf16.mxu0 0
      %2423 = vmatpush2.bf16.msra.mxu0 0
      %2424 = vmatprep.subr.bf16.mxu0 0
      %2425 = vmatpush2.bf16.msra.mxu0 0
      %2426 = vmatprep.subr.bf16.mxu0 0
      %2427 = vmatpush2.bf16.msra.mxu0 0
      %2428 = vmatprep.subr.bf16.mxu0 0
      %2429 = vmatpush2.bf16.msra.mxu0 0
      %2430 = vmatprep.subr.bf16.mxu0 0
      %2431 = vmatpush2.bf16.msra.mxu0 0
      %2432 = vmatprep.subr.bf16.mxu0 0
      %2433 = vmatpush2.bf16.msra.mxu0 0
      %2434 = vmatprep.mubr.bf16.mxu0 0
      %2435 = vmatmul.mubr.bf16.gmra.mxu0 %v2330
      %v2436 = vpop.f32.mrf.mxu0
      %v2437 = vadd.f32 %v2352, %v2436
      %v2438 = vpop.f32.mrf.mxu0
      %v2439 = vpop.f32.mrf.mxu0
      %v2440 = vadd.f32 %v2352, %v2439
      %v2441 = vpop.f32.mrf.mxu0
      %2442 = vdwg.mxu0
      %2443 = vmax.xlane.f32.xlu0 %v2437
      %v2444 = vpop.xlane.xlu0 %2443
      %2445 = vmax.xlane.f32.xlu0 %v2440
      %v2446 = vpop.xlane.xlu0 %2445
      %v2447 = vsub.f32 %v2437, %v2444
      %v2448 = vsub.f32 %v2440, %v2446
      %v2449 = vmul.f32 %v2447, 1.442695
      %v2450 = vpow.pop %v2449
      %v2451 = vmul.f32 %v2448, 1.442695
      %v2452 = vpow.pop %v2451
      %2453 = vadd.xlane.f32.xlu0 %v2450
      %v2454 = vpop.xlane.xlu0 %2453
      %2455 = vadd.xlane.f32.xlu0 %v2452
      %v2456 = vpop.xlane.xlu0 %2455
      %v2457 = vlog2.pop %v2454
      %v2458 = vmul.f32 %v2457, 0.6931472
      %v2459 = vlog2.pop %v2456
      %v2460 = vmul.f32 %v2459, 0.6931472
      %v2461 = vsub.f32 %v2447, %v2458
      %v2462 = vsub.f32 %v2448, %v2460
      %2463 = vst [vmem:[#allocation13] sm:$0xff] %v2461
      %2464 = vst [vmem:[#allocation13 + $0x8] sm:$0xff] %v2462
    $region49: #{tpu_custom_call.1} parent=1 // pred_fallthru
      _
    // Predicated region
    $region50: #{tpu_custom_call.1} parent=1 // pred_check
      _
    $region51: #{tpu_custom_call.1} parent=1 // pred_check_branch
      %2466 = sbr.rel (0) target = $region53
    $region52: #{tpu_custom_call.1} parent=1 // pred_region
      %s2468 = ssub.s32 256, 256
      %2469 = vsyncadd [#allocation7], %s2468
      %s2470 = sshll.u32 [#allocation13], 4
      %s2471 = int_to_ptr.vmem [resolvable:$true] %s2470
      %2476 = dma.vmem_to_hbm [thread:$0]  %s2471, 256, %s6, [#allocation7], 128, 128, 8
    $region53: #{tpu_custom_call.1} parent=1 // pred_fallthru
      _
    // Predicated region
    $region54: #{tpu_custom_call.1} parent=1 // pred_check
      _
    $region55: #{tpu_custom_call.1} parent=1 // pred_check_branch
      %2478 = sbr.rel (0) target = $region57
    $region56: #{tpu_custom_call.1} parent=1 // pred_region
      %2479 = dma.done [#allocation7], 256
    $region57: #{tpu_custom_call.1} parent=1 // pred_fallthru
      _
    %2480 = vsyncpa [#allocation6], 1
    %2481 = vsyncpa [#allocation9], 1
    %2482 = vsyncpa [#allocation12], 1
    %2483 = vsyncpa [#allocation7], 1

</llo_original>
